<compile_context>
chip_gen: v7x
topology: tpu7x:2x2x1
jax: 0.10.0
libtpu: 0.0.40
codegen_flags: <defaults>
</compile_context>

<pallas_src>
import functools

import jax
import jax.numpy as jnp
from jax.experimental import pallas as pl
from jax.experimental.pallas import tpu as pltpu

_LANE = 128               # vreg lane width
_SUBLANE = 8              # f32 sublane count
_VMEM_BUDGET = 48 << 20   # conservative tiles+resident-weights budget (fits v7x 64 MiB)
_MIN_PALLAS_FLOPS = 5e7   # dispatch break-even on real MLP FLOPs (re-measure per gen)
_MIN_PALLAS_BATCH = 32768


def _round_up(n, m):
    return ((n + m - 1) // m) * m


def _pad_to(a, target, axis):
    pad = target - a.shape[axis]
    if pad <= 0:
        return a
    widths = [(0, 0)] * a.ndim
    widths[axis] = (0, pad)
    return jnp.pad(a, widths)


@functools.lru_cache(maxsize=1)
def _device_traits():
    """Generation-aware knobs, resolved once at Python level (trace time)."""
    try:
        kind = jax.devices()[0].device_kind.lower()
    except Exception:
        kind = ""
    is_v7x = "v7" in kind
    is_v5 = "v5" in kind
    return {
        "num_tc": 2 if is_v7x else 1,           # v7x: two TensorCores per chip
        "bf16_eup": ("v6" in kind) or is_v7x,   # v5e has no bf16 EUP/VPU
        "lane_pad_out": not is_v5,              # v5e: narrow output (skip 16x writeback)
    }


def encoder_kernel(x_ref, w1_ref, b1_ref, w2_ref, b2_ref, w3_ref, b3_ref, out_ref,
                   *, bf16_tanh):
    """Whole 3-layer MLP fused in VMEM: MXU matmuls + VPU bias/ReLU + EUP tanh."""
    x = x_ref[...]
    h = jnp.dot(x.astype(w1_ref.dtype), w1_ref[...],
                preferred_element_type=jnp.float32) + b1_ref[...]
    h = jnp.maximum(h, 0.0)
    h = jnp.dot(h.astype(w2_ref.dtype), w2_ref[...],
                preferred_element_type=jnp.float32) + b2_ref[...]
    h = jnp.maximum(h, 0.0)
    y = jnp.dot(h.astype(w3_ref.dtype), w3_ref[...],
                preferred_element_type=jnp.float32) + b3_ref[...]
    if bf16_tanh:
        # v6e/v7x have a bf16 EUP -> half the tanh vreg passes.  Never taken on v5e
        # or on the exact-f32 path.
        y = y.astype(jnp.bfloat16)
    out_ref[...] = jnp.tanh(y).astype(out_ref.dtype)


def encoder_jnp(x, p, *, use_bf16=True):
    """Fused-XLA fallback / reference with the same numerics as the kernel."""
    w_dtype = jnp.bfloat16 if use_bf16 else jnp.float32

    def lin(h, w, b):
        return jnp.dot(h.astype(w_dtype), w.astype(w_dtype),
                       preferred_element_type=jnp.float32) + b.astype(jnp.float32)

    h = jnp.maximum(lin(x, p["w1"], p["b1"]), 0.0)
    h = jnp.maximum(lin(h, p["w2"], p["b2"]), 0.0)
    return jnp.tanh(lin(h, p["w3"], p["b3"]))


def _pallas_pays_off(B, D_in, H, D_out):
    # Gate on total real work, not batch size: at tiny MLP sizes (e.g. 16->32->32->8)
    # the kernel is custom-call / step-overhead bound and fused XLA wins outright.
    if B < _SUBLANE:
        return False
    flops = 2 * B * (D_in * H + H * H + H * D_out)
    return flops >= _MIN_PALLAS_FLOPS or B >= _MIN_PALLAS_BATCH


@functools.partial(jax.jit,
                   static_argnames=("batch_tile", "use_bf16", "force_pallas"))
def encoder_forward(x, params, *, batch_tile=None, use_bf16=True, force_pallas=False):
    """x: (B, high_dims) f32. params: dict of weights (in,out) / biases (1,out)."""
    B, D_in = x.shape
    H = params["w1"].shape[1]
    D_out = params["w3"].shape[1]
    traits = _device_traits()

    if (not force_pallas and not _pallas_pays_off(B, D_in, H, D_out)) or B < _SUBLANE:
        return encoder_jnp(x, params, use_bf16=use_bf16)

    # --- feature padding ---------------------------------------------------------
    # Hidden dim -> multiple of 128 (lane-dense intermediates).  Output: lane-dense
    # 128-wide slab on v6e/v7x (unmasked vst; extra writeback ~free at their HBM BW),
    # narrow D_out-wide slab on v5e (16x less writeback; masked vst lands on a store
    # slot with slack).  D_in (K of the first matmul) is deliberately NOT padded.
    H_p = _round_up(H, _LANE)
    OW = _round_up(D_out, _LANE) if traits["lane_pad_out"] else D_out
    w_dtype = jnp.bfloat16 if use_bf16 else jnp.float32

    w1 = _pad_to(params["w1"], H_p, 1).astype(w_dtype)                   # (D_in, H_p)
    b1 = _pad_to(params["b1"], H_p, 1).astype(jnp.float32)               # (1, H_p)
    w2 = _pad_to(_pad_to(params["w2"], H_p, 0), H_p, 1).astype(w_dtype)  # (H_p, H_p)
    b2 = _pad_to(params["b2"], H_p, 1).astype(jnp.float32)               # (1, H_p)
    w3 = _pad_to(_pad_to(params["w3"], H_p, 0), OW, 1).astype(w_dtype)   # (H_p, OW)
    b3 = _pad_to(params["b3"], OW, 1).astype(jnp.float32)                # (1, OW)

    # --- VMEM accounting -----------------------------------------------------------
    w_isz = 2 if use_bf16 else 4
    weight_bytes = ((w1.size + w2.size + w3.size) * w_isz
                    + (b1.size + b2.size + b3.size) * 4)
    # Resident (constant-index-map) blocks are double-buffered by default; once the
    # weights are big enough for that to matter, single-buffer them (one DMA either
    # way, zero perf cost) so v7x's 64 MiB VMEM still fits as hidden_shape scales.
    single_buffer_weights = weight_bytes > (8 << 20)
    weights_resident = weight_bytes * (1 if single_buffer_weights else 2)
    # Per batch-row: double-buffered x + out tiles plus in-kernel f32 intermediates.
    per_row_bytes = 4 * (2 * D_in + 2 * OW + 4 * H_p)
    if weights_resident + per_row_bytes * _SUBLANE > _VMEM_BUDGET:
        # TODO(synk): K-tile w2 (emit_pipeline over H with an f32 accumulator scratch)
        # so hidden_shape in the thousands fits v7x VMEM; fall back to XLA for now.
        return encoder_jnp(x, params, use_bf16=use_bf16)

    # --- batch tiling ---------------------------------------------------------------
    # Aim for 2 grid steps per TensorCore (2 on v5e/v6e, 4 on v7x): keeps the DMA /
    # compute pipeline overlapped while paying the fewest ~0.35us per-step overheads.
    # No wrapper batch padding: grid = cdiv(B, tb) and Pallas clips the partial block.
    steps_target = 2 * traits["num_tc"]
    tb = _round_up(pl.cdiv(B, steps_target), _SUBLANE)
    if batch_tile is not None:
        tb = min(tb, max(_SUBLANE, _round_up(int(batch_tile), _SUBLANE)))
    tb_cap = ((_VMEM_BUDGET - weights_resident) // per_row_bytes) // _SUBLANE * _SUBLANE
    tb = max(_SUBLANE, min(tb, tb_cap))
    grid = (pl.cdiv(B, tb),)

    vmem_needed = weights_resident + per_row_bytes * tb
    vmem_limit = int(min(max(vmem_needed + (8 << 20), 16 << 20), 56 << 20))

    # Advisory cost estimate so XLA schedules surrounding ops sensibly.
    rows = grid[0] * tb
    flops = 2 * rows * (D_in * H_p + H_p * H_p + H_p * OW)
    bytes_accessed = B * D_in * 4 + weight_bytes + B * OW * 4
    cost = pl.CostEstimate(flops=flops, transcendentals=rows * OW,
                           bytes_accessed=bytes_accessed)

    def _resident(arr):
        # Full-array block + constant index map: weight stays in VMEM across all
        # batch tiles.
        if single_buffer_weights:
            return pl.BlockSpec(arr.shape, lambda i: (0,) * arr.ndim,
                                pipeline_mode=pl.Buffered(1))
        return pl.BlockSpec(arr.shape, lambda i: (0,) * arr.ndim)

    bf16_tanh = bool(use_bf16 and traits["bf16_eup"])

    out = pl.pallas_call(
        functools.partial(encoder_kernel, bf16_tanh=bf16_tanh),
        out_shape=jax.ShapeDtypeStruct((B, OW), jnp.float32),
        grid_spec=pltpu.PrefetchScalarGridSpec(
            num_scalar_prefetch=0,
            grid=grid,
            in_specs=[
                pl.BlockSpec((tb, D_in), lambda i: (i, 0)),   # x batch tile
                _resident(w1), _resident(b1),
                _resident(w2), _resident(b2),
                _resident(w3), _resident(b3),
            ],
            out_specs=pl.BlockSpec((tb, OW), lambda i: (i, 0)),
        ),
        compiler_params=pltpu.CompilerParams(
            dimension_semantics=("parallel",),    # megacore / v7x dual-TC sharding
            vmem_limit_bytes=vmem_limit,
        ),
        cost_estimate=cost,
    )(x, w1, b1, w2, b2, w3, b3)

    return out if OW == D_out else out[:, :D_out]


def init_params(key, high_dims, hidden_shape, low_dims):
    # Deterministic synthetic init (num_layers=2 default of the module):
    #   linear_0: high_dims -> hidden, ReLU
    #   linear_1: hidden    -> hidden, ReLU
    #   linear_2: hidden    -> low_dims, Tanh
    k1, k2, k3, k4, k5, k6 = jax.random.split(key, 6)
    scale = 0.1
    return {
        "w1": scale * jax.random.normal(k1, (high_dims, hidden_shape), jnp.float32),
        "b1": scale * jax.random.normal(k2, (1, hidden_shape), jnp.float32),
        "w2": scale * jax.random.normal(k3, (hidden_shape, hidden_shape), jnp.float32),
        "b2": scale * jax.random.normal(k4, (1, hidden_shape), jnp.float32),
        "w3": scale * jax.random.normal(k5, (hidden_shape, low_dims), jnp.float32),
        "b3": scale * jax.random.normal(k6, (1, low_dims), jnp.float32),
    }


if __name__ == "__main__":
    # module config: high_dims=16, hidden_shape=32, low_dims=8, num_layers=2 (default)
    # B chosen so the batch grid has >= 2 steps and is not tied to the tile size.
    B, HIGH, HID, LOW = 2000, 16, 32, 8
    key = jax.random.PRNGKey(0)
    kx, kp = jax.random.split(key)
    x = jax.random.normal(kx, (B, HIGH), jnp.float32)
    params = init_params(kp, HIGH, HID, LOW)

    # Pallas path (forced: at this tiny config the work-based gate would pick XLA).
    out = encoder_forward(x, params, force_pallas=True)
    out = jax.block_until_ready(out)
    assert out.shape == (B, LOW)
    ref = encoder_jnp(x, params, use_bf16=True)
    assert jnp.allclose(out, ref, atol=2e-2, rtol=2e-2), \
        float(jnp.max(jnp.abs(out - ref)))

    # Exact-f32 Pallas path for a tight numerical check of the fused MLP math.
    out32 = encoder_forward(x, params, use_bf16=False, force_pallas=True)
    out32 = jax.block_until_ready(out32)
    ref32 = encoder_jnp(x, params, use_bf16=False)
    assert jnp.allclose(out32, ref32, atol=1e-4, rtol=1e-4), \
        float(jnp.max(jnp.abs(out32 - ref32)))

    # Default dispatch: work-based gate routes this tiny config to the fused-XLA path.
    out_auto = jax.block_until_ready(encoder_forward(x, params))
    assert out_auto.shape == (B, LOW)
    assert jnp.allclose(out_auto, ref, atol=2e-2, rtol=2e-2)

    print("KERNEL_OK")
</pallas_src>

<mosaic_0001>
module attributes {stable_mosaic.version = 11 : i64} {
  func.func @encoder_kernel(%arg0: i32, %arg1: memref<1000x16xf32, #tpu.memory_space<vmem>>, %arg2: memref<16x128xbf16, #tpu.memory_space<vmem>>, %arg3: memref<1x128xf32, #tpu.memory_space<vmem>>, %arg4: memref<128x128xbf16, #tpu.memory_space<vmem>>, %arg5: memref<1x128xf32, #tpu.memory_space<vmem>>, %arg6: memref<128x128xbf16, #tpu.memory_space<vmem>>, %arg7: memref<1x128xf32, #tpu.memory_space<vmem>>, %arg8: memref<1000x128xf32, #tpu.memory_space<vmem>>) attributes {dimension_semantics = [#tpu.dimension_semantics<parallel>], iteration_bounds = array<i64: 2>, scalar_prefetch = 0 : i64, scratch_operands = 0 : i64, tpu.core_type = #tpu.core_type<tc>, window_params = [{transform_indices = @transform_0, window_bounds = array<i64: 1000, 16>}, {pipeline_mode = #tpu.pipeline_mode<synchronous>, transform_indices = @transform_1, window_bounds = array<i64: 16, 128>}, {pipeline_mode = #tpu.pipeline_mode<synchronous>, transform_indices = @transform_2, window_bounds = array<i64: 1, 128>}, {pipeline_mode = #tpu.pipeline_mode<synchronous>, transform_indices = @transform_3, window_bounds = array<i64: 128, 128>}, {pipeline_mode = #tpu.pipeline_mode<synchronous>, transform_indices = @transform_4, window_bounds = array<i64: 1, 128>}, {pipeline_mode = #tpu.pipeline_mode<synchronous>, transform_indices = @transform_5, window_bounds = array<i64: 128, 128>}, {pipeline_mode = #tpu.pipeline_mode<synchronous>, transform_indices = @transform_6, window_bounds = array<i64: 1, 128>}, {transform_indices = @transform_7, window_bounds = array<i64: 1000, 128>}]} {
    %c0 = arith.constant 0 : index
    %c0_0 = arith.constant 0 : index
    %0 = vector.load %arg1[%c0, %c0_0] : memref<1000x16xf32, #tpu.memory_space<vmem>>, vector<1000x16xf32>
    %1 = arith.truncf %0 : vector<1000x16xf32> to vector<1000x16xbf16>
    %c0_1 = arith.constant 0 : index
    %c0_2 = arith.constant 0 : index
    %2 = vector.load %arg2[%c0_1, %c0_2] : memref<16x128xbf16, #tpu.memory_space<vmem>>, vector<16x128xbf16>
    %cst = arith.constant dense<0.000000e+00> : vector<1000x128xf32>
    %3 = tpu.matmul %1, %2, %cst {dimension_numbers = #tpu.dot_dimension_numbers<[1], [0], [0], [1], [0, 0, 1, 1], [], []>} : vector<1000x16xbf16>, vector<16x128xbf16>, vector<1000x128xf32> -> vector<1000x128xf32>
    %c0_3 = arith.constant 0 : index
    %c0_4 = arith.constant 0 : index
    %4 = vector.load %arg3[%c0_3, %c0_4] : memref<1x128xf32, #tpu.memory_space<vmem>>, vector<1x128xf32>
    %5 = vector.broadcast %4 : vector<1x128xf32> to vector<1000x128xf32>
    %6 = arith.addf %3, %5 : vector<1000x128xf32>
    %cst_5 = arith.constant 0.000000e+00 : f32
    %7 = vector.broadcast %cst_5 : f32 to vector<1000x128xf32>
    %8 = arith.maximumf %6, %7 : vector<1000x128xf32>
    %9 = arith.truncf %8 : vector<1000x128xf32> to vector<1000x128xbf16>
    %c0_6 = arith.constant 0 : index
    %c0_7 = arith.constant 0 : index
    %10 = vector.load %arg4[%c0_6, %c0_7] : memref<128x128xbf16, #tpu.memory_space<vmem>>, vector<128x128xbf16>
    %cst_8 = arith.constant dense<0.000000e+00> : vector<1000x128xf32>
    %11 = tpu.matmul %9, %10, %cst_8 {dimension_numbers = #tpu.dot_dimension_numbers<[1], [0], [0], [1], [0, 0, 1, 1], [], []>} : vector<1000x128xbf16>, vector<128x128xbf16>, vector<1000x128xf32> -> vector<1000x128xf32>
    %c0_9 = arith.constant 0 : index
    %c0_10 = arith.constant 0 : index
    %12 = vector.load %arg5[%c0_9, %c0_10] : memref<1x128xf32, #tpu.memory_space<vmem>>, vector<1x128xf32>
    %13 = vector.broadcast %12 : vector<1x128xf32> to vector<1000x128xf32>
    %14 = arith.addf %11, %13 : vector<1000x128xf32>
    %cst_11 = arith.constant 0.000000e+00 : f32
    %15 = vector.broadcast %cst_11 : f32 to vector<1000x128xf32>
    %16 = arith.maximumf %14, %15 : vector<1000x128xf32>
    %17 = arith.truncf %16 : vector<1000x128xf32> to vector<1000x128xbf16>
    %c0_12 = arith.constant 0 : index
    %c0_13 = arith.constant 0 : index
    %18 = vector.load %arg6[%c0_12, %c0_13] : memref<128x128xbf16, #tpu.memory_space<vmem>>, vector<128x128xbf16>
    %cst_14 = arith.constant dense<0.000000e+00> : vector<1000x128xf32>
    %19 = tpu.matmul %17, %18, %cst_14 {dimension_numbers = #tpu.dot_dimension_numbers<[1], [0], [0], [1], [0, 0, 1, 1], [], []>} : vector<1000x128xbf16>, vector<128x128xbf16>, vector<1000x128xf32> -> vector<1000x128xf32>
    %c0_15 = arith.constant 0 : index
    %c0_16 = arith.constant 0 : index
    %20 = vector.load %arg7[%c0_15, %c0_16] : memref<1x128xf32, #tpu.memory_space<vmem>>, vector<1x128xf32>
    %21 = vector.broadcast %20 : vector<1x128xf32> to vector<1000x128xf32>
    %22 = arith.addf %19, %21 : vector<1000x128xf32>
    %23 = math.tanh %22 : vector<1000x128xf32>
    %c0_17 = arith.constant 0 : index
    %c0_18 = arith.constant 0 : index
    %24 = vector.load %arg8[%c0_17, %c0_18] : memref<1000x128xf32, #tpu.memory_space<vmem>>, vector<1000x128xf32>
    tpu.vector_store %arg8[%c0_17, %c0_18], %23 {strides = array<i32>} : memref<1000x128xf32, #tpu.memory_space<vmem>>, vector<1000x128xf32>,
    return
  }
  func.func @transform_0(%arg0: i32) -> (i32, i32) {
    %c0_i32 = arith.constant 0 : i32
    %c0_i32_0 = arith.constant 0 : i32
    return %arg0, %c0_i32 : i32, i32
  }
  func.func @transform_1(%arg0: i32) -> (i32, i32) {
    %c0_i32 = arith.constant 0 : i32
    %c0_i32_0 = arith.constant 0 : i32
    %c0_i32_1 = arith.constant 0 : i32
    return %c0_i32, %c0_i32_0 : i32, i32
  }
  func.func @transform_2(%arg0: i32) -> (i32, i32) {
    %c0_i32 = arith.constant 0 : i32
    %c0_i32_0 = arith.constant 0 : i32
    %c0_i32_1 = arith.constant 0 : i32
    return %c0_i32, %c0_i32_0 : i32, i32
  }
  func.func @transform_3(%arg0: i32) -> (i32, i32) {
    %c0_i32 = arith.constant 0 : i32
    %c0_i32_0 = arith.constant 0 : i32
    %c0_i32_1 = arith.constant 0 : i32
    return %c0_i32, %c0_i32_0 : i32, i32
  }
  func.func @transform_4(%arg0: i32) -> (i32, i32) {
    %c0_i32 = arith.constant 0 : i32
    %c0_i32_0 = arith.constant 0 : i32
    %c0_i32_1 = arith.constant 0 : i32
    return %c0_i32, %c0_i32_0 : i32, i32
  }
  func.func @transform_5(%arg0: i32) -> (i32, i32) {
    %c0_i32 = arith.constant 0 : i32
    %c0_i32_0 = arith.constant 0 : i32
    %c0_i32_1 = arith.constant 0 : i32
    return %c0_i32, %c0_i32_0 : i32, i32
  }
  func.func @transform_6(%arg0: i32) -> (i32, i32) {
    %c0_i32 = arith.constant 0 : i32
    %c0_i32_0 = arith.constant 0 : i32
    %c0_i32_1 = arith.constant 0 : i32
    return %c0_i32, %c0_i32_0 : i32, i32
  }
  func.func @transform_7(%arg0: i32) -> (i32, i32) {
    %c0_i32 = arith.constant 0 : i32
    %c0_i32_0 = arith.constant 0 : i32
    return %arg0, %c0_i32 : i32, i32
  }
}

</mosaic_0001>

<llo_original>
// kernel: encoder_forward.1
$region0: #{encoder_forward.1}
  #allocation0 [shape = 'u32[]', space=smem, size = 0x4, offset = 0x4, fixed_abs, tag = 'smem constant byte address 0x4 - core index']
  #allocation1 [shape = 'u32[144,128]{1,0:T(1,128)}', space=vmem, size = 0x12000, scoped, tag = 'internal scratch']
  %s0 = inlined_call_operand.vmem [shape: f32[2000,16], index: 0, kind: input, shape index: {}]
  %s1 = inlined_call_operand.vmem [shape: bf16[16,128], index: 1, kind: input, shape index: {}]
  %s2 = inlined_call_operand.vmem [shape: f32[1,128], index: 2, kind: input, shape index: {}]
  %s3 = inlined_call_operand.vmem [shape: bf16[128,128], index: 3, kind: input, shape index: {}]
  %s4 = inlined_call_operand.vmem [shape: f32[1,128], index: 4, kind: input, shape index: {}]
  %s5 = inlined_call_operand.vmem [shape: bf16[128,128], index: 5, kind: input, shape index: {}]
  %s6 = inlined_call_operand.vmem [shape: f32[1,128], index: 6, kind: input, shape index: {}]
  %s7 = inlined_call_operand.vmem [shape: f32[2000,128], index: 7, kind: output, shape index: {}]
  %s8 = sld [smem:[#allocation0]]
  $region61: #{encoder_forward.1} parent=0
    _
  %s10 = ssub.s32 1, %s8
  %s11 = scalar_select 0, %s10, %s8
  loop: start=0, step=1, limit=4
  $region2: #{encoder_forward.1} parent=0 // loop_pre_header
    _
  $region3: #{encoder_forward.1} parent=0 // loop_header
    %s13 = sphi 0, %s17
    %p14 = scmp.ge.s32.totalorder %s13, 4
    %s23 = sphi 0, %s25
    %s26 = sphi 0, %s23
    %s27 = sphi 0, %s26
    %s43 = sphi 0, %s27
    %s47 = sphi 0, %s47
    %s49 = sphi 0, %s47
    %s50 = sphi 0, %s49
    %s64 = sphi 0, %s50
    %s68 = sphi 0, %s68
    %s70 = sphi 0, %s68
    %s71 = sphi 0, %s70
    %s85 = sphi 0, %s71
    %s89 = sphi 0, %s89
    %s91 = sphi 0, %s89
    %s92 = sphi 0, %s91
    %s106 = sphi 0, %s92
    %s110 = sphi 0, %s110
    %s112 = sphi 0, %s110
    %s113 = sphi 0, %s112
    %s127 = sphi 0, %s113
    %s131 = sphi 0, %s131
    %s133 = sphi 0, %s131
    %s134 = sphi 0, %s133
    %s148 = sphi 0, %s134
    %s152 = sphi 0, %s152
    %s154 = sphi 0, %s152
    %s155 = sphi 0, %s154
    %s169 = sphi 0, %s155
    %s175 = sphi 0, %s177
    %s178 = sphi 0, %s175
    %s179 = sphi 0, %s178
    %s195 = sphi 0, %s179
  $region4: #{encoder_forward.1} parent=0 // loop_header_branch
    %16 = sbr.rel (%p14) target = $region8
  $region5: #{encoder_forward.1} parent=0 // loop_body
    %s18 = ssub.s32 %s13, 1
    %s19 = ssub.s32 %s13, 2
    %s20 = sadd.s32 %s13, 1
    %s21 = ssub.s32 %s13, %s20
    %p22 = scmp.eq.s32.totalorder %s21, 0
    %s24 = sadd.s32 %s23, 1
    %s25 = scalar_select %p22, %s23, %s24
    %p28 = pneg %p22
    %p29 = scmp.eq.s32.totalorder %s13, 1
    %p30 = por %p28, %p29
    %p31 = scmp.ne.s32.totalorder %s23, %s26
    %p32 = scmp.eq.s32.totalorder %s13, 0
    %p33 = por %p31, %p32
    %p34 = scmp.ne.s32.totalorder %s23, %s26
    %p35 = scmp.eq.s32.totalorder %s18, 1
    %p36 = por %p34, %p35
    %p37 = scmp.ne.s32.totalorder %s26, %s27
    %p38 = scmp.eq.s32.totalorder %s18, 0
    %p39 = por %p37, %p38
    %p40 = scmp.ne.s32.totalorder %s26, %s27
    %p41 = scmp.eq.s32.totalorder %s19, 1
    %p42 = por %p40, %p41
    %p44 = scmp.ne.s32.totalorder %s27, %s43
    %p45 = scmp.eq.s32.totalorder %s19, 0
    %p46 = por %p44, %p45
    %s48 = sadd.s32 %s47, 1
    %p51 = scmp.eq.s32.totalorder %s13, 1
    %p52 = scmp.ne.s32.totalorder %s47, %s49
    %p53 = scmp.eq.s32.totalorder %s13, 0
    %p54 = por %p52, %p53
    %p55 = scmp.ne.s32.totalorder %s47, %s49
    %p56 = scmp.eq.s32.totalorder %s18, 1
    %p57 = por %p55, %p56
    %p58 = scmp.ne.s32.totalorder %s49, %s50
    %p59 = scmp.eq.s32.totalorder %s18, 0
    %p60 = por %p58, %p59
    %p61 = scmp.ne.s32.totalorder %s49, %s50
    %p62 = scmp.eq.s32.totalorder %s19, 1
    %p63 = por %p61, %p62
    %p65 = scmp.ne.s32.totalorder %s50, %s64
    %p66 = scmp.eq.s32.totalorder %s19, 0
    %p67 = por %p65, %p66
    %s69 = sadd.s32 %s68, 1
    %p72 = scmp.eq.s32.totalorder %s13, 1
    %p73 = scmp.ne.s32.totalorder %s68, %s70
    %p74 = scmp.eq.s32.totalorder %s13, 0
    %p75 = por %p73, %p74
    %p76 = scmp.ne.s32.totalorder %s68, %s70
    %p77 = scmp.eq.s32.totalorder %s18, 1
    %p78 = por %p76, %p77
    %p79 = scmp.ne.s32.totalorder %s70, %s71
    %p80 = scmp.eq.s32.totalorder %s18, 0
    %p81 = por %p79, %p80
    %p82 = scmp.ne.s32.totalorder %s70, %s71
    %p83 = scmp.eq.s32.totalorder %s19, 1
    %p84 = por %p82, %p83
    %p86 = scmp.ne.s32.totalorder %s71, %s85
    %p87 = scmp.eq.s32.totalorder %s19, 0
    %p88 = por %p86, %p87
    %s90 = sadd.s32 %s89, 1
    %p93 = scmp.eq.s32.totalorder %s13, 1
    %p94 = scmp.ne.s32.totalorder %s89, %s91
    %p95 = scmp.eq.s32.totalorder %s13, 0
    %p96 = por %p94, %p95
    %p97 = scmp.ne.s32.totalorder %s89, %s91
    %p98 = scmp.eq.s32.totalorder %s18, 1
    %p99 = por %p97, %p98
    %p100 = scmp.ne.s32.totalorder %s91, %s92
    %p101 = scmp.eq.s32.totalorder %s18, 0
    %p102 = por %p100, %p101
    %p103 = scmp.ne.s32.totalorder %s91, %s92
    %p104 = scmp.eq.s32.totalorder %s19, 1
    %p105 = por %p103, %p104
    %p107 = scmp.ne.s32.totalorder %s92, %s106
    %p108 = scmp.eq.s32.totalorder %s19, 0
    %p109 = por %p107, %p108
    %s111 = sadd.s32 %s110, 1
    %p114 = scmp.eq.s32.totalorder %s13, 1
    %p115 = scmp.ne.s32.totalorder %s110, %s112
    %p116 = scmp.eq.s32.totalorder %s13, 0
    %p117 = por %p115, %p116
    %p118 = scmp.ne.s32.totalorder %s110, %s112
    %p119 = scmp.eq.s32.totalorder %s18, 1
    %p120 = por %p118, %p119
    %p121 = scmp.ne.s32.totalorder %s112, %s113
    %p122 = scmp.eq.s32.totalorder %s18, 0
    %p123 = por %p121, %p122
    %p124 = scmp.ne.s32.totalorder %s112, %s113
    %p125 = scmp.eq.s32.totalorder %s19, 1
    %p126 = por %p124, %p125
    %p128 = scmp.ne.s32.totalorder %s113, %s127
    %p129 = scmp.eq.s32.totalorder %s19, 0
    %p130 = por %p128, %p129
    %s132 = sadd.s32 %s131, 1
    %p135 = scmp.eq.s32.totalorder %s13, 1
    %p136 = scmp.ne.s32.totalorder %s131, %s133
    %p137 = scmp.eq.s32.totalorder %s13, 0
    %p138 = por %p136, %p137
    %p139 = scmp.ne.s32.totalorder %s131, %s133
    %p140 = scmp.eq.s32.totalorder %s18, 1
    %p141 = por %p139, %p140
    %p142 = scmp.ne.s32.totalorder %s133, %s134
    %p143 = scmp.eq.s32.totalorder %s18, 0
    %p144 = por %p142, %p143
    %p145 = scmp.ne.s32.totalorder %s133, %s134
    %p146 = scmp.eq.s32.totalorder %s19, 1
    %p147 = por %p145, %p146
    %p149 = scmp.ne.s32.totalorder %s134, %s148
    %p150 = scmp.eq.s32.totalorder %s19, 0
    %p151 = por %p149, %p150
    %s153 = sadd.s32 %s152, 1
    %p156 = scmp.eq.s32.totalorder %s13, 1
    %p157 = scmp.ne.s32.totalorder %s152, %s154
    %p158 = scmp.eq.s32.totalorder %s13, 0
    %p159 = por %p157, %p158
    %p160 = scmp.ne.s32.totalorder %s152, %s154
    %p161 = scmp.eq.s32.totalorder %s18, 1
    %p162 = por %p160, %p161
    %p163 = scmp.ne.s32.totalorder %s154, %s155
    %p164 = scmp.eq.s32.totalorder %s18, 0
    %p165 = por %p163, %p164
    %p166 = scmp.ne.s32.totalorder %s154, %s155
    %p167 = scmp.eq.s32.totalorder %s19, 1
    %p168 = por %p166, %p167
    %p170 = scmp.ne.s32.totalorder %s155, %s169
    %p171 = scmp.eq.s32.totalorder %s19, 0
    %p172 = por %p170, %p171
    %s173 = ssub.s32 %s13, %s20
    %p174 = scmp.eq.s32.totalorder %s173, 0
    %s176 = sadd.s32 %s175, 1
    %s177 = scalar_select %p174, %s175, %s176
    %p180 = pneg %p174
    %p181 = scmp.eq.s32.totalorder %s13, 1
    %p182 = por %p180, %p181
    %p183 = scmp.ne.s32.totalorder %s175, %s178
    %p184 = scmp.eq.s32.totalorder %s13, 0
    %p185 = por %p183, %p184
    %p186 = scmp.ne.s32.totalorder %s175, %s178
    %p187 = scmp.eq.s32.totalorder %s18, 1
    %p188 = por %p186, %p187
    %p189 = scmp.ne.s32.totalorder %s178, %s179
    %p190 = scmp.eq.s32.totalorder %s18, 0
    %p191 = por %p189, %p190
    %p192 = scmp.ne.s32.totalorder %s178, %s179
    %p193 = scmp.eq.s32.totalorder %s19, 1
    %p194 = por %p192, %p193
    %p196 = scmp.ne.s32.totalorder %s179, %s195
    %p197 = scmp.eq.s32.totalorder %s19, 0
    %p198 = por %p196, %p197
    %p199 = scmp.le.s32.totalorder 1, %s13
    %p200 = scmp.lt.s32.totalorder %s13, 3
    %p201 = pnand %p199, %p200
    %p202 = pneg %p201
    // Predicated region
    $region9: #{encoder_forward.1} parent=5 // pred_check
      _
    $region10: #{encoder_forward.1} parent=5 // pred_check_branch
      %204 = sbr.rel (%p201) target = $region12
    $region11: #{encoder_forward.1} parent=5 // pred_region
      %s205 = ssub.s32 %s13, 1
      // Predicated region
      $region13: #{encoder_forward.1} parent=11 // pred_check
        %p206 = pneg %p60
      $region14: #{encoder_forward.1} parent=11 // pred_check_branch
        %208 = sbr.rel (%p206) target = $region16
      $region15: #{encoder_forward.1} parent=11 // pred_region
        _
      $region16: #{encoder_forward.1} parent=11 // pred_fallthru
        _
      // Predicated region
      $region17: #{encoder_forward.1} parent=11 // pred_check
        %p209 = pneg %p81
      $region18: #{encoder_forward.1} parent=11 // pred_check_branch
        %211 = sbr.rel (%p209) target = $region20
      $region19: #{encoder_forward.1} parent=11 // pred_region
        _
      $region20: #{encoder_forward.1} parent=11 // pred_fallthru
        _
      // Predicated region
      $region21: #{encoder_forward.1} parent=11 // pred_check
        %p212 = pneg %p102
      $region22: #{encoder_forward.1} parent=11 // pred_check_branch
        %214 = sbr.rel (%p212) target = $region24
      $region23: #{encoder_forward.1} parent=11 // pred_region
        _
      $region24: #{encoder_forward.1} parent=11 // pred_fallthru
        _
      // Predicated region
      $region25: #{encoder_forward.1} parent=11 // pred_check
        %p215 = pneg %p123
      $region26: #{encoder_forward.1} parent=11 // pred_check_branch
        %217 = sbr.rel (%p215) target = $region28
      $region27: #{encoder_forward.1} parent=11 // pred_region
        _
      $region28: #{encoder_forward.1} parent=11 // pred_fallthru
        _
      // Predicated region
      $region29: #{encoder_forward.1} parent=11 // pred_check
        %p218 = pneg %p144
      $region30: #{encoder_forward.1} parent=11 // pred_check_branch
        %220 = sbr.rel (%p218) target = $region32
      $region31: #{encoder_forward.1} parent=11 // pred_region
        _
      $region32: #{encoder_forward.1} parent=11 // pred_fallthru
        _
      // Predicated region
      $region33: #{encoder_forward.1} parent=11 // pred_check
        %p221 = pneg %p165
      $region34: #{encoder_forward.1} parent=11 // pred_check_branch
        %223 = sbr.rel (%p221) target = $region36
      $region35: #{encoder_forward.1} parent=11 // pred_region
        _
      $region36: #{encoder_forward.1} parent=11 // pred_fallthru
        _
    $region12: #{encoder_forward.1} parent=5 // pred_fallthru
      _
    %p224 = scmp.lt.s32.totalorder %s13, 2
    // Predicated region
    $region37: #{encoder_forward.1} parent=5 // pred_check
      %p225 = pneg %p224
    $region38: #{encoder_forward.1} parent=5 // pred_check_branch
      %227 = sbr.rel (%p225) target = $region40
    $region39: #{encoder_forward.1} parent=5 // pred_region
      // Predicated region
      $region41: #{encoder_forward.1} parent=39 // pred_check
        %p228 = pneg %p33
      $region42: #{encoder_forward.1} parent=39 // pred_check_branch
        %230 = sbr.rel (%p228) target = $region44
      $region43: #{encoder_forward.1} parent=39 // pred_region
        %s231 = smul.u32 125, %s13
        %p232 = scmp.lt.s32.totalorder %s231, 249
        %s233 = scalar_select %p232, %s231, 249
        %s234 = smul.addr %s233, 8
        %s235 = scalar_lea.vmem %s0, %s234
        %s236 = smul.u32 125, %s13
      $region44: #{encoder_forward.1} parent=39 // pred_fallthru
        _
    $region40: #{encoder_forward.1} parent=5 // pred_fallthru
      _
    %p237 = scmp.le.s32.totalorder 1, %s13
    %p238 = scmp.lt.s32.totalorder %s13, 3
    %p239 = pnand %p237, %p238
    %p240 = pneg %p239
    // Predicated region
    $region45: #{encoder_forward.1} parent=5 // pred_check
      _
    $region46: #{encoder_forward.1} parent=5 // pred_check_branch
      %242 = sbr.rel (%p239) target = $region48
    $region47: #{encoder_forward.1} parent=5 // pred_region
      %s243 = ssub.s32 %s13, 1
      %s244 = smul.u32 125, %s18
      %p245 = scmp.lt.s32.totalorder %s244, 249
      %s246 = scalar_select %p245, %s244, 249
      %s247 = smul.addr %s246, 8
      %s248 = scalar_lea.vmem %s0, %s247
      %p249 = pneg %p39
      %p250 = pneg %p36
      %p251 = pneg %p60
      %p252 = pneg %p57
      %p253 = pneg %p81
      %p254 = pneg %p78
      %p255 = pneg %p102
      %p256 = pneg %p99
      %p257 = pneg %p123
      %p258 = pneg %p120
      %p259 = pneg %p144
      %p260 = pneg %p141
      %p261 = pneg %p165
      %p262 = pneg %p162
      %p263 = pneg %p191
      %p264 = pneg %p188
      %s265 = smul.u32 125, %s18
      %p266 = scmp.lt.s32.totalorder %s265, 249
      %s267 = scalar_select %p266, %s265, 249
      %s268 = smul.addr %s267, 8
      %s269 = scalar_lea.vmem %s7, %s268
      %s270 = smul.u32 125, %s18
      %p271 = scmp.lt.s32.totalorder %s270, 249
      %s272 = scalar_select %p271, %s270, 249
      %s273 = smul.addr %s272, 8
      %s274 = scalar_lea.vmem %s0, %s273
      %s275 = smul.u32 125, %s18
      %s276 = smul.u32 125, %s18
      %p277 = scmp.lt.s32.totalorder %s276, 249
      %s278 = scalar_select %p277, %s276, 249
      %s279 = smul.addr %s278, 8
      %s280 = scalar_lea.vmem %s7, %s279
      %s281 = smul.u32 125, %s18
      %v283 = vld [vmem:[%s274] sm:$0xff]
      %v284 = vld [vmem:[%s274 + $0x8] sm:$0xff]
      %v285 = vld [vmem:[%s274 + $0x10] sm:$0xff]
      %v286 = vld [vmem:[%s274 + $0x18] sm:$0xff]
      %v287 = vld [vmem:[%s274 + $0x20] sm:$0xff]
      %v288 = vld [vmem:[%s274 + $0x28] sm:$0xff]
      %v289 = vld [vmem:[%s274 + $0x30] sm:$0xff]
      %v290 = vld [vmem:[%s274 + $0x38] sm:$0xff]
      %v291 = vld [vmem:[%s274 + $0x40] sm:$0xff]
      %v292 = vld [vmem:[%s274 + $0x48] sm:$0xff]
      %v293 = vld [vmem:[%s274 + $0x50] sm:$0xff]
      %v294 = vld [vmem:[%s274 + $0x58] sm:$0xff]
      %v295 = vld [vmem:[%s274 + $0x60] sm:$0xff]
      %v296 = vld [vmem:[%s274 + $0x68] sm:$0xff]
      %v297 = vld [vmem:[%s274 + $0x70] sm:$0xff]
      %v298 = vld [vmem:[%s274 + $0x78] sm:$0xff]
      %v299 = vld [vmem:[%s274 + $0x80] sm:$0xff]
      %v300 = vld [vmem:[%s274 + $0x88] sm:$0xff]
      %v301 = vld [vmem:[%s274 + $0x90] sm:$0xff]
      %v302 = vld [vmem:[%s274 + $0x98] sm:$0xff]
      %v303 = vld [vmem:[%s274 + $0xa0] sm:$0xff]
      %v304 = vld [vmem:[%s274 + $0xa8] sm:$0xff]
      %v305 = vld [vmem:[%s274 + $0xb0] sm:$0xff]
      %v306 = vld [vmem:[%s274 + $0xb8] sm:$0xff]
      %v307 = vld [vmem:[%s274 + $0xc0] sm:$0xff]
      %v308 = vld [vmem:[%s274 + $0xc8] sm:$0xff]
      %v309 = vld [vmem:[%s274 + $0xd0] sm:$0xff]
      %v310 = vld [vmem:[%s274 + $0xd8] sm:$0xff]
      %v311 = vld [vmem:[%s274 + $0xe0] sm:$0xff]
      %v312 = vld [vmem:[%s274 + $0xe8] sm:$0xff]
      %v313 = vld [vmem:[%s274 + $0xf0] sm:$0xff]
      %v314 = vld [vmem:[%s274 + $0xf8] sm:$0xff]
      %v315 = vld [vmem:[%s274 + $0x100] sm:$0xff]
      %v316 = vld [vmem:[%s274 + $0x108] sm:$0xff]
      %v317 = vld [vmem:[%s274 + $0x110] sm:$0xff]
      %v318 = vld [vmem:[%s274 + $0x118] sm:$0xff]
      %v319 = vld [vmem:[%s274 + $0x120] sm:$0xff]
      %v320 = vld [vmem:[%s274 + $0x128] sm:$0xff]
      %v321 = vld [vmem:[%s274 + $0x130] sm:$0xff]
      %v322 = vld [vmem:[%s274 + $0x138] sm:$0xff]
      %v323 = vld [vmem:[%s274 + $0x140] sm:$0xff]
      %v324 = vld [vmem:[%s274 + $0x148] sm:$0xff]
      %v325 = vld [vmem:[%s274 + $0x150] sm:$0xff]
      %v326 = vld [vmem:[%s274 + $0x158] sm:$0xff]
      %v327 = vld [vmem:[%s274 + $0x160] sm:$0xff]
      %v328 = vld [vmem:[%s274 + $0x168] sm:$0xff]
      %v329 = vld [vmem:[%s274 + $0x170] sm:$0xff]
      %v330 = vld [vmem:[%s274 + $0x178] sm:$0xff]
      %v331 = vld [vmem:[%s274 + $0x180] sm:$0xff]
      %v332 = vld [vmem:[%s274 + $0x188] sm:$0xff]
      %v333 = vld [vmem:[%s274 + $0x190] sm:$0xff]
      %v334 = vld [vmem:[%s274 + $0x198] sm:$0xff]
      %v335 = vld [vmem:[%s274 + $0x1a0] sm:$0xff]
      %v336 = vld [vmem:[%s274 + $0x1a8] sm:$0xff]
      %v337 = vld [vmem:[%s274 + $0x1b0] sm:$0xff]
      %v338 = vld [vmem:[%s274 + $0x1b8] sm:$0xff]
      %v339 = vld [vmem:[%s274 + $0x1c0] sm:$0xff]
      %v340 = vld [vmem:[%s274 + $0x1c8] sm:$0xff]
      %v341 = vld [vmem:[%s274 + $0x1d0] sm:$0xff]
      %v342 = vld [vmem:[%s274 + $0x1d8] sm:$0xff]
      %v343 = vld [vmem:[%s274 + $0x1e0] sm:$0xff]
      %v344 = vld [vmem:[%s274 + $0x1e8] sm:$0xff]
      %v345 = vld [vmem:[%s274 + $0x1f0] sm:$0xff]
      %v346 = vld [vmem:[%s274 + $0x1f8] sm:$0xff]
      %v347 = vld [vmem:[%s274 + $0x200] sm:$0xff]
      %v348 = vld [vmem:[%s274 + $0x208] sm:$0xff]
      %v349 = vld [vmem:[%s274 + $0x210] sm:$0xff]
      %v350 = vld [vmem:[%s274 + $0x218] sm:$0xff]
      %v351 = vld [vmem:[%s274 + $0x220] sm:$0xff]
      %v352 = vld [vmem:[%s274 + $0x228] sm:$0xff]
      %v353 = vld [vmem:[%s274 + $0x230] sm:$0xff]
      %v354 = vld [vmem:[%s274 + $0x238] sm:$0xff]
      %v355 = vld [vmem:[%s274 + $0x240] sm:$0xff]
      %v356 = vld [vmem:[%s274 + $0x248] sm:$0xff]
      %v357 = vld [vmem:[%s274 + $0x250] sm:$0xff]
      %v358 = vld [vmem:[%s274 + $0x258] sm:$0xff]
      %v359 = vld [vmem:[%s274 + $0x260] sm:$0xff]
      %v360 = vld [vmem:[%s274 + $0x268] sm:$0xff]
      %v361 = vld [vmem:[%s274 + $0x270] sm:$0xff]
      %v362 = vld [vmem:[%s274 + $0x278] sm:$0xff]
      %v363 = vld [vmem:[%s274 + $0x280] sm:$0xff]
      %v364 = vld [vmem:[%s274 + $0x288] sm:$0xff]
      %v365 = vld [vmem:[%s274 + $0x290] sm:$0xff]
      %v366 = vld [vmem:[%s274 + $0x298] sm:$0xff]
      %v367 = vld [vmem:[%s274 + $0x2a0] sm:$0xff]
      %v368 = vld [vmem:[%s274 + $0x2a8] sm:$0xff]
      %v369 = vld [vmem:[%s274 + $0x2b0] sm:$0xff]
      %v370 = vld [vmem:[%s274 + $0x2b8] sm:$0xff]
      %v371 = vld [vmem:[%s274 + $0x2c0] sm:$0xff]
      %v372 = vld [vmem:[%s274 + $0x2c8] sm:$0xff]
      %v373 = vld [vmem:[%s274 + $0x2d0] sm:$0xff]
      %v374 = vld [vmem:[%s274 + $0x2d8] sm:$0xff]
      %v375 = vld [vmem:[%s274 + $0x2e0] sm:$0xff]
      %v376 = vld [vmem:[%s274 + $0x2e8] sm:$0xff]
      %v377 = vld [vmem:[%s274 + $0x2f0] sm:$0xff]
      %v378 = vld [vmem:[%s274 + $0x2f8] sm:$0xff]
      %v379 = vld [vmem:[%s274 + $0x300] sm:$0xff]
      %v380 = vld [vmem:[%s274 + $0x308] sm:$0xff]
      %v381 = vld [vmem:[%s274 + $0x310] sm:$0xff]
      %v382 = vld [vmem:[%s274 + $0x318] sm:$0xff]
      %v383 = vld [vmem:[%s274 + $0x320] sm:$0xff]
      %v384 = vld [vmem:[%s274 + $0x328] sm:$0xff]
      %v385 = vld [vmem:[%s274 + $0x330] sm:$0xff]
      %v386 = vld [vmem:[%s274 + $0x338] sm:$0xff]
      %v387 = vld [vmem:[%s274 + $0x340] sm:$0xff]
      %v388 = vld [vmem:[%s274 + $0x348] sm:$0xff]
      %v389 = vld [vmem:[%s274 + $0x350] sm:$0xff]
      %v390 = vld [vmem:[%s274 + $0x358] sm:$0xff]
      %v391 = vld [vmem:[%s274 + $0x360] sm:$0xff]
      %v392 = vld [vmem:[%s274 + $0x368] sm:$0xff]
      %v393 = vld [vmem:[%s274 + $0x370] sm:$0xff]
      %v394 = vld [vmem:[%s274 + $0x378] sm:$0xff]
      %v395 = vld [vmem:[%s274 + $0x380] sm:$0xff]
      %v396 = vld [vmem:[%s274 + $0x388] sm:$0xff]
      %v397 = vld [vmem:[%s274 + $0x390] sm:$0xff]
      %v398 = vld [vmem:[%s274 + $0x398] sm:$0xff]
      %v399 = vld [vmem:[%s274 + $0x3a0] sm:$0xff]
      %v400 = vld [vmem:[%s274 + $0x3a8] sm:$0xff]
      %v401 = vld [vmem:[%s274 + $0x3b0] sm:$0xff]
      %v402 = vld [vmem:[%s274 + $0x3b8] sm:$0xff]
      %v403 = vld [vmem:[%s274 + $0x3c0] sm:$0xff]
      %v404 = vld [vmem:[%s274 + $0x3c8] sm:$0xff]
      %v405 = vld [vmem:[%s274 + $0x3d0] sm:$0xff]
      %v406 = vld [vmem:[%s274 + $0x3d8] sm:$0xff]
      %v407 = vld [vmem:[%s274 + $0x3e0] sm:$0xff]
      %v408 = vpack.c.bf16 %v284, %v283
      %v409 = vpack.c.bf16 %v286, %v285
      %v410 = vpack.c.bf16 %v288, %v287
      %v411 = vpack.c.bf16 %v290, %v289
      %v412 = vpack.c.bf16 %v292, %v291
      %v413 = vpack.c.bf16 %v294, %v293
      %v414 = vpack.c.bf16 %v296, %v295
      %v415 = vpack.c.bf16 %v298, %v297
      %v416 = vpack.c.bf16 %v300, %v299
      %v417 = vpack.c.bf16 %v302, %v301
      %v418 = vpack.c.bf16 %v304, %v303
      %v419 = vpack.c.bf16 %v306, %v305
      %v420 = vpack.c.bf16 %v308, %v307
      %v421 = vpack.c.bf16 %v310, %v309
      %v422 = vpack.c.bf16 %v312, %v311
      %v423 = vpack.c.bf16 %v314, %v313
      %v424 = vpack.c.bf16 %v316, %v315
      %v425 = vpack.c.bf16 %v318, %v317
      %v426 = vpack.c.bf16 %v320, %v319
      %v427 = vpack.c.bf16 %v322, %v321
      %v428 = vpack.c.bf16 %v324, %v323
      %v429 = vpack.c.bf16 %v326, %v325
      %v430 = vpack.c.bf16 %v328, %v327
      %v431 = vpack.c.bf16 %v330, %v329
      %v432 = vpack.c.bf16 %v332, %v331
      %v433 = vpack.c.bf16 %v334, %v333
      %v434 = vpack.c.bf16 %v336, %v335
      %v435 = vpack.c.bf16 %v338, %v337
      %v436 = vpack.c.bf16 %v340, %v339
      %v437 = vpack.c.bf16 %v342, %v341
      %v438 = vpack.c.bf16 %v344, %v343
      %v439 = vpack.c.bf16 %v346, %v345
      %v440 = vpack.c.bf16 %v348, %v347
      %v441 = vpack.c.bf16 %v350, %v349
      %v442 = vpack.c.bf16 %v352, %v351
      %v443 = vpack.c.bf16 %v354, %v353
      %v444 = vpack.c.bf16 %v356, %v355
      %v445 = vpack.c.bf16 %v358, %v357
      %v446 = vpack.c.bf16 %v360, %v359
      %v447 = vpack.c.bf16 %v362, %v361
      %v448 = vpack.c.bf16 %v364, %v363
      %v449 = vpack.c.bf16 %v366, %v365
      %v450 = vpack.c.bf16 %v368, %v367
      %v451 = vpack.c.bf16 %v370, %v369
      %v452 = vpack.c.bf16 %v372, %v371
      %v453 = vpack.c.bf16 %v374, %v373
      %v454 = vpack.c.bf16 %v376, %v375
      %v455 = vpack.c.bf16 %v378, %v377
      %v456 = vpack.c.bf16 %v380, %v379
      %v457 = vpack.c.bf16 %v382, %v381
      %v458 = vpack.c.bf16 %v384, %v383
      %v459 = vpack.c.bf16 %v386, %v385
      %v460 = vpack.c.bf16 %v388, %v387
      %v461 = vpack.c.bf16 %v390, %v389
      %v462 = vpack.c.bf16 %v392, %v391
      %v463 = vpack.c.bf16 %v394, %v393
      %v464 = vpack.c.bf16 %v396, %v395
      %v465 = vpack.c.bf16 %v398, %v397
      %v466 = vpack.c.bf16 %v400, %v399
      %v467 = vpack.c.bf16 %v402, %v401
      %v468 = vpack.c.bf16 %v404, %v403
      %v469 = vpack.c.bf16 %v406, %v405
      %v470 = vpack.c.bf16 %v407, %v407
      %v471 = vld [vmem:[%s1] sm:$0xf]
      %v472 = vld [vmem:[%s1 + $0x4] sm:$0xf]
      %v473 = vld [vmem:[%s2] sm:$0x1]
      %v475 = vlaneseq
      %v476 = vshrl.u32 %v475, 7
      %v477 = vsub.s32 0, %v476
      %v478 = vrot.slane %v473, %v477
      %v482 = vunpack.c.l.b16 %v471
      %v483 = vunpack.c.l.b16 %v472
      %v484 = vpack.c.b16 %v483, %v482
      %vm486 = vcmask 130048
      %v488 = vsel %vm486, %v408, 0
      %v491 = vsel %vm486, %v409, 0
      %v494 = vsel %vm486, %v410, 0
      %v497 = vsel %vm486, %v411, 0
      %v500 = vsel %vm486, %v412, 0
      %v503 = vsel %vm486, %v413, 0
      %v506 = vsel %vm486, %v414, 0
      %v509 = vsel %vm486, %v415, 0
      %v512 = vsel %vm486, %v416, 0
      %v515 = vsel %vm486, %v417, 0
      %v518 = vsel %vm486, %v418, 0
      %v521 = vsel %vm486, %v419, 0
      %v524 = vsel %vm486, %v420, 0
      %v527 = vsel %vm486, %v421, 0
      %v530 = vsel %vm486, %v422, 0
      %v533 = vsel %vm486, %v423, 0
      %v536 = vsel %vm486, %v424, 0
      %v539 = vsel %vm486, %v425, 0
      %v542 = vsel %vm486, %v426, 0
      %v545 = vsel %vm486, %v427, 0
      %v548 = vsel %vm486, %v428, 0
      %v551 = vsel %vm486, %v429, 0
      %v554 = vsel %vm486, %v430, 0
      %v557 = vsel %vm486, %v431, 0
      %v560 = vsel %vm486, %v432, 0
      %v563 = vsel %vm486, %v433, 0
      %v566 = vsel %vm486, %v434, 0
      %v569 = vsel %vm486, %v435, 0
      %v572 = vsel %vm486, %v436, 0
      %v575 = vsel %vm486, %v437, 0
      %v578 = vsel %vm486, %v438, 0
      %v581 = vsel %vm486, %v439, 0
      %v584 = vsel %vm486, %v440, 0
      %v587 = vsel %vm486, %v441, 0
      %v590 = vsel %vm486, %v442, 0
      %v593 = vsel %vm486, %v443, 0
      %v596 = vsel %vm486, %v444, 0
      %v599 = vsel %vm486, %v445, 0
      %v602 = vsel %vm486, %v446, 0
      %v605 = vsel %vm486, %v447, 0
      %v608 = vsel %vm486, %v448, 0
      %v611 = vsel %vm486, %v449, 0
      %v614 = vsel %vm486, %v450, 0
      %v617 = vsel %vm486, %v451, 0
      %v620 = vsel %vm486, %v452, 0
      %v623 = vsel %vm486, %v453, 0
      %v626 = vsel %vm486, %v454, 0
      %v629 = vsel %vm486, %v455, 0
      %v632 = vsel %vm486, %v456, 0
      %v635 = vsel %vm486, %v457, 0
      %v638 = vsel %vm486, %v458, 0
      %v641 = vsel %vm486, %v459, 0
      %v644 = vsel %vm486, %v460, 0
      %v647 = vsel %vm486, %v461, 0
      %v650 = vsel %vm486, %v462, 0
      %v653 = vsel %vm486, %v463, 0
      %v656 = vsel %vm486, %v464, 0
      %v659 = vsel %vm486, %v465, 0
      %v662 = vsel %vm486, %v466, 0
      %v665 = vsel %vm486, %v467, 0
      %v668 = vsel %vm486, %v468, 0
      %v671 = vsel %vm486, %v469, 0
      %v674 = vsel %vm486, %v470, 0
      %676 = vmatprep.subr.bf16.mxu0 0
      %677 = vmatpush1.bf16.msra.mxu0 %v484
      %678 = vmatprep.subr.bf16.mxu0 0
      %679 = vmatpush1.bf16.msra.mxu0 0
      %680 = vmatprep.subr.bf16.mxu0 0
      %681 = vmatpush1.bf16.msra.mxu0 0
      %682 = vmatprep.subr.bf16.mxu0 0
      %683 = vmatpush1.bf16.msra.mxu0 0
      %684 = vmatprep.subr.bf16.mxu0 0
      %685 = vmatpush1.bf16.msra.mxu0 0
      %686 = vmatprep.subr.bf16.mxu0 0
      %687 = vmatpush1.bf16.msra.mxu0 0
      %688 = vmatprep.subr.bf16.mxu0 0
      %689 = vmatpush1.bf16.msra.mxu0 0
      %690 = vmatprep.subr.bf16.mxu0 0
      %691 = vmatpush1.bf16.msra.mxu0 0
      %692 = vmatprep.subr.bf16.mxu0 0
      %693 = vmatpush1.bf16.msra.mxu0 0
      %694 = vmatprep.subr.bf16.mxu0 0
      %695 = vmatpush1.bf16.msra.mxu0 0
      %696 = vmatprep.subr.bf16.mxu0 0
      %697 = vmatpush1.bf16.msra.mxu0 0
      %698 = vmatprep.subr.bf16.mxu0 0
      %699 = vmatpush1.bf16.msra.mxu0 0
      %700 = vmatprep.subr.bf16.mxu0 0
      %701 = vmatpush1.bf16.msra.mxu0 0
      %702 = vmatprep.subr.bf16.mxu0 0
      %703 = vmatpush1.bf16.msra.mxu0 0
      %704 = vmatprep.subr.bf16.mxu0 0
      %705 = vmatpush1.bf16.msra.mxu0 0
      %706 = vmatprep.subr.bf16.mxu0 0
      %707 = vmatpush1.bf16.msra.mxu0 0
      %708 = vmatprep.mubr.bf16.mxu0 0
      %709 = vmatmul.mubr.bf16.gmra.mrb[0].mxu0 %v488
      %v710 = vpop.f32.mrb[0].mxu0
      %v711 = vadd.f32 %v478, %v710
      %v712 = vpop.f32.mrb[0].mxu0
      %v713 = vpop.f32.mrb[0].mxu0
      %v714 = vadd.f32 %v478, %v713
      %v715 = vpop.f32.mrb[0].mxu0
      %716 = vmatprep.mubr.bf16.mxu0 0
      %717 = vmatmul.mubr.bf16.gmra.mrb[0].mxu0 %v491
      %v718 = vpop.f32.mrb[0].mxu0
      %v719 = vadd.f32 %v478, %v718
      %v720 = vpop.f32.mrb[0].mxu0
      %v721 = vpop.f32.mrb[0].mxu0
      %v722 = vadd.f32 %v478, %v721
      %v723 = vpop.f32.mrb[0].mxu0
      %724 = vmatprep.mubr.bf16.mxu0 0
      %725 = vmatmul.mubr.bf16.gmra.mrb[0].mxu0 %v494
      %v726 = vpop.f32.mrb[0].mxu0
      %v727 = vadd.f32 %v478, %v726
      %v728 = vpop.f32.mrb[0].mxu0
      %v729 = vpop.f32.mrb[0].mxu0
      %v730 = vadd.f32 %v478, %v729
      %v731 = vpop.f32.mrb[0].mxu0
      %732 = vmatprep.mubr.bf16.mxu0 0
      %733 = vmatmul.mubr.bf16.gmra.mrb[0].mxu0 %v497
      %v734 = vpop.f32.mrb[0].mxu0
      %v735 = vadd.f32 %v478, %v734
      %v736 = vpop.f32.mrb[0].mxu0
      %v737 = vpop.f32.mrb[0].mxu0
      %v738 = vadd.f32 %v478, %v737
      %v739 = vpop.f32.mrb[0].mxu0
      %740 = vmatprep.mubr.bf16.mxu0 0
      %741 = vmatmul.mubr.bf16.gmra.mrb[0].mxu0 %v500
      %v742 = vpop.f32.mrb[0].mxu0
      %v743 = vadd.f32 %v478, %v742
      %v744 = vpop.f32.mrb[0].mxu0
      %v745 = vpop.f32.mrb[0].mxu0
      %v746 = vadd.f32 %v478, %v745
      %v747 = vpop.f32.mrb[0].mxu0
      %748 = vmatprep.mubr.bf16.mxu0 0
      %749 = vmatmul.mubr.bf16.gmra.mrb[0].mxu0 %v503
      %v750 = vpop.f32.mrb[0].mxu0
      %v751 = vadd.f32 %v478, %v750
      %v752 = vpop.f32.mrb[0].mxu0
      %v753 = vpop.f32.mrb[0].mxu0
      %v754 = vadd.f32 %v478, %v753
      %v755 = vpop.f32.mrb[0].mxu0
      %756 = vmatprep.mubr.bf16.mxu0 0
      %757 = vmatmul.mubr.bf16.gmra.mrb[0].mxu0 %v506
      %v758 = vpop.f32.mrb[0].mxu0
      %v759 = vadd.f32 %v478, %v758
      %v760 = vpop.f32.mrb[0].mxu0
      %v761 = vpop.f32.mrb[0].mxu0
      %v762 = vadd.f32 %v478, %v761
      %v763 = vpop.f32.mrb[0].mxu0
      %764 = vmatprep.mubr.bf16.mxu0 0
      %765 = vmatmul.mubr.bf16.gmra.mrb[0].mxu0 %v509
      %v766 = vpop.f32.mrb[0].mxu0
      %v767 = vadd.f32 %v478, %v766
      %v768 = vpop.f32.mrb[0].mxu0
      %v769 = vpop.f32.mrb[0].mxu0
      %v770 = vadd.f32 %v478, %v769
      %v771 = vpop.f32.mrb[0].mxu0
      %772 = vmatprep.mubr.bf16.mxu0 0
      %773 = vmatmul.mubr.bf16.gmra.mrb[0].mxu0 %v512
      %v774 = vpop.f32.mrb[0].mxu0
      %v775 = vadd.f32 %v478, %v774
      %v776 = vpop.f32.mrb[0].mxu0
      %v777 = vpop.f32.mrb[0].mxu0
      %v778 = vadd.f32 %v478, %v777
      %v779 = vpop.f32.mrb[0].mxu0
      %780 = vmatprep.mubr.bf16.mxu0 0
      %781 = vmatmul.mubr.bf16.gmra.mrb[0].mxu0 %v515
      %v782 = vpop.f32.mrb[0].mxu0
      %v783 = vadd.f32 %v478, %v782
      %v784 = vpop.f32.mrb[0].mxu0
      %v785 = vpop.f32.mrb[0].mxu0
      %v786 = vadd.f32 %v478, %v785
      %v787 = vpop.f32.mrb[0].mxu0
      %788 = vmatprep.mubr.bf16.mxu0 0
      %789 = vmatmul.mubr.bf16.gmra.mrb[0].mxu0 %v518
      %v790 = vpop.f32.mrb[0].mxu0
      %v791 = vadd.f32 %v478, %v790
      %v792 = vpop.f32.mrb[0].mxu0
      %v793 = vpop.f32.mrb[0].mxu0
      %v794 = vadd.f32 %v478, %v793
      %v795 = vpop.f32.mrb[0].mxu0
      %796 = vmatprep.mubr.bf16.mxu0 0
      %797 = vmatmul.mubr.bf16.gmra.mrb[0].mxu0 %v521
      %v798 = vpop.f32.mrb[0].mxu0
      %v799 = vadd.f32 %v478, %v798
      %v800 = vpop.f32.mrb[0].mxu0
      %v801 = vpop.f32.mrb[0].mxu0
      %v802 = vadd.f32 %v478, %v801
      %v803 = vpop.f32.mrb[0].mxu0
      %804 = vmatprep.mubr.bf16.mxu0 0
      %805 = vmatmul.mubr.bf16.gmra.mrb[0].mxu0 %v524
      %v806 = vpop.f32.mrb[0].mxu0
      %v807 = vadd.f32 %v478, %v806
      %v808 = vpop.f32.mrb[0].mxu0
      %v809 = vpop.f32.mrb[0].mxu0
      %v810 = vadd.f32 %v478, %v809
      %v811 = vpop.f32.mrb[0].mxu0
      %812 = vmatprep.mubr.bf16.mxu0 0
      %813 = vmatmul.mubr.bf16.gmra.mrb[0].mxu0 %v527
      %v814 = vpop.f32.mrb[0].mxu0
      %v815 = vadd.f32 %v478, %v814
      %v816 = vpop.f32.mrb[0].mxu0
      %v817 = vpop.f32.mrb[0].mxu0
      %v818 = vadd.f32 %v478, %v817
      %v819 = vpop.f32.mrb[0].mxu0
      %820 = vmatprep.mubr.bf16.mxu0 0
      %821 = vmatmul.mubr.bf16.gmra.mrb[0].mxu0 %v530
      %v822 = vpop.f32.mrb[0].mxu0
      %v823 = vadd.f32 %v478, %v822
      %v824 = vpop.f32.mrb[0].mxu0
      %v825 = vpop.f32.mrb[0].mxu0
      %v826 = vadd.f32 %v478, %v825
      %v827 = vpop.f32.mrb[0].mxu0
      %828 = vmatprep.mubr.bf16.mxu0 0
      %829 = vmatmul.mubr.bf16.gmra.mrb[0].mxu0 %v533
      %v830 = vpop.f32.mrb[0].mxu0
      %v831 = vadd.f32 %v478, %v830
      %v832 = vpop.f32.mrb[0].mxu0
      %v833 = vpop.f32.mrb[0].mxu0
      %v834 = vadd.f32 %v478, %v833
      %v835 = vpop.f32.mrb[0].mxu0
      %836 = vmatprep.mubr.bf16.mxu0 0
      %837 = vmatmul.mubr.bf16.gmra.mrb[0].mxu0 %v536
      %v838 = vpop.f32.mrb[0].mxu0
      %v839 = vadd.f32 %v478, %v838
      %v840 = vpop.f32.mrb[0].mxu0
      %v841 = vpop.f32.mrb[0].mxu0
      %v842 = vadd.f32 %v478, %v841
      %v843 = vpop.f32.mrb[0].mxu0
      %844 = vmatprep.mubr.bf16.mxu0 0
      %845 = vmatmul.mubr.bf16.gmra.mrb[0].mxu0 %v539
      %v846 = vpop.f32.mrb[0].mxu0
      %v847 = vadd.f32 %v478, %v846
      %v848 = vpop.f32.mrb[0].mxu0
      %v849 = vpop.f32.mrb[0].mxu0
      %v850 = vadd.f32 %v478, %v849
      %v851 = vpop.f32.mrb[0].mxu0
      %852 = vmatprep.mubr.bf16.mxu0 0
      %853 = vmatmul.mubr.bf16.gmra.mrb[0].mxu0 %v542
      %v854 = vpop.f32.mrb[0].mxu0
      %v855 = vadd.f32 %v478, %v854
      %v856 = vpop.f32.mrb[0].mxu0
      %v857 = vpop.f32.mrb[0].mxu0
      %v858 = vadd.f32 %v478, %v857
      %v859 = vpop.f32.mrb[0].mxu0
      %860 = vmatprep.mubr.bf16.mxu0 0
      %861 = vmatmul.mubr.bf16.gmra.mrb[0].mxu0 %v545
      %v862 = vpop.f32.mrb[0].mxu0
      %v863 = vadd.f32 %v478, %v862
      %v864 = vpop.f32.mrb[0].mxu0
      %v865 = vpop.f32.mrb[0].mxu0
      %v866 = vadd.f32 %v478, %v865
      %v867 = vpop.f32.mrb[0].mxu0
      %868 = vmatprep.mubr.bf16.mxu0 0
      %869 = vmatmul.mubr.bf16.gmra.mrb[0].mxu0 %v548
      %v870 = vpop.f32.mrb[0].mxu0
      %v871 = vadd.f32 %v478, %v870
      %v872 = vpop.f32.mrb[0].mxu0
      %v873 = vpop.f32.mrb[0].mxu0
      %v874 = vadd.f32 %v478, %v873
      %v875 = vpop.f32.mrb[0].mxu0
      %876 = vmatprep.mubr.bf16.mxu0 0
      %877 = vmatmul.mubr.bf16.gmra.mrb[0].mxu0 %v551
      %v878 = vpop.f32.mrb[0].mxu0
      %v879 = vadd.f32 %v478, %v878
      %v880 = vpop.f32.mrb[0].mxu0
      %v881 = vpop.f32.mrb[0].mxu0
      %v882 = vadd.f32 %v478, %v881
      %v883 = vpop.f32.mrb[0].mxu0
      %884 = vmatprep.mubr.bf16.mxu0 0
      %885 = vmatmul.mubr.bf16.gmra.mrb[0].mxu0 %v554
      %v886 = vpop.f32.mrb[0].mxu0
      %v887 = vadd.f32 %v478, %v886
      %v888 = vpop.f32.mrb[0].mxu0
      %v889 = vpop.f32.mrb[0].mxu0
      %v890 = vadd.f32 %v478, %v889
      %v891 = vpop.f32.mrb[0].mxu0
      %892 = vmatprep.mubr.bf16.mxu0 0
      %893 = vmatmul.mubr.bf16.gmra.mrb[0].mxu0 %v557
      %v894 = vpop.f32.mrb[0].mxu0
      %v895 = vadd.f32 %v478, %v894
      %v896 = vpop.f32.mrb[0].mxu0
      %v897 = vpop.f32.mrb[0].mxu0
      %v898 = vadd.f32 %v478, %v897
      %v899 = vpop.f32.mrb[0].mxu0
      %900 = vmatprep.mubr.bf16.mxu0 0
      %901 = vmatmul.mubr.bf16.gmra.mrb[0].mxu0 %v560
      %v902 = vpop.f32.mrb[0].mxu0
      %v903 = vadd.f32 %v478, %v902
      %v904 = vpop.f32.mrb[0].mxu0
      %v905 = vpop.f32.mrb[0].mxu0
      %v906 = vadd.f32 %v478, %v905
      %v907 = vpop.f32.mrb[0].mxu0
      %908 = vmatprep.mubr.bf16.mxu0 0
      %909 = vmatmul.mubr.bf16.gmra.mrb[0].mxu0 %v563
      %v910 = vpop.f32.mrb[0].mxu0
      %v911 = vadd.f32 %v478, %v910
      %v912 = vpop.f32.mrb[0].mxu0
      %v913 = vpop.f32.mrb[0].mxu0
      %v914 = vadd.f32 %v478, %v913
      %v915 = vpop.f32.mrb[0].mxu0
      %916 = vmatprep.mubr.bf16.mxu0 0
      %917 = vmatmul.mubr.bf16.gmra.mrb[0].mxu0 %v566
      %v918 = vpop.f32.mrb[0].mxu0
      %v919 = vadd.f32 %v478, %v918
      %v920 = vpop.f32.mrb[0].mxu0
      %v921 = vpop.f32.mrb[0].mxu0
      %v922 = vadd.f32 %v478, %v921
      %v923 = vpop.f32.mrb[0].mxu0
      %924 = vmatprep.mubr.bf16.mxu0 0
      %925 = vmatmul.mubr.bf16.gmra.mrb[0].mxu0 %v569
      %v926 = vpop.f32.mrb[0].mxu0
      %v927 = vadd.f32 %v478, %v926
      %v928 = vpop.f32.mrb[0].mxu0
      %v929 = vpop.f32.mrb[0].mxu0
      %v930 = vadd.f32 %v478, %v929
      %v931 = vpop.f32.mrb[0].mxu0
      %932 = vmatprep.mubr.bf16.mxu0 0
      %933 = vmatmul.mubr.bf16.gmra.mrb[0].mxu0 %v572
      %v934 = vpop.f32.mrb[0].mxu0
      %v935 = vadd.f32 %v478, %v934
      %v936 = vpop.f32.mrb[0].mxu0
      %v937 = vpop.f32.mrb[0].mxu0
      %v938 = vadd.f32 %v478, %v937
      %v939 = vpop.f32.mrb[0].mxu0
      %940 = vmatprep.mubr.bf16.mxu0 0
      %941 = vmatmul.mubr.bf16.gmra.mrb[0].mxu0 %v575
      %v942 = vpop.f32.mrb[0].mxu0
      %v943 = vadd.f32 %v478, %v942
      %v944 = vpop.f32.mrb[0].mxu0
      %v945 = vpop.f32.mrb[0].mxu0
      %v946 = vadd.f32 %v478, %v945
      %v947 = vpop.f32.mrb[0].mxu0
      %948 = vmatprep.mubr.bf16.mxu0 0
      %949 = vmatmul.mubr.bf16.gmra.mrb[0].mxu0 %v578
      %v950 = vpop.f32.mrb[0].mxu0
      %v951 = vadd.f32 %v478, %v950
      %v952 = vpop.f32.mrb[0].mxu0
      %v953 = vpop.f32.mrb[0].mxu0
      %v954 = vadd.f32 %v478, %v953
      %v955 = vpop.f32.mrb[0].mxu0
      %956 = vmatprep.mubr.bf16.mxu0 0
      %957 = vmatmul.mubr.bf16.gmra.mrb[0].mxu0 %v581
      %v958 = vpop.f32.mrb[0].mxu0
      %v959 = vadd.f32 %v478, %v958
      %v960 = vpop.f32.mrb[0].mxu0
      %v961 = vpop.f32.mrb[0].mxu0
      %v962 = vadd.f32 %v478, %v961
      %v963 = vpop.f32.mrb[0].mxu0
      %964 = vmatprep.mubr.bf16.mxu0 0
      %965 = vmatmul.mubr.bf16.gmra.mrb[0].mxu0 %v584
      %v966 = vpop.f32.mrb[0].mxu0
      %v967 = vadd.f32 %v478, %v966
      %v968 = vpop.f32.mrb[0].mxu0
      %v969 = vpop.f32.mrb[0].mxu0
      %v970 = vadd.f32 %v478, %v969
      %v971 = vpop.f32.mrb[0].mxu0
      %972 = vmatprep.mubr.bf16.mxu0 0
      %973 = vmatmul.mubr.bf16.gmra.mrb[0].mxu0 %v587
      %v974 = vpop.f32.mrb[0].mxu0
      %v975 = vadd.f32 %v478, %v974
      %v976 = vpop.f32.mrb[0].mxu0
      %v977 = vpop.f32.mrb[0].mxu0
      %v978 = vadd.f32 %v478, %v977
      %v979 = vpop.f32.mrb[0].mxu0
      %980 = vmatprep.mubr.bf16.mxu0 0
      %981 = vmatmul.mubr.bf16.gmra.mrb[0].mxu0 %v590
      %v982 = vpop.f32.mrb[0].mxu0
      %v983 = vadd.f32 %v478, %v982
      %v984 = vpop.f32.mrb[0].mxu0
      %v985 = vpop.f32.mrb[0].mxu0
      %v986 = vadd.f32 %v478, %v985
      %v987 = vpop.f32.mrb[0].mxu0
      %988 = vmatprep.mubr.bf16.mxu0 0
      %989 = vmatmul.mubr.bf16.gmra.mrb[0].mxu0 %v593
      %v990 = vpop.f32.mrb[0].mxu0
      %v991 = vadd.f32 %v478, %v990
      %v992 = vpop.f32.mrb[0].mxu0
      %v993 = vpop.f32.mrb[0].mxu0
      %v994 = vadd.f32 %v478, %v993
      %v995 = vpop.f32.mrb[0].mxu0
      %996 = vmatprep.mubr.bf16.mxu0 0
      %997 = vmatmul.mubr.bf16.gmra.mrb[0].mxu0 %v596
      %v998 = vpop.f32.mrb[0].mxu0
      %v999 = vadd.f32 %v478, %v998
      %v1000 = vpop.f32.mrb[0].mxu0
      %v1001 = vpop.f32.mrb[0].mxu0
      %v1002 = vadd.f32 %v478, %v1001
      %v1003 = vpop.f32.mrb[0].mxu0
      %1004 = vmatprep.mubr.bf16.mxu0 0
      %1005 = vmatmul.mubr.bf16.gmra.mrb[0].mxu0 %v599
      %v1006 = vpop.f32.mrb[0].mxu0
      %v1007 = vadd.f32 %v478, %v1006
      %v1008 = vpop.f32.mrb[0].mxu0
      %v1009 = vpop.f32.mrb[0].mxu0
      %v1010 = vadd.f32 %v478, %v1009
      %v1011 = vpop.f32.mrb[0].mxu0
      %1012 = vmatprep.mubr.bf16.mxu0 0
      %1013 = vmatmul.mubr.bf16.gmra.mrb[0].mxu0 %v602
      %v1014 = vpop.f32.mrb[0].mxu0
      %v1015 = vadd.f32 %v478, %v1014
      %v1016 = vpop.f32.mrb[0].mxu0
      %v1017 = vpop.f32.mrb[0].mxu0
      %v1018 = vadd.f32 %v478, %v1017
      %v1019 = vpop.f32.mrb[0].mxu0
      %1020 = vmatprep.mubr.bf16.mxu0 0
      %1021 = vmatmul.mubr.bf16.gmra.mrb[0].mxu0 %v605
      %v1022 = vpop.f32.mrb[0].mxu0
      %v1023 = vadd.f32 %v478, %v1022
      %v1024 = vpop.f32.mrb[0].mxu0
      %v1025 = vpop.f32.mrb[0].mxu0
      %v1026 = vadd.f32 %v478, %v1025
      %v1027 = vpop.f32.mrb[0].mxu0
      %1028 = vmatprep.mubr.bf16.mxu0 0
      %1029 = vmatmul.mubr.bf16.gmra.mrb[0].mxu0 %v608
      %v1030 = vpop.f32.mrb[0].mxu0
      %v1031 = vadd.f32 %v478, %v1030
      %v1032 = vpop.f32.mrb[0].mxu0
      %v1033 = vpop.f32.mrb[0].mxu0
      %v1034 = vadd.f32 %v478, %v1033
      %v1035 = vpop.f32.mrb[0].mxu0
      %1036 = vmatprep.mubr.bf16.mxu0 0
      %1037 = vmatmul.mubr.bf16.gmra.mrb[0].mxu0 %v611
      %v1038 = vpop.f32.mrb[0].mxu0
      %v1039 = vadd.f32 %v478, %v1038
      %v1040 = vpop.f32.mrb[0].mxu0
      %v1041 = vpop.f32.mrb[0].mxu0
      %v1042 = vadd.f32 %v478, %v1041
      %v1043 = vpop.f32.mrb[0].mxu0
      %1044 = vmatprep.mubr.bf16.mxu0 0
      %1045 = vmatmul.mubr.bf16.gmra.mrb[0].mxu0 %v614
      %v1046 = vpop.f32.mrb[0].mxu0
      %v1047 = vadd.f32 %v478, %v1046
      %v1048 = vpop.f32.mrb[0].mxu0
      %v1049 = vpop.f32.mrb[0].mxu0
      %v1050 = vadd.f32 %v478, %v1049
      %v1051 = vpop.f32.mrb[0].mxu0
      %1052 = vmatprep.mubr.bf16.mxu0 0
      %1053 = vmatmul.mubr.bf16.gmra.mrb[0].mxu0 %v617
      %v1054 = vpop.f32.mrb[0].mxu0
      %v1055 = vadd.f32 %v478, %v1054
      %v1056 = vpop.f32.mrb[0].mxu0
      %v1057 = vpop.f32.mrb[0].mxu0
      %v1058 = vadd.f32 %v478, %v1057
      %v1059 = vpop.f32.mrb[0].mxu0
      %1060 = vmatprep.mubr.bf16.mxu0 0
      %1061 = vmatmul.mubr.bf16.gmra.mrb[0].mxu0 %v620
      %v1062 = vpop.f32.mrb[0].mxu0
      %v1063 = vadd.f32 %v478, %v1062
      %v1064 = vpop.f32.mrb[0].mxu0
      %v1065 = vpop.f32.mrb[0].mxu0
      %v1066 = vadd.f32 %v478, %v1065
      %v1067 = vpop.f32.mrb[0].mxu0
      %1068 = vmatprep.mubr.bf16.mxu0 0
      %1069 = vmatmul.mubr.bf16.gmra.mrb[0].mxu0 %v623
      %v1070 = vpop.f32.mrb[0].mxu0
      %v1071 = vadd.f32 %v478, %v1070
      %v1072 = vpop.f32.mrb[0].mxu0
      %v1073 = vpop.f32.mrb[0].mxu0
      %v1074 = vadd.f32 %v478, %v1073
      %v1075 = vpop.f32.mrb[0].mxu0
      %1076 = vmatprep.mubr.bf16.mxu0 0
      %1077 = vmatmul.mubr.bf16.gmra.mrb[0].mxu0 %v626
      %v1078 = vpop.f32.mrb[0].mxu0
      %v1079 = vadd.f32 %v478, %v1078
      %v1080 = vpop.f32.mrb[0].mxu0
      %v1081 = vpop.f32.mrb[0].mxu0
      %v1082 = vadd.f32 %v478, %v1081
      %v1083 = vpop.f32.mrb[0].mxu0
      %1084 = vmatprep.mubr.bf16.mxu0 0
      %1085 = vmatmul.mubr.bf16.gmra.mrb[0].mxu0 %v629
      %v1086 = vpop.f32.mrb[0].mxu0
      %v1087 = vadd.f32 %v478, %v1086
      %v1088 = vpop.f32.mrb[0].mxu0
      %v1089 = vpop.f32.mrb[0].mxu0
      %v1090 = vadd.f32 %v478, %v1089
      %v1091 = vpop.f32.mrb[0].mxu0
      %1092 = vmatprep.mubr.bf16.mxu0 0
      %1093 = vmatmul.mubr.bf16.gmra.mrb[0].mxu0 %v632
      %v1094 = vpop.f32.mrb[0].mxu0
      %v1095 = vadd.f32 %v478, %v1094
      %v1096 = vpop.f32.mrb[0].mxu0
      %v1097 = vpop.f32.mrb[0].mxu0
      %v1098 = vadd.f32 %v478, %v1097
      %v1099 = vpop.f32.mrb[0].mxu0
      %1100 = vmatprep.mubr.bf16.mxu0 0
      %1101 = vmatmul.mubr.bf16.gmra.mrb[0].mxu0 %v635
      %v1102 = vpop.f32.mrb[0].mxu0
      %v1103 = vadd.f32 %v478, %v1102
      %v1104 = vpop.f32.mrb[0].mxu0
      %v1105 = vpop.f32.mrb[0].mxu0
      %v1106 = vadd.f32 %v478, %v1105
      %v1107 = vpop.f32.mrb[0].mxu0
      %1108 = vmatprep.mubr.bf16.mxu0 0
      %1109 = vmatmul.mubr.bf16.gmra.mrb[0].mxu0 %v638
      %v1110 = vpop.f32.mrb[0].mxu0
      %v1111 = vadd.f32 %v478, %v1110
      %v1112 = vpop.f32.mrb[0].mxu0
      %v1113 = vpop.f32.mrb[0].mxu0
      %v1114 = vadd.f32 %v478, %v1113
      %v1115 = vpop.f32.mrb[0].mxu0
      %1116 = vmatprep.mubr.bf16.mxu0 0
      %1117 = vmatmul.mubr.bf16.gmra.mrb[0].mxu0 %v641
      %v1118 = vpop.f32.mrb[0].mxu0
      %v1119 = vadd.f32 %v478, %v1118
      %v1120 = vpop.f32.mrb[0].mxu0
      %v1121 = vpop.f32.mrb[0].mxu0
      %v1122 = vadd.f32 %v478, %v1121
      %v1123 = vpop.f32.mrb[0].mxu0
      %1124 = vmatprep.mubr.bf16.mxu0 0
      %1125 = vmatmul.mubr.bf16.gmra.mrb[0].mxu0 %v644
      %v1126 = vpop.f32.mrb[0].mxu0
      %v1127 = vadd.f32 %v478, %v1126
      %v1128 = vpop.f32.mrb[0].mxu0
      %v1129 = vpop.f32.mrb[0].mxu0
      %v1130 = vadd.f32 %v478, %v1129
      %v1131 = vpop.f32.mrb[0].mxu0
      %1132 = vmatprep.mubr.bf16.mxu0 0
      %1133 = vmatmul.mubr.bf16.gmra.mrb[0].mxu0 %v647
      %v1134 = vpop.f32.mrb[0].mxu0
      %v1135 = vadd.f32 %v478, %v1134
      %v1136 = vpop.f32.mrb[0].mxu0
      %v1137 = vpop.f32.mrb[0].mxu0
      %v1138 = vadd.f32 %v478, %v1137
      %v1139 = vpop.f32.mrb[0].mxu0
      %1140 = vmatprep.mubr.bf16.mxu0 0
      %1141 = vmatmul.mubr.bf16.gmra.mrb[0].mxu0 %v650
      %v1142 = vpop.f32.mrb[0].mxu0
      %v1143 = vadd.f32 %v478, %v1142
      %v1144 = vpop.f32.mrb[0].mxu0
      %v1145 = vpop.f32.mrb[0].mxu0
      %v1146 = vadd.f32 %v478, %v1145
      %v1147 = vpop.f32.mrb[0].mxu0
      %1148 = vmatprep.mubr.bf16.mxu0 0
      %1149 = vmatmul.mubr.bf16.gmra.mrb[0].mxu0 %v653
      %v1150 = vpop.f32.mrb[0].mxu0
      %v1151 = vadd.f32 %v478, %v1150
      %v1152 = vpop.f32.mrb[0].mxu0
      %v1153 = vpop.f32.mrb[0].mxu0
      %v1154 = vadd.f32 %v478, %v1153
      %v1155 = vpop.f32.mrb[0].mxu0
      %1156 = vmatprep.mubr.bf16.mxu0 0
      %1157 = vmatmul.mubr.bf16.gmra.mrb[0].mxu0 %v656
      %v1158 = vpop.f32.mrb[0].mxu0
      %v1159 = vadd.f32 %v478, %v1158
      %v1160 = vpop.f32.mrb[0].mxu0
      %v1161 = vpop.f32.mrb[0].mxu0
      %v1162 = vadd.f32 %v478, %v1161
      %v1163 = vpop.f32.mrb[0].mxu0
      %1164 = vmatprep.mubr.bf16.mxu0 0
      %1165 = vmatmul.mubr.bf16.gmra.mrb[0].mxu0 %v659
      %v1166 = vpop.f32.mrb[0].mxu0
      %v1167 = vadd.f32 %v478, %v1166
      %v1168 = vpop.f32.mrb[0].mxu0
      %v1169 = vpop.f32.mrb[0].mxu0
      %v1170 = vadd.f32 %v478, %v1169
      %v1171 = vpop.f32.mrb[0].mxu0
      %1172 = vmatprep.mubr.bf16.mxu0 0
      %1173 = vmatmul.mubr.bf16.gmra.mrb[0].mxu0 %v662
      %v1174 = vpop.f32.mrb[0].mxu0
      %v1175 = vadd.f32 %v478, %v1174
      %v1176 = vpop.f32.mrb[0].mxu0
      %v1177 = vpop.f32.mrb[0].mxu0
      %v1178 = vadd.f32 %v478, %v1177
      %v1179 = vpop.f32.mrb[0].mxu0
      %1180 = vmatprep.mubr.bf16.mxu0 0
      %1181 = vmatmul.mubr.bf16.gmra.mrb[0].mxu0 %v665
      %v1182 = vpop.f32.mrb[0].mxu0
      %v1183 = vadd.f32 %v478, %v1182
      %v1184 = vpop.f32.mrb[0].mxu0
      %v1185 = vpop.f32.mrb[0].mxu0
      %v1186 = vadd.f32 %v478, %v1185
      %v1187 = vpop.f32.mrb[0].mxu0
      %1188 = vmatprep.mubr.bf16.mxu0 0
      %1189 = vmatmul.mubr.bf16.gmra.mrb[0].mxu0 %v668
      %v1190 = vpop.f32.mrb[0].mxu0
      %v1191 = vadd.f32 %v478, %v1190
      %v1192 = vpop.f32.mrb[0].mxu0
      %v1193 = vpop.f32.mrb[0].mxu0
      %v1194 = vadd.f32 %v478, %v1193
      %v1195 = vpop.f32.mrb[0].mxu0
      %1196 = vmatprep.mubr.bf16.mxu0 0
      %1197 = vmatmul.mubr.bf16.gmra.mrb[0].mxu0 %v671
      %v1198 = vpop.f32.mrb[0].mxu0
      %v1199 = vadd.f32 %v478, %v1198
      %v1200 = vpop.f32.mrb[0].mxu0
      %v1201 = vpop.f32.mrb[0].mxu0
      %v1202 = vadd.f32 %v478, %v1201
      %v1203 = vpop.f32.mrb[0].mxu0
      %1204 = vmatprep.mubr.bf16.mxu0 0
      %1205 = vmatmul.mubr.bf16.gmra.mrb[0].mxu0 %v674
      %v1206 = vpop.f32.mrb[0].mxu0
      %v1207 = vadd.f32 %v478, %v1206
      %v1208 = vpop.f32.mrb[0].mxu0
      %v1209 = vpop.f32.mrb[0].mxu0
      %v1210 = vpop.f32.mrb[0].mxu0
      %1211 = vdwg.mxu0
      %v1212 = vmax.f32 %v711, 0.0
      %v1213 = vmax.f32 %v714, 0.0
      %v1214 = vmax.f32 %v719, 0.0
      %v1215 = vmax.f32 %v722, 0.0
      %v1216 = vmax.f32 %v727, 0.0
      %v1217 = vmax.f32 %v730, 0.0
      %v1218 = vmax.f32 %v735, 0.0
      %v1219 = vmax.f32 %v738, 0.0
      %v1220 = vmax.f32 %v743, 0.0
      %v1221 = vmax.f32 %v746, 0.0
      %v1222 = vmax.f32 %v751, 0.0
      %v1223 = vmax.f32 %v754, 0.0
      %v1224 = vmax.f32 %v759, 0.0
      %v1225 = vmax.f32 %v762, 0.0
      %v1226 = vmax.f32 %v767, 0.0
      %v1227 = vmax.f32 %v770, 0.0
      %v1228 = vmax.f32 %v775, 0.0
      %v1229 = vmax.f32 %v778, 0.0
      %v1230 = vmax.f32 %v783, 0.0
      %v1231 = vmax.f32 %v786, 0.0
      %v1232 = vmax.f32 %v791, 0.0
      %v1233 = vmax.f32 %v794, 0.0
      %v1234 = vmax.f32 %v799, 0.0
      %v1235 = vmax.f32 %v802, 0.0
      %v1236 = vmax.f32 %v807, 0.0
      %v1237 = vmax.f32 %v810, 0.0
      %v1238 = vmax.f32 %v815, 0.0
      %v1239 = vmax.f32 %v818, 0.0
      %v1240 = vmax.f32 %v823, 0.0
      %v1241 = vmax.f32 %v826, 0.0
      %v1242 = vmax.f32 %v831, 0.0
      %v1243 = vmax.f32 %v834, 0.0
      %v1244 = vmax.f32 %v839, 0.0
      %v1245 = vmax.f32 %v842, 0.0
      %v1246 = vmax.f32 %v847, 0.0
      %v1247 = vmax.f32 %v850, 0.0
      %v1248 = vmax.f32 %v855, 0.0
      %v1249 = vmax.f32 %v858, 0.0
      %v1250 = vmax.f32 %v863, 0.0
      %v1251 = vmax.f32 %v866, 0.0
      %v1252 = vmax.f32 %v871, 0.0
      %v1253 = vmax.f32 %v874, 0.0
      %v1254 = vmax.f32 %v879, 0.0
      %v1255 = vmax.f32 %v882, 0.0
      %v1256 = vmax.f32 %v887, 0.0
      %v1257 = vmax.f32 %v890, 0.0
      %v1258 = vmax.f32 %v895, 0.0
      %v1259 = vmax.f32 %v898, 0.0
      %v1260 = vmax.f32 %v903, 0.0
      %v1261 = vmax.f32 %v906, 0.0
      %v1262 = vmax.f32 %v911, 0.0
      %v1263 = vmax.f32 %v914, 0.0
      %v1264 = vmax.f32 %v919, 0.0
      %v1265 = vmax.f32 %v922, 0.0
      %v1266 = vmax.f32 %v927, 0.0
      %v1267 = vmax.f32 %v930, 0.0
      %v1268 = vmax.f32 %v935, 0.0
      %v1269 = vmax.f32 %v938, 0.0
      %v1270 = vmax.f32 %v943, 0.0
      %v1271 = vmax.f32 %v946, 0.0
      %v1272 = vmax.f32 %v951, 0.0
      %v1273 = vmax.f32 %v954, 0.0
      %v1274 = vmax.f32 %v959, 0.0
      %v1275 = vmax.f32 %v962, 0.0
      %v1276 = vmax.f32 %v967, 0.0
      %v1277 = vmax.f32 %v970, 0.0
      %v1278 = vmax.f32 %v975, 0.0
      %v1279 = vmax.f32 %v978, 0.0
      %v1280 = vmax.f32 %v983, 0.0
      %v1281 = vmax.f32 %v986, 0.0
      %v1282 = vmax.f32 %v991, 0.0
      %v1283 = vmax.f32 %v994, 0.0
      %v1284 = vmax.f32 %v999, 0.0
      %v1285 = vmax.f32 %v1002, 0.0
      %v1286 = vmax.f32 %v1007, 0.0
      %v1287 = vmax.f32 %v1010, 0.0
      %v1288 = vmax.f32 %v1015, 0.0
      %v1289 = vmax.f32 %v1018, 0.0
      %v1290 = vmax.f32 %v1023, 0.0
      %v1291 = vmax.f32 %v1026, 0.0
      %v1292 = vmax.f32 %v1031, 0.0
      %v1293 = vmax.f32 %v1034, 0.0
      %v1294 = vmax.f32 %v1039, 0.0
      %v1295 = vmax.f32 %v1042, 0.0
      %v1296 = vmax.f32 %v1047, 0.0
      %v1297 = vmax.f32 %v1050, 0.0
      %v1298 = vmax.f32 %v1055, 0.0
      %v1299 = vmax.f32 %v1058, 0.0
      %v1300 = vmax.f32 %v1063, 0.0
      %v1301 = vmax.f32 %v1066, 0.0
      %v1302 = vmax.f32 %v1071, 0.0
      %v1303 = vmax.f32 %v1074, 0.0
      %v1304 = vmax.f32 %v1079, 0.0
      %v1305 = vmax.f32 %v1082, 0.0
      %v1306 = vmax.f32 %v1087, 0.0
      %v1307 = vmax.f32 %v1090, 0.0
      %v1308 = vmax.f32 %v1095, 0.0
      %v1309 = vmax.f32 %v1098, 0.0
      %v1310 = vmax.f32 %v1103, 0.0
      %v1311 = vmax.f32 %v1106, 0.0
      %v1312 = vmax.f32 %v1111, 0.0
      %v1313 = vmax.f32 %v1114, 0.0
      %v1314 = vmax.f32 %v1119, 0.0
      %v1315 = vmax.f32 %v1122, 0.0
      %v1316 = vmax.f32 %v1127, 0.0
      %v1317 = vmax.f32 %v1130, 0.0
      %v1318 = vmax.f32 %v1135, 0.0
      %v1319 = vmax.f32 %v1138, 0.0
      %v1320 = vmax.f32 %v1143, 0.0
      %v1321 = vmax.f32 %v1146, 0.0
      %v1322 = vmax.f32 %v1151, 0.0
      %v1323 = vmax.f32 %v1154, 0.0
      %v1324 = vmax.f32 %v1159, 0.0
      %v1325 = vmax.f32 %v1162, 0.0
      %v1326 = vmax.f32 %v1167, 0.0
      %v1327 = vmax.f32 %v1170, 0.0
      %v1328 = vmax.f32 %v1175, 0.0
      %v1329 = vmax.f32 %v1178, 0.0
      %v1330 = vmax.f32 %v1183, 0.0
      %v1331 = vmax.f32 %v1186, 0.0
      %v1332 = vmax.f32 %v1191, 0.0
      %v1333 = vmax.f32 %v1194, 0.0
      %v1334 = vmax.f32 %v1199, 0.0
      %v1335 = vmax.f32 %v1202, 0.0
      %v1336 = vmax.f32 %v1207, 0.0
      %v1337 = vpack.c.bf16 %v1213, %v1212
      %v1338 = vpack.c.bf16 %v1215, %v1214
      %v1339 = vpack.c.bf16 %v1217, %v1216
      %v1340 = vpack.c.bf16 %v1219, %v1218
      %v1341 = vpack.c.bf16 %v1221, %v1220
      %v1342 = vpack.c.bf16 %v1223, %v1222
      %v1343 = vpack.c.bf16 %v1225, %v1224
      %v1344 = vpack.c.bf16 %v1227, %v1226
      %v1345 = vpack.c.bf16 %v1229, %v1228
      %v1346 = vpack.c.bf16 %v1231, %v1230
      %v1347 = vpack.c.bf16 %v1233, %v1232
      %v1348 = vpack.c.bf16 %v1235, %v1234
      %v1349 = vpack.c.bf16 %v1237, %v1236
      %v1350 = vpack.c.bf16 %v1239, %v1238
      %v1351 = vpack.c.bf16 %v1241, %v1240
      %v1352 = vpack.c.bf16 %v1243, %v1242
      %v1353 = vpack.c.bf16 %v1245, %v1244
      %v1354 = vpack.c.bf16 %v1247, %v1246
      %v1355 = vpack.c.bf16 %v1249, %v1248
      %v1356 = vpack.c.bf16 %v1251, %v1250
      %v1357 = vpack.c.bf16 %v1253, %v1252
      %v1358 = vpack.c.bf16 %v1255, %v1254
      %v1359 = vpack.c.bf16 %v1257, %v1256
      %v1360 = vpack.c.bf16 %v1259, %v1258
      %v1361 = vpack.c.bf16 %v1261, %v1260
      %v1362 = vpack.c.bf16 %v1263, %v1262
      %v1363 = vpack.c.bf16 %v1265, %v1264
      %v1364 = vpack.c.bf16 %v1267, %v1266
      %v1365 = vpack.c.bf16 %v1269, %v1268
      %v1366 = vpack.c.bf16 %v1271, %v1270
      %v1367 = vpack.c.bf16 %v1273, %v1272
      %v1368 = vpack.c.bf16 %v1275, %v1274
      %v1369 = vpack.c.bf16 %v1277, %v1276
      %v1370 = vpack.c.bf16 %v1279, %v1278
      %v1371 = vpack.c.bf16 %v1281, %v1280
      %v1372 = vpack.c.bf16 %v1283, %v1282
      %v1373 = vpack.c.bf16 %v1285, %v1284
      %v1374 = vpack.c.bf16 %v1287, %v1286
      %v1375 = vpack.c.bf16 %v1289, %v1288
      %v1376 = vpack.c.bf16 %v1291, %v1290
      %v1377 = vpack.c.bf16 %v1293, %v1292
      %v1378 = vpack.c.bf16 %v1295, %v1294
      %v1379 = vpack.c.bf16 %v1297, %v1296
      %v1380 = vpack.c.bf16 %v1299, %v1298
      %v1381 = vpack.c.bf16 %v1301, %v1300
      %v1382 = vpack.c.bf16 %v1303, %v1302
      %v1383 = vpack.c.bf16 %v1305, %v1304
      %v1384 = vpack.c.bf16 %v1307, %v1306
      %v1385 = vpack.c.bf16 %v1309, %v1308
      %v1386 = vpack.c.bf16 %v1311, %v1310
      %v1387 = vpack.c.bf16 %v1313, %v1312
      %v1388 = vpack.c.bf16 %v1315, %v1314
      %v1389 = vpack.c.bf16 %v1317, %v1316
      %v1390 = vpack.c.bf16 %v1319, %v1318
      %v1391 = vpack.c.bf16 %v1321, %v1320
      %v1392 = vpack.c.bf16 %v1323, %v1322
      %v1393 = vpack.c.bf16 %v1325, %v1324
      %v1394 = vpack.c.bf16 %v1327, %v1326
      %v1395 = vpack.c.bf16 %v1329, %v1328
      %v1396 = vpack.c.bf16 %v1331, %v1330
      %v1397 = vpack.c.bf16 %v1333, %v1332
      %v1398 = vpack.c.bf16 %v1335, %v1334
      %v1399 = vpack.c.bf16 %v1336, %v1336
      %v1400 = vld [vmem:[%s3] sm:$0xf]
      %v1401 = vld [vmem:[%s3 + $0x4] sm:$0xf]
      %v1402 = vld [vmem:[%s3 + $0x8] sm:$0xf]
      %v1403 = vld [vmem:[%s3 + $0xc] sm:$0xf]
      %v1404 = vld [vmem:[%s3 + $0x10] sm:$0xf]
      %v1405 = vld [vmem:[%s3 + $0x14] sm:$0xf]
      %v1406 = vld [vmem:[%s3 + $0x18] sm:$0xf]
      %v1407 = vld [vmem:[%s3 + $0x1c] sm:$0xf]
      %v1408 = vld [vmem:[%s3 + $0x20] sm:$0xf]
      %v1409 = vld [vmem:[%s3 + $0x24] sm:$0xf]
      %v1410 = vld [vmem:[%s3 + $0x28] sm:$0xf]
      %v1411 = vld [vmem:[%s3 + $0x2c] sm:$0xf]
      %v1412 = vld [vmem:[%s3 + $0x30] sm:$0xf]
      %v1413 = vld [vmem:[%s3 + $0x34] sm:$0xf]
      %v1414 = vld [vmem:[%s3 + $0x38] sm:$0xf]
      %v1415 = vld [vmem:[%s3 + $0x3c] sm:$0xf]
      %v1416 = vld [vmem:[%s4] sm:$0x1]
      %v1418 = vlaneseq
      %v1419 = vshrl.u32 %v1418, 7
      %v1420 = vsub.s32 0, %v1419
      %v1421 = vrot.slane %v1416, %v1420
      %v1439 = vunpack.c.l.b16 %v1400
      %v1440 = vunpack.c.l.b16 %v1401
      %v1441 = vunpack.c.l.b16 %v1402
      %v1442 = vunpack.c.l.b16 %v1403
      %v1443 = vunpack.c.l.b16 %v1404
      %v1444 = vunpack.c.l.b16 %v1405
      %v1445 = vunpack.c.l.b16 %v1406
      %v1446 = vunpack.c.l.b16 %v1407
      %v1447 = vunpack.c.l.b16 %v1408
      %v1448 = vunpack.c.l.b16 %v1409
      %v1449 = vunpack.c.l.b16 %v1410
      %v1450 = vunpack.c.l.b16 %v1411
      %v1451 = vunpack.c.l.b16 %v1412
      %v1452 = vunpack.c.l.b16 %v1413
      %v1453 = vunpack.c.l.b16 %v1414
      %v1454 = vunpack.c.l.b16 %v1415
      %v1455 = vpack.c.b16 %v1440, %v1439
      %v1456 = vpack.c.b16 %v1442, %v1441
      %v1457 = vpack.c.b16 %v1444, %v1443
      %v1458 = vpack.c.b16 %v1446, %v1445
      %v1459 = vpack.c.b16 %v1448, %v1447
      %v1460 = vpack.c.b16 %v1450, %v1449
      %v1461 = vpack.c.b16 %v1452, %v1451
      %v1462 = vpack.c.b16 %v1454, %v1453
      %1471 = vmatprep.subr.bf16.mxu0 0
      %1472 = vmatpush1.bf16.msra.mxu0 %v1455
      %1473 = vmatprep.subr.bf16.mxu0 0
      %1474 = vmatpush1.bf16.msra.mxu0 %v1456
      %1475 = vmatprep.subr.bf16.mxu0 0
      %1476 = vmatpush1.bf16.msra.mxu0 %v1457
      %1477 = vmatprep.subr.bf16.mxu0 0
      %1478 = vmatpush1.bf16.msra.mxu0 %v1458
      %1479 = vmatprep.subr.bf16.mxu0 0
      %1480 = vmatpush1.bf16.msra.mxu0 %v1459
      %1481 = vmatprep.subr.bf16.mxu0 0
      %1482 = vmatpush1.bf16.msra.mxu0 %v1460
      %1483 = vmatprep.subr.bf16.mxu0 0
      %1484 = vmatpush1.bf16.msra.mxu0 %v1461
      %1485 = vmatprep.subr.bf16.mxu0 0
      %1486 = vmatpush1.bf16.msra.mxu0 %v1462
      %1487 = vmatprep.subr.bf16.mxu0 0
      %1488 = vmatpush1.bf16.msra.mxu0 0
      %1489 = vmatprep.subr.bf16.mxu0 0
      %1490 = vmatpush1.bf16.msra.mxu0 0
      %1491 = vmatprep.subr.bf16.mxu0 0
      %1492 = vmatpush1.bf16.msra.mxu0 0
      %1493 = vmatprep.subr.bf16.mxu0 0
      %1494 = vmatpush1.bf16.msra.mxu0 0
      %1495 = vmatprep.subr.bf16.mxu0 0
      %1496 = vmatpush1.bf16.msra.mxu0 0
      %1497 = vmatprep.subr.bf16.mxu0 0
      %1498 = vmatpush1.bf16.msra.mxu0 0
      %1499 = vmatprep.subr.bf16.mxu0 0
      %1500 = vmatpush1.bf16.msra.mxu0 0
      %1501 = vmatprep.subr.bf16.mxu0 0
      %1502 = vmatpush1.bf16.msra.mxu0 0
      %1503 = vmatprep.mubr.bf16.mxu0 0
      %1504 = vmatmul.mubr.bf16.gmra.mrb[0].mxu0 %v1337
      %v1505 = vpop.f32.mrb[0].mxu0
      %v1506 = vadd.f32 %v1421, %v1505
      %v1507 = vpop.f32.mrb[0].mxu0
      %v1508 = vpop.f32.mrb[0].mxu0
      %v1509 = vadd.f32 %v1421, %v1508
      %v1510 = vpop.f32.mrb[0].mxu0
      %1511 = vmatprep.mubr.bf16.mxu0 0
      %1512 = vmatmul.mubr.bf16.gmra.mrb[0].mxu0 %v1338
      %v1513 = vpop.f32.mrb[0].mxu0
      %v1514 = vadd.f32 %v1421, %v1513
      %v1515 = vpop.f32.mrb[0].mxu0
      %v1516 = vpop.f32.mrb[0].mxu0
      %v1517 = vadd.f32 %v1421, %v1516
      %v1518 = vpop.f32.mrb[0].mxu0
      %1519 = vmatprep.mubr.bf16.mxu0 0
      %1520 = vmatmul.mubr.bf16.gmra.mrb[0].mxu0 %v1339
      %v1521 = vpop.f32.mrb[0].mxu0
      %v1522 = vadd.f32 %v1421, %v1521
      %v1523 = vpop.f32.mrb[0].mxu0
      %v1524 = vpop.f32.mrb[0].mxu0
      %v1525 = vadd.f32 %v1421, %v1524
      %v1526 = vpop.f32.mrb[0].mxu0
      %1527 = vmatprep.mubr.bf16.mxu0 0
      %1528 = vmatmul.mubr.bf16.gmra.mrb[0].mxu0 %v1340
      %v1529 = vpop.f32.mrb[0].mxu0
      %v1530 = vadd.f32 %v1421, %v1529
      %v1531 = vpop.f32.mrb[0].mxu0
      %v1532 = vpop.f32.mrb[0].mxu0
      %v1533 = vadd.f32 %v1421, %v1532
      %v1534 = vpop.f32.mrb[0].mxu0
      %1535 = vmatprep.mubr.bf16.mxu0 0
      %1536 = vmatmul.mubr.bf16.gmra.mrb[0].mxu0 %v1341
      %v1537 = vpop.f32.mrb[0].mxu0
      %v1538 = vadd.f32 %v1421, %v1537
      %v1539 = vpop.f32.mrb[0].mxu0
      %v1540 = vpop.f32.mrb[0].mxu0
      %v1541 = vadd.f32 %v1421, %v1540
      %v1542 = vpop.f32.mrb[0].mxu0
      %1543 = vmatprep.mubr.bf16.mxu0 0
      %1544 = vmatmul.mubr.bf16.gmra.mrb[0].mxu0 %v1342
      %v1545 = vpop.f32.mrb[0].mxu0
      %v1546 = vadd.f32 %v1421, %v1545
      %v1547 = vpop.f32.mrb[0].mxu0
      %v1548 = vpop.f32.mrb[0].mxu0
      %v1549 = vadd.f32 %v1421, %v1548
      %v1550 = vpop.f32.mrb[0].mxu0
      %1551 = vmatprep.mubr.bf16.mxu0 0
      %1552 = vmatmul.mubr.bf16.gmra.mrb[0].mxu0 %v1343
      %v1553 = vpop.f32.mrb[0].mxu0
      %v1554 = vadd.f32 %v1421, %v1553
      %v1555 = vpop.f32.mrb[0].mxu0
      %v1556 = vpop.f32.mrb[0].mxu0
      %v1557 = vadd.f32 %v1421, %v1556
      %v1558 = vpop.f32.mrb[0].mxu0
      %1559 = vmatprep.mubr.bf16.mxu0 0
      %1560 = vmatmul.mubr.bf16.gmra.mrb[0].mxu0 %v1344
      %v1561 = vpop.f32.mrb[0].mxu0
      %v1562 = vadd.f32 %v1421, %v1561
      %v1563 = vpop.f32.mrb[0].mxu0
      %v1564 = vpop.f32.mrb[0].mxu0
      %v1565 = vadd.f32 %v1421, %v1564
      %v1566 = vpop.f32.mrb[0].mxu0
      %1567 = vmatprep.mubr.bf16.mxu0 0
      %1568 = vmatmul.mubr.bf16.gmra.mrb[0].mxu0 %v1345
      %v1569 = vpop.f32.mrb[0].mxu0
      %v1570 = vadd.f32 %v1421, %v1569
      %v1571 = vpop.f32.mrb[0].mxu0
      %v1572 = vpop.f32.mrb[0].mxu0
      %v1573 = vadd.f32 %v1421, %v1572
      %v1574 = vpop.f32.mrb[0].mxu0
      %1575 = vmatprep.mubr.bf16.mxu0 0
      %1576 = vmatmul.mubr.bf16.gmra.mrb[0].mxu0 %v1346
      %v1577 = vpop.f32.mrb[0].mxu0
      %v1578 = vadd.f32 %v1421, %v1577
      %v1579 = vpop.f32.mrb[0].mxu0
      %v1580 = vpop.f32.mrb[0].mxu0
      %v1581 = vadd.f32 %v1421, %v1580
      %v1582 = vpop.f32.mrb[0].mxu0
      %1583 = vmatprep.mubr.bf16.mxu0 0
      %1584 = vmatmul.mubr.bf16.gmra.mrb[0].mxu0 %v1347
      %v1585 = vpop.f32.mrb[0].mxu0
      %v1586 = vadd.f32 %v1421, %v1585
      %v1587 = vpop.f32.mrb[0].mxu0
      %v1588 = vpop.f32.mrb[0].mxu0
      %v1589 = vadd.f32 %v1421, %v1588
      %v1590 = vpop.f32.mrb[0].mxu0
      %1591 = vmatprep.mubr.bf16.mxu0 0
      %1592 = vmatmul.mubr.bf16.gmra.mrb[0].mxu0 %v1348
      %v1593 = vpop.f32.mrb[0].mxu0
      %v1594 = vadd.f32 %v1421, %v1593
      %v1595 = vpop.f32.mrb[0].mxu0
      %v1596 = vpop.f32.mrb[0].mxu0
      %v1597 = vadd.f32 %v1421, %v1596
      %v1598 = vpop.f32.mrb[0].mxu0
      %1599 = vmatprep.mubr.bf16.mxu0 0
      %1600 = vmatmul.mubr.bf16.gmra.mrb[0].mxu0 %v1349
      %v1601 = vpop.f32.mrb[0].mxu0
      %v1602 = vadd.f32 %v1421, %v1601
      %v1603 = vpop.f32.mrb[0].mxu0
      %v1604 = vpop.f32.mrb[0].mxu0
      %v1605 = vadd.f32 %v1421, %v1604
      %v1606 = vpop.f32.mrb[0].mxu0
      %1607 = vmatprep.mubr.bf16.mxu0 0
      %1608 = vmatmul.mubr.bf16.gmra.mrb[0].mxu0 %v1350
      %v1609 = vpop.f32.mrb[0].mxu0
      %v1610 = vadd.f32 %v1421, %v1609
      %v1611 = vpop.f32.mrb[0].mxu0
      %v1612 = vpop.f32.mrb[0].mxu0
      %v1613 = vadd.f32 %v1421, %v1612
      %v1614 = vpop.f32.mrb[0].mxu0
      %1615 = vmatprep.mubr.bf16.mxu0 0
      %1616 = vmatmul.mubr.bf16.gmra.mrb[0].mxu0 %v1351
      %v1617 = vpop.f32.mrb[0].mxu0
      %v1618 = vadd.f32 %v1421, %v1617
      %v1619 = vpop.f32.mrb[0].mxu0
      %v1620 = vpop.f32.mrb[0].mxu0
      %v1621 = vadd.f32 %v1421, %v1620
      %v1622 = vpop.f32.mrb[0].mxu0
      %1623 = vmatprep.mubr.bf16.mxu0 0
      %1624 = vmatmul.mubr.bf16.gmra.mrb[0].mxu0 %v1352
      %v1625 = vpop.f32.mrb[0].mxu0
      %v1626 = vadd.f32 %v1421, %v1625
      %v1627 = vpop.f32.mrb[0].mxu0
      %v1628 = vpop.f32.mrb[0].mxu0
      %v1629 = vadd.f32 %v1421, %v1628
      %v1630 = vpop.f32.mrb[0].mxu0
      %1631 = vmatprep.mubr.bf16.mxu0 0
      %1632 = vmatmul.mubr.bf16.gmra.mrb[0].mxu0 %v1353
      %v1633 = vpop.f32.mrb[0].mxu0
      %v1634 = vadd.f32 %v1421, %v1633
      %v1635 = vpop.f32.mrb[0].mxu0
      %v1636 = vpop.f32.mrb[0].mxu0
      %v1637 = vadd.f32 %v1421, %v1636
      %v1638 = vpop.f32.mrb[0].mxu0
      %1639 = vmatprep.mubr.bf16.mxu0 0
      %1640 = vmatmul.mubr.bf16.gmra.mrb[0].mxu0 %v1354
      %v1641 = vpop.f32.mrb[0].mxu0
      %v1642 = vadd.f32 %v1421, %v1641
      %v1643 = vpop.f32.mrb[0].mxu0
      %v1644 = vpop.f32.mrb[0].mxu0
      %v1645 = vadd.f32 %v1421, %v1644
      %v1646 = vpop.f32.mrb[0].mxu0
      %1647 = vmatprep.mubr.bf16.mxu0 0
      %1648 = vmatmul.mubr.bf16.gmra.mrb[0].mxu0 %v1355
      %v1649 = vpop.f32.mrb[0].mxu0
      %v1650 = vadd.f32 %v1421, %v1649
      %v1651 = vpop.f32.mrb[0].mxu0
      %v1652 = vpop.f32.mrb[0].mxu0
      %v1653 = vadd.f32 %v1421, %v1652
      %v1654 = vpop.f32.mrb[0].mxu0
      %1655 = vmatprep.mubr.bf16.mxu0 0
      %1656 = vmatmul.mubr.bf16.gmra.mrb[0].mxu0 %v1356
      %v1657 = vpop.f32.mrb[0].mxu0
      %v1658 = vadd.f32 %v1421, %v1657
      %v1659 = vpop.f32.mrb[0].mxu0
      %v1660 = vpop.f32.mrb[0].mxu0
      %v1661 = vadd.f32 %v1421, %v1660
      %v1662 = vpop.f32.mrb[0].mxu0
      %1663 = vmatprep.mubr.bf16.mxu0 0
      %1664 = vmatmul.mubr.bf16.gmra.mrb[0].mxu0 %v1357
      %v1665 = vpop.f32.mrb[0].mxu0
      %v1666 = vadd.f32 %v1421, %v1665
      %v1667 = vpop.f32.mrb[0].mxu0
      %v1668 = vpop.f32.mrb[0].mxu0
      %v1669 = vadd.f32 %v1421, %v1668
      %v1670 = vpop.f32.mrb[0].mxu0
      %1671 = vmatprep.mubr.bf16.mxu0 0
      %1672 = vmatmul.mubr.bf16.gmra.mrb[0].mxu0 %v1358
      %v1673 = vpop.f32.mrb[0].mxu0
      %v1674 = vadd.f32 %v1421, %v1673
      %v1675 = vpop.f32.mrb[0].mxu0
      %v1676 = vpop.f32.mrb[0].mxu0
      %v1677 = vadd.f32 %v1421, %v1676
      %v1678 = vpop.f32.mrb[0].mxu0
      %1679 = vmatprep.mubr.bf16.mxu0 0
      %1680 = vmatmul.mubr.bf16.gmra.mrb[0].mxu0 %v1359
      %v1681 = vpop.f32.mrb[0].mxu0
      %v1682 = vadd.f32 %v1421, %v1681
      %v1683 = vpop.f32.mrb[0].mxu0
      %v1684 = vpop.f32.mrb[0].mxu0
      %v1685 = vadd.f32 %v1421, %v1684
      %v1686 = vpop.f32.mrb[0].mxu0
      %1687 = vmatprep.mubr.bf16.mxu0 0
      %1688 = vmatmul.mubr.bf16.gmra.mrb[0].mxu0 %v1360
      %v1689 = vpop.f32.mrb[0].mxu0
      %v1690 = vadd.f32 %v1421, %v1689
      %v1691 = vpop.f32.mrb[0].mxu0
      %v1692 = vpop.f32.mrb[0].mxu0
      %v1693 = vadd.f32 %v1421, %v1692
      %v1694 = vpop.f32.mrb[0].mxu0
      %1695 = vmatprep.mubr.bf16.mxu0 0
      %1696 = vmatmul.mubr.bf16.gmra.mrb[0].mxu0 %v1361
      %v1697 = vpop.f32.mrb[0].mxu0
      %v1698 = vadd.f32 %v1421, %v1697
      %v1699 = vpop.f32.mrb[0].mxu0
      %v1700 = vpop.f32.mrb[0].mxu0
      %v1701 = vadd.f32 %v1421, %v1700
      %v1702 = vpop.f32.mrb[0].mxu0
      %1703 = vmatprep.mubr.bf16.mxu0 0
      %1704 = vmatmul.mubr.bf16.gmra.mrb[0].mxu0 %v1362
      %v1705 = vpop.f32.mrb[0].mxu0
      %v1706 = vadd.f32 %v1421, %v1705
      %v1707 = vpop.f32.mrb[0].mxu0
      %v1708 = vpop.f32.mrb[0].mxu0
      %v1709 = vadd.f32 %v1421, %v1708
      %v1710 = vpop.f32.mrb[0].mxu0
      %1711 = vmatprep.mubr.bf16.mxu0 0
      %1712 = vmatmul.mubr.bf16.gmra.mrb[0].mxu0 %v1363
      %v1713 = vpop.f32.mrb[0].mxu0
      %v1714 = vadd.f32 %v1421, %v1713
      %v1715 = vpop.f32.mrb[0].mxu0
      %v1716 = vpop.f32.mrb[0].mxu0
      %v1717 = vadd.f32 %v1421, %v1716
      %v1718 = vpop.f32.mrb[0].mxu0
      %1719 = vmatprep.mubr.bf16.mxu0 0
      %1720 = vmatmul.mubr.bf16.gmra.mrb[0].mxu0 %v1364
      %v1721 = vpop.f32.mrb[0].mxu0
      %v1722 = vadd.f32 %v1421, %v1721
      %v1723 = vpop.f32.mrb[0].mxu0
      %v1724 = vpop.f32.mrb[0].mxu0
      %v1725 = vadd.f32 %v1421, %v1724
      %v1726 = vpop.f32.mrb[0].mxu0
      %1727 = vmatprep.mubr.bf16.mxu0 0
      %1728 = vmatmul.mubr.bf16.gmra.mrb[0].mxu0 %v1365
      %v1729 = vpop.f32.mrb[0].mxu0
      %v1730 = vadd.f32 %v1421, %v1729
      %v1731 = vpop.f32.mrb[0].mxu0
      %v1732 = vpop.f32.mrb[0].mxu0
      %v1733 = vadd.f32 %v1421, %v1732
      %v1734 = vpop.f32.mrb[0].mxu0
      %1735 = vmatprep.mubr.bf16.mxu0 0
      %1736 = vmatmul.mubr.bf16.gmra.mrb[0].mxu0 %v1366
      %v1737 = vpop.f32.mrb[0].mxu0
      %v1738 = vadd.f32 %v1421, %v1737
      %v1739 = vpop.f32.mrb[0].mxu0
      %v1740 = vpop.f32.mrb[0].mxu0
      %v1741 = vadd.f32 %v1421, %v1740
      %v1742 = vpop.f32.mrb[0].mxu0
      %1743 = vmatprep.mubr.bf16.mxu0 0
      %1744 = vmatmul.mubr.bf16.gmra.mrb[0].mxu0 %v1367
      %v1745 = vpop.f32.mrb[0].mxu0
      %v1746 = vadd.f32 %v1421, %v1745
      %v1747 = vpop.f32.mrb[0].mxu0
      %v1748 = vpop.f32.mrb[0].mxu0
      %v1749 = vadd.f32 %v1421, %v1748
      %v1750 = vpop.f32.mrb[0].mxu0
      %1751 = vmatprep.mubr.bf16.mxu0 0
      %1752 = vmatmul.mubr.bf16.gmra.mrb[0].mxu0 %v1368
      %v1753 = vpop.f32.mrb[0].mxu0
      %v1754 = vadd.f32 %v1421, %v1753
      %v1755 = vpop.f32.mrb[0].mxu0
      %v1756 = vpop.f32.mrb[0].mxu0
      %v1757 = vadd.f32 %v1421, %v1756
      %v1758 = vpop.f32.mrb[0].mxu0
      %1759 = vmatprep.mubr.bf16.mxu0 0
      %1760 = vmatmul.mubr.bf16.gmra.mrb[0].mxu0 %v1369
      %v1761 = vpop.f32.mrb[0].mxu0
      %v1762 = vadd.f32 %v1421, %v1761
      %v1763 = vpop.f32.mrb[0].mxu0
      %v1764 = vpop.f32.mrb[0].mxu0
      %v1765 = vadd.f32 %v1421, %v1764
      %v1766 = vpop.f32.mrb[0].mxu0
      %1767 = vmatprep.mubr.bf16.mxu0 0
      %1768 = vmatmul.mubr.bf16.gmra.mrb[0].mxu0 %v1370
      %v1769 = vpop.f32.mrb[0].mxu0
      %v1770 = vadd.f32 %v1421, %v1769
      %v1771 = vpop.f32.mrb[0].mxu0
      %v1772 = vpop.f32.mrb[0].mxu0
      %v1773 = vadd.f32 %v1421, %v1772
      %v1774 = vpop.f32.mrb[0].mxu0
      %1775 = vmatprep.mubr.bf16.mxu0 0
      %1776 = vmatmul.mubr.bf16.gmra.mrb[0].mxu0 %v1371
      %v1777 = vpop.f32.mrb[0].mxu0
      %v1778 = vadd.f32 %v1421, %v1777
      %v1779 = vpop.f32.mrb[0].mxu0
      %v1780 = vpop.f32.mrb[0].mxu0
      %v1781 = vadd.f32 %v1421, %v1780
      %v1782 = vpop.f32.mrb[0].mxu0
      %1783 = vmatprep.mubr.bf16.mxu0 0
      %1784 = vmatmul.mubr.bf16.gmra.mrb[0].mxu0 %v1372
      %v1785 = vpop.f32.mrb[0].mxu0
      %v1786 = vadd.f32 %v1421, %v1785
      %v1787 = vpop.f32.mrb[0].mxu0
      %v1788 = vpop.f32.mrb[0].mxu0
      %v1789 = vadd.f32 %v1421, %v1788
      %v1790 = vpop.f32.mrb[0].mxu0
      %1791 = vmatprep.mubr.bf16.mxu0 0
      %1792 = vmatmul.mubr.bf16.gmra.mrb[0].mxu0 %v1373
      %v1793 = vpop.f32.mrb[0].mxu0
      %v1794 = vadd.f32 %v1421, %v1793
      %v1795 = vpop.f32.mrb[0].mxu0
      %v1796 = vpop.f32.mrb[0].mxu0
      %v1797 = vadd.f32 %v1421, %v1796
      %v1798 = vpop.f32.mrb[0].mxu0
      %1799 = vmatprep.mubr.bf16.mxu0 0
      %1800 = vmatmul.mubr.bf16.gmra.mrb[0].mxu0 %v1374
      %v1801 = vpop.f32.mrb[0].mxu0
      %v1802 = vadd.f32 %v1421, %v1801
      %v1803 = vpop.f32.mrb[0].mxu0
      %v1804 = vpop.f32.mrb[0].mxu0
      %v1805 = vadd.f32 %v1421, %v1804
      %v1806 = vpop.f32.mrb[0].mxu0
      %1807 = vmatprep.mubr.bf16.mxu0 0
      %1808 = vmatmul.mubr.bf16.gmra.mrb[0].mxu0 %v1375
      %v1809 = vpop.f32.mrb[0].mxu0
      %v1810 = vadd.f32 %v1421, %v1809
      %v1811 = vpop.f32.mrb[0].mxu0
      %v1812 = vpop.f32.mrb[0].mxu0
      %v1813 = vadd.f32 %v1421, %v1812
      %v1814 = vpop.f32.mrb[0].mxu0
      %1815 = vmatprep.mubr.bf16.mxu0 0
      %1816 = vmatmul.mubr.bf16.gmra.mrb[0].mxu0 %v1376
      %v1817 = vpop.f32.mrb[0].mxu0
      %v1818 = vadd.f32 %v1421, %v1817
      %v1819 = vpop.f32.mrb[0].mxu0
      %v1820 = vpop.f32.mrb[0].mxu0
      %v1821 = vadd.f32 %v1421, %v1820
      %v1822 = vpop.f32.mrb[0].mxu0
      %1823 = vmatprep.mubr.bf16.mxu0 0
      %1824 = vmatmul.mubr.bf16.gmra.mrb[0].mxu0 %v1377
      %v1825 = vpop.f32.mrb[0].mxu0
      %v1826 = vadd.f32 %v1421, %v1825
      %v1827 = vpop.f32.mrb[0].mxu0
      %v1828 = vpop.f32.mrb[0].mxu0
      %v1829 = vadd.f32 %v1421, %v1828
      %v1830 = vpop.f32.mrb[0].mxu0
      %1831 = vmatprep.mubr.bf16.mxu0 0
      %1832 = vmatmul.mubr.bf16.gmra.mrb[0].mxu0 %v1378
      %v1833 = vpop.f32.mrb[0].mxu0
      %v1834 = vadd.f32 %v1421, %v1833
      %v1835 = vpop.f32.mrb[0].mxu0
      %v1836 = vpop.f32.mrb[0].mxu0
      %v1837 = vadd.f32 %v1421, %v1836
      %v1838 = vpop.f32.mrb[0].mxu0
      %1839 = vmatprep.mubr.bf16.mxu0 0
      %1840 = vmatmul.mubr.bf16.gmra.mrb[0].mxu0 %v1379
      %v1841 = vpop.f32.mrb[0].mxu0
      %v1842 = vadd.f32 %v1421, %v1841
      %v1843 = vpop.f32.mrb[0].mxu0
      %v1844 = vpop.f32.mrb[0].mxu0
      %v1845 = vadd.f32 %v1421, %v1844
      %v1846 = vpop.f32.mrb[0].mxu0
      %1847 = vmatprep.mubr.bf16.mxu0 0
      %1848 = vmatmul.mubr.bf16.gmra.mrb[0].mxu0 %v1380
      %v1849 = vpop.f32.mrb[0].mxu0
      %v1850 = vadd.f32 %v1421, %v1849
      %v1851 = vpop.f32.mrb[0].mxu0
      %v1852 = vpop.f32.mrb[0].mxu0
      %v1853 = vadd.f32 %v1421, %v1852
      %v1854 = vpop.f32.mrb[0].mxu0
      %1855 = vmatprep.mubr.bf16.mxu0 0
      %1856 = vmatmul.mubr.bf16.gmra.mrb[0].mxu0 %v1381
      %v1857 = vpop.f32.mrb[0].mxu0
      %v1858 = vadd.f32 %v1421, %v1857
      %v1859 = vpop.f32.mrb[0].mxu0
      %v1860 = vpop.f32.mrb[0].mxu0
      %v1861 = vadd.f32 %v1421, %v1860
      %v1862 = vpop.f32.mrb[0].mxu0
      %1863 = vmatprep.mubr.bf16.mxu0 0
      %1864 = vmatmul.mubr.bf16.gmra.mrb[0].mxu0 %v1382
      %v1865 = vpop.f32.mrb[0].mxu0
      %v1866 = vadd.f32 %v1421, %v1865
      %v1867 = vpop.f32.mrb[0].mxu0
      %v1868 = vpop.f32.mrb[0].mxu0
      %v1869 = vadd.f32 %v1421, %v1868
      %v1870 = vpop.f32.mrb[0].mxu0
      %1871 = vmatprep.mubr.bf16.mxu0 0
      %1872 = vmatmul.mubr.bf16.gmra.mrb[0].mxu0 %v1383
      %v1873 = vpop.f32.mrb[0].mxu0
      %v1874 = vadd.f32 %v1421, %v1873
      %v1875 = vpop.f32.mrb[0].mxu0
      %v1876 = vpop.f32.mrb[0].mxu0
      %v1877 = vadd.f32 %v1421, %v1876
      %v1878 = vpop.f32.mrb[0].mxu0
      %1879 = vmatprep.mubr.bf16.mxu0 0
      %1880 = vmatmul.mubr.bf16.gmra.mrb[0].mxu0 %v1384
      %v1881 = vpop.f32.mrb[0].mxu0
      %v1882 = vadd.f32 %v1421, %v1881
      %v1883 = vpop.f32.mrb[0].mxu0
      %v1884 = vpop.f32.mrb[0].mxu0
      %v1885 = vadd.f32 %v1421, %v1884
      %v1886 = vpop.f32.mrb[0].mxu0
      %1887 = vmatprep.mubr.bf16.mxu0 0
      %1888 = vmatmul.mubr.bf16.gmra.mrb[0].mxu0 %v1385
      %v1889 = vpop.f32.mrb[0].mxu0
      %v1890 = vadd.f32 %v1421, %v1889
      %v1891 = vpop.f32.mrb[0].mxu0
      %v1892 = vpop.f32.mrb[0].mxu0
      %v1893 = vadd.f32 %v1421, %v1892
      %v1894 = vpop.f32.mrb[0].mxu0
      %1895 = vmatprep.mubr.bf16.mxu0 0
      %1896 = vmatmul.mubr.bf16.gmra.mrb[0].mxu0 %v1386
      %v1897 = vpop.f32.mrb[0].mxu0
      %v1898 = vadd.f32 %v1421, %v1897
      %v1899 = vpop.f32.mrb[0].mxu0
      %v1900 = vpop.f32.mrb[0].mxu0
      %v1901 = vadd.f32 %v1421, %v1900
      %v1902 = vpop.f32.mrb[0].mxu0
      %1903 = vmatprep.mubr.bf16.mxu0 0
      %1904 = vmatmul.mubr.bf16.gmra.mrb[0].mxu0 %v1387
      %v1905 = vpop.f32.mrb[0].mxu0
      %v1906 = vadd.f32 %v1421, %v1905
      %v1907 = vpop.f32.mrb[0].mxu0
      %v1908 = vpop.f32.mrb[0].mxu0
      %v1909 = vadd.f32 %v1421, %v1908
      %v1910 = vpop.f32.mrb[0].mxu0
      %1911 = vmatprep.mubr.bf16.mxu0 0
      %1912 = vmatmul.mubr.bf16.gmra.mrb[0].mxu0 %v1388
      %v1913 = vpop.f32.mrb[0].mxu0
      %v1914 = vadd.f32 %v1421, %v1913
      %v1915 = vpop.f32.mrb[0].mxu0
      %v1916 = vpop.f32.mrb[0].mxu0
      %v1917 = vadd.f32 %v1421, %v1916
      %v1918 = vpop.f32.mrb[0].mxu0
      %1919 = vmatprep.mubr.bf16.mxu0 0
      %1920 = vmatmul.mubr.bf16.gmra.mrb[0].mxu0 %v1389
      %v1921 = vpop.f32.mrb[0].mxu0
      %v1922 = vadd.f32 %v1421, %v1921
      %v1923 = vpop.f32.mrb[0].mxu0
      %v1924 = vpop.f32.mrb[0].mxu0
      %v1925 = vadd.f32 %v1421, %v1924
      %v1926 = vpop.f32.mrb[0].mxu0
      %1927 = vmatprep.mubr.bf16.mxu0 0
      %1928 = vmatmul.mubr.bf16.gmra.mrb[0].mxu0 %v1390
      %v1929 = vpop.f32.mrb[0].mxu0
      %v1930 = vadd.f32 %v1421, %v1929
      %v1931 = vpop.f32.mrb[0].mxu0
      %v1932 = vpop.f32.mrb[0].mxu0
      %v1933 = vadd.f32 %v1421, %v1932
      %v1934 = vpop.f32.mrb[0].mxu0
      %1935 = vmatprep.mubr.bf16.mxu0 0
      %1936 = vmatmul.mubr.bf16.gmra.mrb[0].mxu0 %v1391
      %v1937 = vpop.f32.mrb[0].mxu0
      %v1938 = vadd.f32 %v1421, %v1937
      %v1939 = vpop.f32.mrb[0].mxu0
      %v1940 = vpop.f32.mrb[0].mxu0
      %v1941 = vadd.f32 %v1421, %v1940
      %v1942 = vpop.f32.mrb[0].mxu0
      %1943 = vmatprep.mubr.bf16.mxu0 0
      %1944 = vmatmul.mubr.bf16.gmra.mrb[0].mxu0 %v1392
      %v1945 = vpop.f32.mrb[0].mxu0
      %v1946 = vadd.f32 %v1421, %v1945
      %v1947 = vpop.f32.mrb[0].mxu0
      %v1948 = vpop.f32.mrb[0].mxu0
      %v1949 = vadd.f32 %v1421, %v1948
      %v1950 = vpop.f32.mrb[0].mxu0
      %1951 = vmatprep.mubr.bf16.mxu0 0
      %1952 = vmatmul.mubr.bf16.gmra.mrb[0].mxu0 %v1393
      %v1953 = vpop.f32.mrb[0].mxu0
      %v1954 = vadd.f32 %v1421, %v1953
      %v1955 = vpop.f32.mrb[0].mxu0
      %v1956 = vpop.f32.mrb[0].mxu0
      %v1957 = vadd.f32 %v1421, %v1956
      %v1958 = vpop.f32.mrb[0].mxu0
      %1959 = vmatprep.mubr.bf16.mxu0 0
      %1960 = vmatmul.mubr.bf16.gmra.mrb[0].mxu0 %v1394
      %v1961 = vpop.f32.mrb[0].mxu0
      %v1962 = vadd.f32 %v1421, %v1961
      %v1963 = vpop.f32.mrb[0].mxu0
      %v1964 = vpop.f32.mrb[0].mxu0
      %v1965 = vadd.f32 %v1421, %v1964
      %v1966 = vpop.f32.mrb[0].mxu0
      %1967 = vmatprep.mubr.bf16.mxu0 0
      %1968 = vmatmul.mubr.bf16.gmra.mrb[0].mxu0 %v1395
      %v1969 = vpop.f32.mrb[0].mxu0
      %v1970 = vadd.f32 %v1421, %v1969
      %v1971 = vpop.f32.mrb[0].mxu0
      %v1972 = vpop.f32.mrb[0].mxu0
      %v1973 = vadd.f32 %v1421, %v1972
      %v1974 = vpop.f32.mrb[0].mxu0
      %1975 = vmatprep.mubr.bf16.mxu0 0
      %1976 = vmatmul.mubr.bf16.gmra.mrb[0].mxu0 %v1396
      %v1977 = vpop.f32.mrb[0].mxu0
      %v1978 = vadd.f32 %v1421, %v1977
      %v1979 = vpop.f32.mrb[0].mxu0
      %v1980 = vpop.f32.mrb[0].mxu0
      %v1981 = vadd.f32 %v1421, %v1980
      %v1982 = vpop.f32.mrb[0].mxu0
      %1983 = vmatprep.mubr.bf16.mxu0 0
      %1984 = vmatmul.mubr.bf16.gmra.mrb[0].mxu0 %v1397
      %v1985 = vpop.f32.mrb[0].mxu0
      %v1986 = vadd.f32 %v1421, %v1985
      %v1987 = vpop.f32.mrb[0].mxu0
      %v1988 = vpop.f32.mrb[0].mxu0
      %v1989 = vadd.f32 %v1421, %v1988
      %v1990 = vpop.f32.mrb[0].mxu0
      %1991 = vmatprep.mubr.bf16.mxu0 0
      %1992 = vmatmul.mubr.bf16.gmra.mrb[0].mxu0 %v1398
      %v1993 = vpop.f32.mrb[0].mxu0
      %v1994 = vadd.f32 %v1421, %v1993
      %v1995 = vpop.f32.mrb[0].mxu0
      %v1996 = vpop.f32.mrb[0].mxu0
      %v1997 = vadd.f32 %v1421, %v1996
      %v1998 = vpop.f32.mrb[0].mxu0
      %1999 = vmatprep.mubr.bf16.mxu0 0
      %2000 = vmatmul.mubr.bf16.gmra.mrb[0].mxu0 %v1399
      %v2001 = vpop.f32.mrb[0].mxu0
      %v2002 = vadd.f32 %v1421, %v2001
      %v2003 = vpop.f32.mrb[0].mxu0
      %v2004 = vpop.f32.mrb[0].mxu0
      %v2005 = vpop.f32.mrb[0].mxu0
      %2006 = vdwg.mxu0
      %v2007 = vmax.f32 %v1506, 0.0
      %v2008 = vmax.f32 %v1509, 0.0
      %v2009 = vmax.f32 %v1514, 0.0
      %v2010 = vmax.f32 %v1517, 0.0
      %v2011 = vmax.f32 %v1522, 0.0
      %v2012 = vmax.f32 %v1525, 0.0
      %v2013 = vmax.f32 %v1530, 0.0
      %v2014 = vmax.f32 %v1533, 0.0
      %v2015 = vmax.f32 %v1538, 0.0
      %v2016 = vmax.f32 %v1541, 0.0
      %v2017 = vmax.f32 %v1546, 0.0
      %v2018 = vmax.f32 %v1549, 0.0
      %v2019 = vmax.f32 %v1554, 0.0
      %v2020 = vmax.f32 %v1557, 0.0
      %v2021 = vmax.f32 %v1562, 0.0
      %v2022 = vmax.f32 %v1565, 0.0
      %v2023 = vmax.f32 %v1570, 0.0
      %v2024 = vmax.f32 %v1573, 0.0
      %v2025 = vmax.f32 %v1578, 0.0
      %v2026 = vmax.f32 %v1581, 0.0
      %v2027 = vmax.f32 %v1586, 0.0
      %v2028 = vmax.f32 %v1589, 0.0
      %v2029 = vmax.f32 %v1594, 0.0
      %v2030 = vmax.f32 %v1597, 0.0
      %v2031 = vmax.f32 %v1602, 0.0
      %v2032 = vmax.f32 %v1605, 0.0
      %v2033 = vmax.f32 %v1610, 0.0
      %v2034 = vmax.f32 %v1613, 0.0
      %v2035 = vmax.f32 %v1618, 0.0
      %v2036 = vmax.f32 %v1621, 0.0
      %v2037 = vmax.f32 %v1626, 0.0
      %v2038 = vmax.f32 %v1629, 0.0
      %v2039 = vmax.f32 %v1634, 0.0
      %v2040 = vmax.f32 %v1637, 0.0
      %v2041 = vmax.f32 %v1642, 0.0
      %v2042 = vmax.f32 %v1645, 0.0
      %v2043 = vmax.f32 %v1650, 0.0
      %v2044 = vmax.f32 %v1653, 0.0
      %v2045 = vmax.f32 %v1658, 0.0
      %v2046 = vmax.f32 %v1661, 0.0
      %v2047 = vmax.f32 %v1666, 0.0
      %v2048 = vmax.f32 %v1669, 0.0
      %v2049 = vmax.f32 %v1674, 0.0
      %v2050 = vmax.f32 %v1677, 0.0
      %v2051 = vmax.f32 %v1682, 0.0
      %v2052 = vmax.f32 %v1685, 0.0
      %v2053 = vmax.f32 %v1690, 0.0
      %v2054 = vmax.f32 %v1693, 0.0
      %v2055 = vmax.f32 %v1698, 0.0
      %v2056 = vmax.f32 %v1701, 0.0
      %v2057 = vmax.f32 %v1706, 0.0
      %v2058 = vmax.f32 %v1709, 0.0
      %v2059 = vmax.f32 %v1714, 0.0
      %v2060 = vmax.f32 %v1717, 0.0
      %v2061 = vmax.f32 %v1722, 0.0
      %v2062 = vmax.f32 %v1725, 0.0
      %v2063 = vmax.f32 %v1730, 0.0
      %v2064 = vmax.f32 %v1733, 0.0
      %v2065 = vmax.f32 %v1738, 0.0
      %v2066 = vmax.f32 %v1741, 0.0
      %v2067 = vmax.f32 %v1746, 0.0
      %v2068 = vmax.f32 %v1749, 0.0
      %v2069 = vmax.f32 %v1754, 0.0
      %v2070 = vmax.f32 %v1757, 0.0
      %v2071 = vmax.f32 %v1762, 0.0
      %v2072 = vmax.f32 %v1765, 0.0
      %v2073 = vmax.f32 %v1770, 0.0
      %v2074 = vmax.f32 %v1773, 0.0
      %v2075 = vmax.f32 %v1778, 0.0
      %v2076 = vmax.f32 %v1781, 0.0
      %v2077 = vmax.f32 %v1786, 0.0
      %v2078 = vmax.f32 %v1789, 0.0
      %v2079 = vmax.f32 %v1794, 0.0
      %v2080 = vmax.f32 %v1797, 0.0
      %v2081 = vmax.f32 %v1802, 0.0
      %v2082 = vmax.f32 %v1805, 0.0
      %v2083 = vmax.f32 %v1810, 0.0
      %v2084 = vmax.f32 %v1813, 0.0
      %v2085 = vmax.f32 %v1818, 0.0
      %v2086 = vmax.f32 %v1821, 0.0
      %v2087 = vmax.f32 %v1826, 0.0
      %v2088 = vmax.f32 %v1829, 0.0
      %v2089 = vmax.f32 %v1834, 0.0
      %v2090 = vmax.f32 %v1837, 0.0
      %v2091 = vmax.f32 %v1842, 0.0
      %v2092 = vmax.f32 %v1845, 0.0
      %v2093 = vmax.f32 %v1850, 0.0
      %v2094 = vmax.f32 %v1853, 0.0
      %v2095 = vmax.f32 %v1858, 0.0
      %v2096 = vmax.f32 %v1861, 0.0
      %v2097 = vmax.f32 %v1866, 0.0
      %v2098 = vmax.f32 %v1869, 0.0
      %v2099 = vmax.f32 %v1874, 0.0
      %v2100 = vmax.f32 %v1877, 0.0
      %v2101 = vmax.f32 %v1882, 0.0
      %v2102 = vmax.f32 %v1885, 0.0
      %v2103 = vmax.f32 %v1890, 0.0
      %v2104 = vmax.f32 %v1893, 0.0
      %v2105 = vmax.f32 %v1898, 0.0
      %v2106 = vmax.f32 %v1901, 0.0
      %v2107 = vmax.f32 %v1906, 0.0
      %v2108 = vmax.f32 %v1909, 0.0
      %v2109 = vmax.f32 %v1914, 0.0
      %v2110 = vmax.f32 %v1917, 0.0
      %v2111 = vmax.f32 %v1922, 0.0
      %v2112 = vmax.f32 %v1925, 0.0
      %v2113 = vmax.f32 %v1930, 0.0
      %v2114 = vmax.f32 %v1933, 0.0
      %v2115 = vmax.f32 %v1938, 0.0
      %v2116 = vmax.f32 %v1941, 0.0
      %v2117 = vmax.f32 %v1946, 0.0
      %v2118 = vmax.f32 %v1949, 0.0
      %v2119 = vmax.f32 %v1954, 0.0
      %v2120 = vmax.f32 %v1957, 0.0
      %v2121 = vmax.f32 %v1962, 0.0
      %v2122 = vmax.f32 %v1965, 0.0
      %v2123 = vmax.f32 %v1970, 0.0
      %v2124 = vmax.f32 %v1973, 0.0
      %v2125 = vmax.f32 %v1978, 0.0
      %v2126 = vmax.f32 %v1981, 0.0
      %v2127 = vmax.f32 %v1986, 0.0
      %v2128 = vmax.f32 %v1989, 0.0
      %v2129 = vmax.f32 %v1994, 0.0
      %v2130 = vmax.f32 %v1997, 0.0
      %v2131 = vmax.f32 %v2002, 0.0
      %v2132 = vpack.c.bf16 %v2008, %v2007
      %v2133 = vpack.c.bf16 %v2010, %v2009
      %v2134 = vpack.c.bf16 %v2012, %v2011
      %v2135 = vpack.c.bf16 %v2014, %v2013
      %v2136 = vpack.c.bf16 %v2016, %v2015
      %v2137 = vpack.c.bf16 %v2018, %v2017
      %v2138 = vpack.c.bf16 %v2020, %v2019
      %v2139 = vpack.c.bf16 %v2022, %v2021
      %v2140 = vpack.c.bf16 %v2024, %v2023
      %v2141 = vpack.c.bf16 %v2026, %v2025
      %v2142 = vpack.c.bf16 %v2028, %v2027
      %v2143 = vpack.c.bf16 %v2030, %v2029
      %v2144 = vpack.c.bf16 %v2032, %v2031
      %v2145 = vpack.c.bf16 %v2034, %v2033
      %v2146 = vpack.c.bf16 %v2036, %v2035
      %v2147 = vpack.c.bf16 %v2038, %v2037
      %v2148 = vpack.c.bf16 %v2040, %v2039
      %v2149 = vpack.c.bf16 %v2042, %v2041
      %v2150 = vpack.c.bf16 %v2044, %v2043
      %v2151 = vpack.c.bf16 %v2046, %v2045
      %v2152 = vpack.c.bf16 %v2048, %v2047
      %v2153 = vpack.c.bf16 %v2050, %v2049
      %v2154 = vpack.c.bf16 %v2052, %v2051
      %v2155 = vpack.c.bf16 %v2054, %v2053
      %v2156 = vpack.c.bf16 %v2056, %v2055
      %v2157 = vpack.c.bf16 %v2058, %v2057
      %v2158 = vpack.c.bf16 %v2060, %v2059
      %v2159 = vpack.c.bf16 %v2062, %v2061
      %v2160 = vpack.c.bf16 %v2064, %v2063
      %v2161 = vpack.c.bf16 %v2066, %v2065
      %v2162 = vpack.c.bf16 %v2068, %v2067
      %v2163 = vpack.c.bf16 %v2070, %v2069
      %v2164 = vpack.c.bf16 %v2072, %v2071
      %v2165 = vpack.c.bf16 %v2074, %v2073
      %v2166 = vpack.c.bf16 %v2076, %v2075
      %v2167 = vpack.c.bf16 %v2078, %v2077
      %v2168 = vpack.c.bf16 %v2080, %v2079
      %v2169 = vpack.c.bf16 %v2082, %v2081
      %v2170 = vpack.c.bf16 %v2084, %v2083
      %v2171 = vpack.c.bf16 %v2086, %v2085
      %v2172 = vpack.c.bf16 %v2088, %v2087
      %v2173 = vpack.c.bf16 %v2090, %v2089
      %v2174 = vpack.c.bf16 %v2092, %v2091
      %v2175 = vpack.c.bf16 %v2094, %v2093
      %v2176 = vpack.c.bf16 %v2096, %v2095
      %v2177 = vpack.c.bf16 %v2098, %v2097
      %v2178 = vpack.c.bf16 %v2100, %v2099
      %v2179 = vpack.c.bf16 %v2102, %v2101
      %v2180 = vpack.c.bf16 %v2104, %v2103
      %v2181 = vpack.c.bf16 %v2106, %v2105
      %v2182 = vpack.c.bf16 %v2108, %v2107
      %v2183 = vpack.c.bf16 %v2110, %v2109
      %v2184 = vpack.c.bf16 %v2112, %v2111
      %v2185 = vpack.c.bf16 %v2114, %v2113
      %v2186 = vpack.c.bf16 %v2116, %v2115
      %v2187 = vpack.c.bf16 %v2118, %v2117
      %v2188 = vpack.c.bf16 %v2120, %v2119
      %v2189 = vpack.c.bf16 %v2122, %v2121
      %v2190 = vpack.c.bf16 %v2124, %v2123
      %v2191 = vpack.c.bf16 %v2126, %v2125
      %v2192 = vpack.c.bf16 %v2128, %v2127
      %v2193 = vpack.c.bf16 %v2130, %v2129
      %v2194 = vpack.c.bf16 %v2131, %v2131
      %v2195 = vld [vmem:[%s5] sm:$0xf]
      %v2196 = vld [vmem:[%s5 + $0x4] sm:$0xf]
      %v2197 = vld [vmem:[%s5 + $0x8] sm:$0xf]
      %v2198 = vld [vmem:[%s5 + $0xc] sm:$0xf]
      %v2199 = vld [vmem:[%s5 + $0x10] sm:$0xf]
      %v2200 = vld [vmem:[%s5 + $0x14] sm:$0xf]
      %v2201 = vld [vmem:[%s5 + $0x18] sm:$0xf]
      %v2202 = vld [vmem:[%s5 + $0x1c] sm:$0xf]
      %v2203 = vld [vmem:[%s5 + $0x20] sm:$0xf]
      %v2204 = vld [vmem:[%s5 + $0x24] sm:$0xf]
      %v2205 = vld [vmem:[%s5 + $0x28] sm:$0xf]
      %v2206 = vld [vmem:[%s5 + $0x2c] sm:$0xf]
      %v2207 = vld [vmem:[%s5 + $0x30] sm:$0xf]
      %v2208 = vld [vmem:[%s5 + $0x34] sm:$0xf]
      %v2209 = vld [vmem:[%s5 + $0x38] sm:$0xf]
      %v2210 = vld [vmem:[%s5 + $0x3c] sm:$0xf]
      %v2211 = vld [vmem:[%s6] sm:$0x1]
      %v2213 = vlaneseq
      %v2214 = vshrl.u32 %v2213, 7
      %v2215 = vsub.s32 0, %v2214
      %v2216 = vrot.slane %v2211, %v2215
      %v2234 = vunpack.c.l.b16 %v2195
      %v2235 = vunpack.c.l.b16 %v2196
      %v2236 = vunpack.c.l.b16 %v2197
      %v2237 = vunpack.c.l.b16 %v2198
      %v2238 = vunpack.c.l.b16 %v2199
      %v2239 = vunpack.c.l.b16 %v2200
      %v2240 = vunpack.c.l.b16 %v2201
      %v2241 = vunpack.c.l.b16 %v2202
      %v2242 = vunpack.c.l.b16 %v2203
      %v2243 = vunpack.c.l.b16 %v2204
      %v2244 = vunpack.c.l.b16 %v2205
      %v2245 = vunpack.c.l.b16 %v2206
      %v2246 = vunpack.c.l.b16 %v2207
      %v2247 = vunpack.c.l.b16 %v2208
      %v2248 = vunpack.c.l.b16 %v2209
      %v2249 = vunpack.c.l.b16 %v2210
      %v2250 = vpack.c.b16 %v2235, %v2234
      %v2251 = vpack.c.b16 %v2237, %v2236
      %v2252 = vpack.c.b16 %v2239, %v2238
      %v2253 = vpack.c.b16 %v2241, %v2240
      %v2254 = vpack.c.b16 %v2243, %v2242
      %v2255 = vpack.c.b16 %v2245, %v2244
      %v2256 = vpack.c.b16 %v2247, %v2246
      %v2257 = vpack.c.b16 %v2249, %v2248
      %2266 = vmatprep.subr.bf16.mxu0 0
      %2267 = vmatpush1.bf16.msra.mxu0 %v2250
      %2268 = vmatprep.subr.bf16.mxu0 0
      %2269 = vmatpush1.bf16.msra.mxu0 %v2251
      %2270 = vmatprep.subr.bf16.mxu0 0
      %2271 = vmatpush1.bf16.msra.mxu0 %v2252
      %2272 = vmatprep.subr.bf16.mxu0 0
      %2273 = vmatpush1.bf16.msra.mxu0 %v2253
      %2274 = vmatprep.subr.bf16.mxu0 0
      %2275 = vmatpush1.bf16.msra.mxu0 %v2254
      %2276 = vmatprep.subr.bf16.mxu0 0
      %2277 = vmatpush1.bf16.msra.mxu0 %v2255
      %2278 = vmatprep.subr.bf16.mxu0 0
      %2279 = vmatpush1.bf16.msra.mxu0 %v2256
      %2280 = vmatprep.subr.bf16.mxu0 0
      %2281 = vmatpush1.bf16.msra.mxu0 %v2257
      %2282 = vmatprep.subr.bf16.mxu0 0
      %2283 = vmatpush1.bf16.msra.mxu0 0
      %2284 = vmatprep.subr.bf16.mxu0 0
      %2285 = vmatpush1.bf16.msra.mxu0 0
      %2286 = vmatprep.subr.bf16.mxu0 0
      %2287 = vmatpush1.bf16.msra.mxu0 0
      %2288 = vmatprep.subr.bf16.mxu0 0
      %2289 = vmatpush1.bf16.msra.mxu0 0
      %2290 = vmatprep.subr.bf16.mxu0 0
      %2291 = vmatpush1.bf16.msra.mxu0 0
      %2292 = vmatprep.subr.bf16.mxu0 0
      %2293 = vmatpush1.bf16.msra.mxu0 0
      %2294 = vmatprep.subr.bf16.mxu0 0
      %2295 = vmatpush1.bf16.msra.mxu0 0
      %2296 = vmatprep.subr.bf16.mxu0 0
      %2297 = vmatpush1.bf16.msra.mxu0 0
      %2298 = vmatprep.mubr.bf16.mxu0 0
      %2299 = vmatmul.mubr.bf16.gmra.mrb[0].mxu0 %v2132
      %v2300 = vpop.f32.mrb[0].mxu0
      %v2301 = vadd.f32 %v2216, %v2300
      %v2302 = vpop.f32.mrb[0].mxu0
      %v2303 = vpop.f32.mrb[0].mxu0
      %v2304 = vadd.f32 %v2216, %v2303
      %v2305 = vpop.f32.mrb[0].mxu0
      %2306 = vmatprep.mubr.bf16.mxu0 0
      %2307 = vmatmul.mubr.bf16.gmra.mrb[0].mxu0 %v2133
      %v2308 = vpop.f32.mrb[0].mxu0
      %v2309 = vadd.f32 %v2216, %v2308
      %v2310 = vpop.f32.mrb[0].mxu0
      %v2311 = vpop.f32.mrb[0].mxu0
      %v2312 = vadd.f32 %v2216, %v2311
      %v2313 = vpop.f32.mrb[0].mxu0
      %2314 = vmatprep.mubr.bf16.mxu0 0
      %2315 = vmatmul.mubr.bf16.gmra.mrb[0].mxu0 %v2134
      %v2316 = vpop.f32.mrb[0].mxu0
      %v2317 = vadd.f32 %v2216, %v2316
      %v2318 = vpop.f32.mrb[0].mxu0
      %v2319 = vpop.f32.mrb[0].mxu0
      %v2320 = vadd.f32 %v2216, %v2319
      %v2321 = vpop.f32.mrb[0].mxu0
      %2322 = vmatprep.mubr.bf16.mxu0 0
      %2323 = vmatmul.mubr.bf16.gmra.mrb[0].mxu0 %v2135
      %v2324 = vpop.f32.mrb[0].mxu0
      %v2325 = vadd.f32 %v2216, %v2324
      %v2326 = vpop.f32.mrb[0].mxu0
      %v2327 = vpop.f32.mrb[0].mxu0
      %v2328 = vadd.f32 %v2216, %v2327
      %v2329 = vpop.f32.mrb[0].mxu0
      %2330 = vmatprep.mubr.bf16.mxu0 0
      %2331 = vmatmul.mubr.bf16.gmra.mrb[0].mxu0 %v2136
      %v2332 = vpop.f32.mrb[0].mxu0
      %v2333 = vadd.f32 %v2216, %v2332
      %v2334 = vpop.f32.mrb[0].mxu0
      %v2335 = vpop.f32.mrb[0].mxu0
      %v2336 = vadd.f32 %v2216, %v2335
      %v2337 = vpop.f32.mrb[0].mxu0
      %2338 = vmatprep.mubr.bf16.mxu0 0
      %2339 = vmatmul.mubr.bf16.gmra.mrb[0].mxu0 %v2137
      %v2340 = vpop.f32.mrb[0].mxu0
      %v2341 = vadd.f32 %v2216, %v2340
      %v2342 = vpop.f32.mrb[0].mxu0
      %v2343 = vpop.f32.mrb[0].mxu0
      %v2344 = vadd.f32 %v2216, %v2343
      %v2345 = vpop.f32.mrb[0].mxu0
      %2346 = vmatprep.mubr.bf16.mxu0 0
      %2347 = vmatmul.mubr.bf16.gmra.mrb[0].mxu0 %v2138
      %v2348 = vpop.f32.mrb[0].mxu0
      %v2349 = vadd.f32 %v2216, %v2348
      %v2350 = vpop.f32.mrb[0].mxu0
      %v2351 = vpop.f32.mrb[0].mxu0
      %v2352 = vadd.f32 %v2216, %v2351
      %v2353 = vpop.f32.mrb[0].mxu0
      %2354 = vmatprep.mubr.bf16.mxu0 0
      %2355 = vmatmul.mubr.bf16.gmra.mrb[0].mxu0 %v2139
      %v2356 = vpop.f32.mrb[0].mxu0
      %v2357 = vadd.f32 %v2216, %v2356
      %v2358 = vpop.f32.mrb[0].mxu0
      %v2359 = vpop.f32.mrb[0].mxu0
      %v2360 = vadd.f32 %v2216, %v2359
      %v2361 = vpop.f32.mrb[0].mxu0
      %2362 = vmatprep.mubr.bf16.mxu0 0
      %2363 = vmatmul.mubr.bf16.gmra.mrb[0].mxu0 %v2140
      %v2364 = vpop.f32.mrb[0].mxu0
      %v2365 = vadd.f32 %v2216, %v2364
      %v2366 = vpop.f32.mrb[0].mxu0
      %v2367 = vpop.f32.mrb[0].mxu0
      %v2368 = vadd.f32 %v2216, %v2367
      %v2369 = vpop.f32.mrb[0].mxu0
      %2370 = vmatprep.mubr.bf16.mxu0 0
      %2371 = vmatmul.mubr.bf16.gmra.mrb[0].mxu0 %v2141
      %v2372 = vpop.f32.mrb[0].mxu0
      %v2373 = vadd.f32 %v2216, %v2372
      %v2374 = vpop.f32.mrb[0].mxu0
      %v2375 = vpop.f32.mrb[0].mxu0
      %v2376 = vadd.f32 %v2216, %v2375
      %v2377 = vpop.f32.mrb[0].mxu0
      %2378 = vmatprep.mubr.bf16.mxu0 0
      %2379 = vmatmul.mubr.bf16.gmra.mrb[0].mxu0 %v2142
      %v2380 = vpop.f32.mrb[0].mxu0
      %v2381 = vadd.f32 %v2216, %v2380
      %v2382 = vpop.f32.mrb[0].mxu0
      %v2383 = vpop.f32.mrb[0].mxu0
      %v2384 = vadd.f32 %v2216, %v2383
      %v2385 = vpop.f32.mrb[0].mxu0
      %2386 = vmatprep.mubr.bf16.mxu0 0
      %2387 = vmatmul.mubr.bf16.gmra.mrb[0].mxu0 %v2143
      %v2388 = vpop.f32.mrb[0].mxu0
      %v2389 = vadd.f32 %v2216, %v2388
      %v2390 = vpop.f32.mrb[0].mxu0
      %v2391 = vpop.f32.mrb[0].mxu0
      %v2392 = vadd.f32 %v2216, %v2391
      %v2393 = vpop.f32.mrb[0].mxu0
      %2394 = vmatprep.mubr.bf16.mxu0 0
      %2395 = vmatmul.mubr.bf16.gmra.mrb[0].mxu0 %v2144
      %v2396 = vpop.f32.mrb[0].mxu0
      %v2397 = vadd.f32 %v2216, %v2396
      %v2398 = vpop.f32.mrb[0].mxu0
      %v2399 = vpop.f32.mrb[0].mxu0
      %v2400 = vadd.f32 %v2216, %v2399
      %v2401 = vpop.f32.mrb[0].mxu0
      %2402 = vmatprep.mubr.bf16.mxu0 0
      %2403 = vmatmul.mubr.bf16.gmra.mrb[0].mxu0 %v2145
      %v2404 = vpop.f32.mrb[0].mxu0
      %v2405 = vadd.f32 %v2216, %v2404
      %v2406 = vpop.f32.mrb[0].mxu0
      %v2407 = vpop.f32.mrb[0].mxu0
      %v2408 = vadd.f32 %v2216, %v2407
      %v2409 = vpop.f32.mrb[0].mxu0
      %2410 = vmatprep.mubr.bf16.mxu0 0
      %2411 = vmatmul.mubr.bf16.gmra.mrb[0].mxu0 %v2146
      %v2412 = vpop.f32.mrb[0].mxu0
      %v2413 = vadd.f32 %v2216, %v2412
      %v2414 = vpop.f32.mrb[0].mxu0
      %v2415 = vpop.f32.mrb[0].mxu0
      %v2416 = vadd.f32 %v2216, %v2415
      %v2417 = vpop.f32.mrb[0].mxu0
      %2418 = vmatprep.mubr.bf16.mxu0 0
      %2419 = vmatmul.mubr.bf16.gmra.mrb[0].mxu0 %v2147
      %v2420 = vpop.f32.mrb[0].mxu0
      %v2421 = vadd.f32 %v2216, %v2420
      %v2422 = vpop.f32.mrb[0].mxu0
      %v2423 = vpop.f32.mrb[0].mxu0
      %v2424 = vadd.f32 %v2216, %v2423
      %v2425 = vpop.f32.mrb[0].mxu0
      %2426 = vmatprep.mubr.bf16.mxu0 0
      %2427 = vmatmul.mubr.bf16.gmra.mrb[0].mxu0 %v2148
      %v2428 = vpop.f32.mrb[0].mxu0
      %v2429 = vadd.f32 %v2216, %v2428
      %v2430 = vpop.f32.mrb[0].mxu0
      %v2431 = vpop.f32.mrb[0].mxu0
      %v2432 = vadd.f32 %v2216, %v2431
      %v2433 = vpop.f32.mrb[0].mxu0
      %2434 = vmatprep.mubr.bf16.mxu0 0
      %2435 = vmatmul.mubr.bf16.gmra.mrb[0].mxu0 %v2149
      %v2436 = vpop.f32.mrb[0].mxu0
      %v2437 = vadd.f32 %v2216, %v2436
      %v2438 = vpop.f32.mrb[0].mxu0
      %v2439 = vpop.f32.mrb[0].mxu0
      %v2440 = vadd.f32 %v2216, %v2439
      %v2441 = vpop.f32.mrb[0].mxu0
      %2442 = vmatprep.mubr.bf16.mxu0 0
      %2443 = vmatmul.mubr.bf16.gmra.mrb[0].mxu0 %v2150
      %v2444 = vpop.f32.mrb[0].mxu0
      %v2445 = vadd.f32 %v2216, %v2444
      %v2446 = vpop.f32.mrb[0].mxu0
      %v2447 = vpop.f32.mrb[0].mxu0
      %v2448 = vadd.f32 %v2216, %v2447
      %v2449 = vpop.f32.mrb[0].mxu0
      %2450 = vmatprep.mubr.bf16.mxu0 0
      %2451 = vmatmul.mubr.bf16.gmra.mrb[0].mxu0 %v2151
      %v2452 = vpop.f32.mrb[0].mxu0
      %v2453 = vadd.f32 %v2216, %v2452
      %v2454 = vpop.f32.mrb[0].mxu0
      %v2455 = vpop.f32.mrb[0].mxu0
      %v2456 = vadd.f32 %v2216, %v2455
      %v2457 = vpop.f32.mrb[0].mxu0
      %2458 = vmatprep.mubr.bf16.mxu0 0
      %2459 = vmatmul.mubr.bf16.gmra.mrb[0].mxu0 %v2152
      %v2460 = vpop.f32.mrb[0].mxu0
      %v2461 = vadd.f32 %v2216, %v2460
      %v2462 = vpop.f32.mrb[0].mxu0
      %v2463 = vpop.f32.mrb[0].mxu0
      %v2464 = vadd.f32 %v2216, %v2463
      %v2465 = vpop.f32.mrb[0].mxu0
      %2466 = vmatprep.mubr.bf16.mxu0 0
      %2467 = vmatmul.mubr.bf16.gmra.mrb[0].mxu0 %v2153
      %v2468 = vpop.f32.mrb[0].mxu0
      %v2469 = vadd.f32 %v2216, %v2468
      %v2470 = vpop.f32.mrb[0].mxu0
      %v2471 = vpop.f32.mrb[0].mxu0
      %v2472 = vadd.f32 %v2216, %v2471
      %v2473 = vpop.f32.mrb[0].mxu0
      %2474 = vmatprep.mubr.bf16.mxu0 0
      %2475 = vmatmul.mubr.bf16.gmra.mrb[0].mxu0 %v2154
      %v2476 = vpop.f32.mrb[0].mxu0
      %v2477 = vadd.f32 %v2216, %v2476
      %v2478 = vpop.f32.mrb[0].mxu0
      %v2479 = vpop.f32.mrb[0].mxu0
      %v2480 = vadd.f32 %v2216, %v2479
      %v2481 = vpop.f32.mrb[0].mxu0
      %2482 = vmatprep.mubr.bf16.mxu0 0
      %2483 = vmatmul.mubr.bf16.gmra.mrb[0].mxu0 %v2155
      %v2484 = vpop.f32.mrb[0].mxu0
      %v2485 = vadd.f32 %v2216, %v2484
      %v2486 = vpop.f32.mrb[0].mxu0
      %v2487 = vpop.f32.mrb[0].mxu0
      %v2488 = vadd.f32 %v2216, %v2487
      %v2489 = vpop.f32.mrb[0].mxu0
      %2490 = vmatprep.mubr.bf16.mxu0 0
      %2491 = vmatmul.mubr.bf16.gmra.mrb[0].mxu0 %v2156
      %v2492 = vpop.f32.mrb[0].mxu0
      %v2493 = vadd.f32 %v2216, %v2492
      %v2494 = vpop.f32.mrb[0].mxu0
      %v2495 = vpop.f32.mrb[0].mxu0
      %v2496 = vadd.f32 %v2216, %v2495
      %v2497 = vpop.f32.mrb[0].mxu0
      %2498 = vmatprep.mubr.bf16.mxu0 0
      %2499 = vmatmul.mubr.bf16.gmra.mrb[0].mxu0 %v2157
      %v2500 = vpop.f32.mrb[0].mxu0
      %v2501 = vadd.f32 %v2216, %v2500
      %v2502 = vpop.f32.mrb[0].mxu0
      %v2503 = vpop.f32.mrb[0].mxu0
      %v2504 = vadd.f32 %v2216, %v2503
      %v2505 = vpop.f32.mrb[0].mxu0
      %2506 = vmatprep.mubr.bf16.mxu0 0
      %2507 = vmatmul.mubr.bf16.gmra.mrb[0].mxu0 %v2158
      %v2508 = vpop.f32.mrb[0].mxu0
      %v2509 = vadd.f32 %v2216, %v2508
      %v2510 = vpop.f32.mrb[0].mxu0
      %v2511 = vpop.f32.mrb[0].mxu0
      %v2512 = vadd.f32 %v2216, %v2511
      %v2513 = vpop.f32.mrb[0].mxu0
      %2514 = vmatprep.mubr.bf16.mxu0 0
      %2515 = vmatmul.mubr.bf16.gmra.mrb[0].mxu0 %v2159
      %v2516 = vpop.f32.mrb[0].mxu0
      %v2517 = vadd.f32 %v2216, %v2516
      %v2518 = vpop.f32.mrb[0].mxu0
      %v2519 = vpop.f32.mrb[0].mxu0
      %v2520 = vadd.f32 %v2216, %v2519
      %v2521 = vpop.f32.mrb[0].mxu0
      %2522 = vmatprep.mubr.bf16.mxu0 0
      %2523 = vmatmul.mubr.bf16.gmra.mrb[0].mxu0 %v2160
      %v2524 = vpop.f32.mrb[0].mxu0
      %v2525 = vadd.f32 %v2216, %v2524
      %v2526 = vpop.f32.mrb[0].mxu0
      %v2527 = vpop.f32.mrb[0].mxu0
      %v2528 = vadd.f32 %v2216, %v2527
      %v2529 = vpop.f32.mrb[0].mxu0
      %2530 = vmatprep.mubr.bf16.mxu0 0
      %2531 = vmatmul.mubr.bf16.gmra.mrb[0].mxu0 %v2161
      %v2532 = vpop.f32.mrb[0].mxu0
      %v2533 = vadd.f32 %v2216, %v2532
      %v2534 = vpop.f32.mrb[0].mxu0
      %v2535 = vpop.f32.mrb[0].mxu0
      %v2536 = vadd.f32 %v2216, %v2535
      %v2537 = vpop.f32.mrb[0].mxu0
      %2538 = vmatprep.mubr.bf16.mxu0 0
      %2539 = vmatmul.mubr.bf16.gmra.mrb[0].mxu0 %v2162
      %v2540 = vpop.f32.mrb[0].mxu0
      %v2541 = vadd.f32 %v2216, %v2540
      %v2542 = vpop.f32.mrb[0].mxu0
      %v2543 = vpop.f32.mrb[0].mxu0
      %v2544 = vadd.f32 %v2216, %v2543
      %v2545 = vpop.f32.mrb[0].mxu0
      %2546 = vmatprep.mubr.bf16.mxu0 0
      %2547 = vmatmul.mubr.bf16.gmra.mrb[0].mxu0 %v2163
      %v2548 = vpop.f32.mrb[0].mxu0
      %v2549 = vadd.f32 %v2216, %v2548
      %v2550 = vpop.f32.mrb[0].mxu0
      %v2551 = vpop.f32.mrb[0].mxu0
      %v2552 = vadd.f32 %v2216, %v2551
      %v2553 = vpop.f32.mrb[0].mxu0
      %2554 = vmatprep.mubr.bf16.mxu0 0
      %2555 = vmatmul.mubr.bf16.gmra.mrb[0].mxu0 %v2164
      %v2556 = vpop.f32.mrb[0].mxu0
      %v2557 = vadd.f32 %v2216, %v2556
      %v2558 = vpop.f32.mrb[0].mxu0
      %v2559 = vpop.f32.mrb[0].mxu0
      %v2560 = vadd.f32 %v2216, %v2559
      %v2561 = vpop.f32.mrb[0].mxu0
      %2562 = vmatprep.mubr.bf16.mxu0 0
      %2563 = vmatmul.mubr.bf16.gmra.mrb[0].mxu0 %v2165
      %v2564 = vpop.f32.mrb[0].mxu0
      %v2565 = vadd.f32 %v2216, %v2564
      %v2566 = vpop.f32.mrb[0].mxu0
      %v2567 = vpop.f32.mrb[0].mxu0
      %v2568 = vadd.f32 %v2216, %v2567
      %v2569 = vpop.f32.mrb[0].mxu0
      %2570 = vmatprep.mubr.bf16.mxu0 0
      %2571 = vmatmul.mubr.bf16.gmra.mrb[0].mxu0 %v2166
      %v2572 = vpop.f32.mrb[0].mxu0
      %v2573 = vadd.f32 %v2216, %v2572
      %v2574 = vpop.f32.mrb[0].mxu0
      %v2575 = vpop.f32.mrb[0].mxu0
      %v2576 = vadd.f32 %v2216, %v2575
      %v2577 = vpop.f32.mrb[0].mxu0
      %2578 = vmatprep.mubr.bf16.mxu0 0
      %2579 = vmatmul.mubr.bf16.gmra.mrb[0].mxu0 %v2167
      %v2580 = vpop.f32.mrb[0].mxu0
      %v2581 = vadd.f32 %v2216, %v2580
      %v2582 = vpop.f32.mrb[0].mxu0
      %v2583 = vpop.f32.mrb[0].mxu0
      %v2584 = vadd.f32 %v2216, %v2583
      %v2585 = vpop.f32.mrb[0].mxu0
      %2586 = vmatprep.mubr.bf16.mxu0 0
      %2587 = vmatmul.mubr.bf16.gmra.mrb[0].mxu0 %v2168
      %v2588 = vpop.f32.mrb[0].mxu0
      %v2589 = vadd.f32 %v2216, %v2588
      %v2590 = vpop.f32.mrb[0].mxu0
      %v2591 = vpop.f32.mrb[0].mxu0
      %v2592 = vadd.f32 %v2216, %v2591
      %v2593 = vpop.f32.mrb[0].mxu0
      %2594 = vmatprep.mubr.bf16.mxu0 0
      %2595 = vmatmul.mubr.bf16.gmra.mrb[0].mxu0 %v2169
      %v2596 = vpop.f32.mrb[0].mxu0
      %v2597 = vadd.f32 %v2216, %v2596
      %v2598 = vpop.f32.mrb[0].mxu0
      %v2599 = vpop.f32.mrb[0].mxu0
      %v2600 = vadd.f32 %v2216, %v2599
      %v2601 = vpop.f32.mrb[0].mxu0
      %2602 = vmatprep.mubr.bf16.mxu0 0
      %2603 = vmatmul.mubr.bf16.gmra.mrb[0].mxu0 %v2170
      %v2604 = vpop.f32.mrb[0].mxu0
      %v2605 = vadd.f32 %v2216, %v2604
      %v2606 = vpop.f32.mrb[0].mxu0
      %v2607 = vpop.f32.mrb[0].mxu0
      %v2608 = vadd.f32 %v2216, %v2607
      %v2609 = vpop.f32.mrb[0].mxu0
      %2610 = vmatprep.mubr.bf16.mxu0 0
      %2611 = vmatmul.mubr.bf16.gmra.mrb[0].mxu0 %v2171
      %v2612 = vpop.f32.mrb[0].mxu0
      %v2613 = vadd.f32 %v2216, %v2612
      %v2614 = vpop.f32.mrb[0].mxu0
      %v2615 = vpop.f32.mrb[0].mxu0
      %v2616 = vadd.f32 %v2216, %v2615
      %v2617 = vpop.f32.mrb[0].mxu0
      %2618 = vmatprep.mubr.bf16.mxu0 0
      %2619 = vmatmul.mubr.bf16.gmra.mrb[0].mxu0 %v2172
      %v2620 = vpop.f32.mrb[0].mxu0
      %v2621 = vadd.f32 %v2216, %v2620
      %v2622 = vpop.f32.mrb[0].mxu0
      %v2623 = vpop.f32.mrb[0].mxu0
      %v2624 = vadd.f32 %v2216, %v2623
      %v2625 = vpop.f32.mrb[0].mxu0
      %2626 = vmatprep.mubr.bf16.mxu0 0
      %2627 = vmatmul.mubr.bf16.gmra.mrb[0].mxu0 %v2173
      %v2628 = vpop.f32.mrb[0].mxu0
      %v2629 = vadd.f32 %v2216, %v2628
      %v2630 = vpop.f32.mrb[0].mxu0
      %v2631 = vpop.f32.mrb[0].mxu0
      %v2632 = vadd.f32 %v2216, %v2631
      %v2633 = vpop.f32.mrb[0].mxu0
      %2634 = vmatprep.mubr.bf16.mxu0 0
      %2635 = vmatmul.mubr.bf16.gmra.mrb[0].mxu0 %v2174
      %v2636 = vpop.f32.mrb[0].mxu0
      %v2637 = vadd.f32 %v2216, %v2636
      %v2638 = vpop.f32.mrb[0].mxu0
      %v2639 = vpop.f32.mrb[0].mxu0
      %v2640 = vadd.f32 %v2216, %v2639
      %v2641 = vpop.f32.mrb[0].mxu0
      %2642 = vmatprep.mubr.bf16.mxu0 0
      %2643 = vmatmul.mubr.bf16.gmra.mrb[0].mxu0 %v2175
      %v2644 = vpop.f32.mrb[0].mxu0
      %v2645 = vadd.f32 %v2216, %v2644
      %v2646 = vpop.f32.mrb[0].mxu0
      %v2647 = vpop.f32.mrb[0].mxu0
      %v2648 = vadd.f32 %v2216, %v2647
      %v2649 = vpop.f32.mrb[0].mxu0
      %2650 = vmatprep.mubr.bf16.mxu0 0
      %2651 = vmatmul.mubr.bf16.gmra.mrb[0].mxu0 %v2176
      %v2652 = vpop.f32.mrb[0].mxu0
      %v2653 = vadd.f32 %v2216, %v2652
      %v2654 = vpop.f32.mrb[0].mxu0
      %v2655 = vpop.f32.mrb[0].mxu0
      %v2656 = vadd.f32 %v2216, %v2655
      %v2657 = vpop.f32.mrb[0].mxu0
      %2658 = vmatprep.mubr.bf16.mxu0 0
      %2659 = vmatmul.mubr.bf16.gmra.mrb[0].mxu0 %v2177
      %v2660 = vpop.f32.mrb[0].mxu0
      %v2661 = vadd.f32 %v2216, %v2660
      %v2662 = vpop.f32.mrb[0].mxu0
      %v2663 = vpop.f32.mrb[0].mxu0
      %v2664 = vadd.f32 %v2216, %v2663
      %v2665 = vpop.f32.mrb[0].mxu0
      %2666 = vmatprep.mubr.bf16.mxu0 0
      %2667 = vmatmul.mubr.bf16.gmra.mrb[0].mxu0 %v2178
      %v2668 = vpop.f32.mrb[0].mxu0
      %v2669 = vadd.f32 %v2216, %v2668
      %v2670 = vpop.f32.mrb[0].mxu0
      %v2671 = vpop.f32.mrb[0].mxu0
      %v2672 = vadd.f32 %v2216, %v2671
      %v2673 = vpop.f32.mrb[0].mxu0
      %2674 = vmatprep.mubr.bf16.mxu0 0
      %2675 = vmatmul.mubr.bf16.gmra.mrb[0].mxu0 %v2179
      %v2676 = vpop.f32.mrb[0].mxu0
      %v2677 = vadd.f32 %v2216, %v2676
      %v2678 = vpop.f32.mrb[0].mxu0
      %v2679 = vpop.f32.mrb[0].mxu0
      %v2680 = vadd.f32 %v2216, %v2679
      %v2681 = vpop.f32.mrb[0].mxu0
      %2682 = vmatprep.mubr.bf16.mxu0 0
      %2683 = vmatmul.mubr.bf16.gmra.mrb[0].mxu0 %v2180
      %v2684 = vpop.f32.mrb[0].mxu0
      %v2685 = vadd.f32 %v2216, %v2684
      %v2686 = vpop.f32.mrb[0].mxu0
      %v2687 = vpop.f32.mrb[0].mxu0
      %v2688 = vadd.f32 %v2216, %v2687
      %v2689 = vpop.f32.mrb[0].mxu0
      %2690 = vmatprep.mubr.bf16.mxu0 0
      %2691 = vmatmul.mubr.bf16.gmra.mrb[0].mxu0 %v2181
      %v2692 = vpop.f32.mrb[0].mxu0
      %v2693 = vadd.f32 %v2216, %v2692
      %v2694 = vpop.f32.mrb[0].mxu0
      %v2695 = vpop.f32.mrb[0].mxu0
      %v2696 = vadd.f32 %v2216, %v2695
      %v2697 = vpop.f32.mrb[0].mxu0
      %2698 = vmatprep.mubr.bf16.mxu0 0
      %2699 = vmatmul.mubr.bf16.gmra.mrb[0].mxu0 %v2182
      %v2700 = vpop.f32.mrb[0].mxu0
      %v2701 = vadd.f32 %v2216, %v2700
      %v2702 = vpop.f32.mrb[0].mxu0
      %v2703 = vpop.f32.mrb[0].mxu0
      %v2704 = vadd.f32 %v2216, %v2703
      %v2705 = vpop.f32.mrb[0].mxu0
      %2706 = vmatprep.mubr.bf16.mxu0 0
      %2707 = vmatmul.mubr.bf16.gmra.mrb[0].mxu0 %v2183
      %v2708 = vpop.f32.mrb[0].mxu0
      %v2709 = vadd.f32 %v2216, %v2708
      %v2710 = vpop.f32.mrb[0].mxu0
      %v2711 = vpop.f32.mrb[0].mxu0
      %v2712 = vadd.f32 %v2216, %v2711
      %v2713 = vpop.f32.mrb[0].mxu0
      %2714 = vmatprep.mubr.bf16.mxu0 0
      %2715 = vmatmul.mubr.bf16.gmra.mrb[0].mxu0 %v2184
      %v2716 = vpop.f32.mrb[0].mxu0
      %v2717 = vadd.f32 %v2216, %v2716
      %v2718 = vpop.f32.mrb[0].mxu0
      %v2719 = vpop.f32.mrb[0].mxu0
      %v2720 = vadd.f32 %v2216, %v2719
      %v2721 = vpop.f32.mrb[0].mxu0
      %2722 = vmatprep.mubr.bf16.mxu0 0
      %2723 = vmatmul.mubr.bf16.gmra.mrb[0].mxu0 %v2185
      %v2724 = vpop.f32.mrb[0].mxu0
      %v2725 = vadd.f32 %v2216, %v2724
      %v2726 = vpop.f32.mrb[0].mxu0
      %v2727 = vpop.f32.mrb[0].mxu0
      %v2728 = vadd.f32 %v2216, %v2727
      %v2729 = vpop.f32.mrb[0].mxu0
      %2730 = vmatprep.mubr.bf16.mxu0 0
      %2731 = vmatmul.mubr.bf16.gmra.mrb[0].mxu0 %v2186
      %v2732 = vpop.f32.mrb[0].mxu0
      %v2733 = vadd.f32 %v2216, %v2732
      %v2734 = vpop.f32.mrb[0].mxu0
      %v2735 = vpop.f32.mrb[0].mxu0
      %v2736 = vadd.f32 %v2216, %v2735
      %v2737 = vpop.f32.mrb[0].mxu0
      %2738 = vmatprep.mubr.bf16.mxu0 0
      %2739 = vmatmul.mubr.bf16.gmra.mrb[0].mxu0 %v2187
      %v2740 = vpop.f32.mrb[0].mxu0
      %v2741 = vadd.f32 %v2216, %v2740
      %v2742 = vpop.f32.mrb[0].mxu0
      %v2743 = vpop.f32.mrb[0].mxu0
      %v2744 = vadd.f32 %v2216, %v2743
      %v2745 = vpop.f32.mrb[0].mxu0
      %2746 = vmatprep.mubr.bf16.mxu0 0
      %2747 = vmatmul.mubr.bf16.gmra.mrb[0].mxu0 %v2188
      %v2748 = vpop.f32.mrb[0].mxu0
      %v2749 = vadd.f32 %v2216, %v2748
      %v2750 = vpop.f32.mrb[0].mxu0
      %v2751 = vpop.f32.mrb[0].mxu0
      %v2752 = vadd.f32 %v2216, %v2751
      %v2753 = vpop.f32.mrb[0].mxu0
      %2754 = vmatprep.mubr.bf16.mxu0 0
      %2755 = vmatmul.mubr.bf16.gmra.mrb[0].mxu0 %v2189
      %v2756 = vpop.f32.mrb[0].mxu0
      %v2757 = vadd.f32 %v2216, %v2756
      %v2758 = vpop.f32.mrb[0].mxu0
      %v2759 = vpop.f32.mrb[0].mxu0
      %v2760 = vadd.f32 %v2216, %v2759
      %v2761 = vpop.f32.mrb[0].mxu0
      %2762 = vmatprep.mubr.bf16.mxu0 0
      %2763 = vmatmul.mubr.bf16.gmra.mrb[0].mxu0 %v2190
      %v2764 = vpop.f32.mrb[0].mxu0
      %v2765 = vadd.f32 %v2216, %v2764
      %v2766 = vpop.f32.mrb[0].mxu0
      %v2767 = vpop.f32.mrb[0].mxu0
      %v2768 = vadd.f32 %v2216, %v2767
      %v2769 = vpop.f32.mrb[0].mxu0
      %2770 = vmatprep.mubr.bf16.mxu0 0
      %2771 = vmatmul.mubr.bf16.gmra.mrb[0].mxu0 %v2191
      %v2772 = vpop.f32.mrb[0].mxu0
      %v2773 = vadd.f32 %v2216, %v2772
      %v2774 = vpop.f32.mrb[0].mxu0
      %v2775 = vpop.f32.mrb[0].mxu0
      %v2776 = vadd.f32 %v2216, %v2775
      %v2777 = vpop.f32.mrb[0].mxu0
      %2778 = vmatprep.mubr.bf16.mxu0 0
      %2779 = vmatmul.mubr.bf16.gmra.mrb[0].mxu0 %v2192
      %v2780 = vpop.f32.mrb[0].mxu0
      %v2781 = vadd.f32 %v2216, %v2780
      %v2782 = vpop.f32.mrb[0].mxu0
      %v2783 = vpop.f32.mrb[0].mxu0
      %v2784 = vadd.f32 %v2216, %v2783
      %v2785 = vpop.f32.mrb[0].mxu0
      %2786 = vmatprep.mubr.bf16.mxu0 0
      %2787 = vmatmul.mubr.bf16.gmra.mrb[0].mxu0 %v2193
      %v2788 = vpop.f32.mrb[0].mxu0
      %v2789 = vadd.f32 %v2216, %v2788
      %v2790 = vpop.f32.mrb[0].mxu0
      %v2791 = vpop.f32.mrb[0].mxu0
      %v2792 = vadd.f32 %v2216, %v2791
      %v2793 = vpop.f32.mrb[0].mxu0
      %2794 = vmatprep.mubr.bf16.mxu0 0
      %2795 = vmatmul.mubr.bf16.gmra.mrb[0].mxu0 %v2194
      %v2796 = vpop.f32.mrb[0].mxu0
      %v2797 = vadd.f32 %v2216, %v2796
      %v2798 = vpop.f32.mrb[0].mxu0
      %v2799 = vpop.f32.mrb[0].mxu0
      %v2800 = vpop.f32.mrb[0].mxu0
      %2801 = vdwg.mxu0
      %v2802 = vtanh.pop %v2301
      %v2803 = vtanh.pop %v2304
      %v2804 = vtanh.pop %v2309
      %v2805 = vtanh.pop %v2312
      %v2806 = vtanh.pop %v2317
      %v2807 = vtanh.pop %v2320
      %v2808 = vtanh.pop %v2325
      %v2809 = vtanh.pop %v2328
      %v2810 = vtanh.pop %v2333
      %v2811 = vtanh.pop %v2336
      %v2812 = vtanh.pop %v2341
      %v2813 = vtanh.pop %v2344
      %v2814 = vtanh.pop %v2349
      %v2815 = vtanh.pop %v2352
      %v2816 = vtanh.pop %v2357
      %v2817 = vtanh.pop %v2360
      %v2818 = vtanh.pop %v2365
      %v2819 = vtanh.pop %v2368
      %v2820 = vtanh.pop %v2373
      %v2821 = vtanh.pop %v2376
      %v2822 = vtanh.pop %v2381
      %v2823 = vtanh.pop %v2384
      %v2824 = vtanh.pop %v2389
      %v2825 = vtanh.pop %v2392
      %v2826 = vtanh.pop %v2397
      %v2827 = vtanh.pop %v2400
      %v2828 = vtanh.pop %v2405
      %v2829 = vtanh.pop %v2408
      %v2830 = vtanh.pop %v2413
      %v2831 = vtanh.pop %v2416
      %v2832 = vtanh.pop %v2421
      %v2833 = vtanh.pop %v2424
      %v2834 = vtanh.pop %v2429
      %v2835 = vtanh.pop %v2432
      %v2836 = vtanh.pop %v2437
      %v2837 = vtanh.pop %v2440
      %v2838 = vtanh.pop %v2445
      %v2839 = vtanh.pop %v2448
      %v2840 = vtanh.pop %v2453
      %v2841 = vtanh.pop %v2456
      %v2842 = vtanh.pop %v2461
      %v2843 = vtanh.pop %v2464
      %v2844 = vtanh.pop %v2469
      %v2845 = vtanh.pop %v2472
      %v2846 = vtanh.pop %v2477
      %v2847 = vtanh.pop %v2480
      %v2848 = vtanh.pop %v2485
      %v2849 = vtanh.pop %v2488
      %v2850 = vtanh.pop %v2493
      %v2851 = vtanh.pop %v2496
      %v2852 = vtanh.pop %v2501
      %v2853 = vtanh.pop %v2504
      %v2854 = vtanh.pop %v2509
      %v2855 = vtanh.pop %v2512
      %v2856 = vtanh.pop %v2517
      %v2857 = vtanh.pop %v2520
      %v2858 = vtanh.pop %v2525
      %v2859 = vtanh.pop %v2528
      %v2860 = vtanh.pop %v2533
      %v2861 = vtanh.pop %v2536
      %v2862 = vtanh.pop %v2541
      %v2863 = vtanh.pop %v2544
      %v2864 = vtanh.pop %v2549
      %v2865 = vtanh.pop %v2552
      %v2866 = vtanh.pop %v2557
      %v2867 = vtanh.pop %v2560
      %v2868 = vtanh.pop %v2565
      %v2869 = vtanh.pop %v2568
      %v2870 = vtanh.pop %v2573
      %v2871 = vtanh.pop %v2576
      %v2872 = vtanh.pop %v2581
      %v2873 = vtanh.pop %v2584
      %v2874 = vtanh.pop %v2589
      %v2875 = vtanh.pop %v2592
      %v2876 = vtanh.pop %v2597
      %v2877 = vtanh.pop %v2600
      %v2878 = vtanh.pop %v2605
      %v2879 = vtanh.pop %v2608
      %v2880 = vtanh.pop %v2613
      %v2881 = vtanh.pop %v2616
      %v2882 = vtanh.pop %v2621
      %v2883 = vtanh.pop %v2624
      %v2884 = vtanh.pop %v2629
      %v2885 = vtanh.pop %v2632
      %v2886 = vtanh.pop %v2637
      %v2887 = vtanh.pop %v2640
      %v2888 = vtanh.pop %v2645
      %v2889 = vtanh.pop %v2648
      %v2890 = vtanh.pop %v2653
      %v2891 = vtanh.pop %v2656
      %v2892 = vtanh.pop %v2661
      %v2893 = vtanh.pop %v2664
      %v2894 = vtanh.pop %v2669
      %v2895 = vtanh.pop %v2672
      %v2896 = vtanh.pop %v2677
      %v2897 = vtanh.pop %v2680
      %v2898 = vtanh.pop %v2685
      %v2899 = vtanh.pop %v2688
      %v2900 = vtanh.pop %v2693
      %v2901 = vtanh.pop %v2696
      %v2902 = vtanh.pop %v2701
      %v2903 = vtanh.pop %v2704
      %v2904 = vtanh.pop %v2709
      %v2905 = vtanh.pop %v2712
      %v2906 = vtanh.pop %v2717
      %v2907 = vtanh.pop %v2720
      %v2908 = vtanh.pop %v2725
      %v2909 = vtanh.pop %v2728
      %v2910 = vtanh.pop %v2733
      %v2911 = vtanh.pop %v2736
      %v2912 = vtanh.pop %v2741
      %v2913 = vtanh.pop %v2744
      %v2914 = vtanh.pop %v2749
      %v2915 = vtanh.pop %v2752
      %v2916 = vtanh.pop %v2757
      %v2917 = vtanh.pop %v2760
      %v2918 = vtanh.pop %v2765
      %v2919 = vtanh.pop %v2768
      %v2920 = vtanh.pop %v2773
      %v2921 = vtanh.pop %v2776
      %v2922 = vtanh.pop %v2781
      %v2923 = vtanh.pop %v2784
      %v2924 = vtanh.pop %v2789
      %v2925 = vtanh.pop %v2792
      %v2926 = vtanh.pop %v2797
      %2927 = vst [vmem:[%s280] sm:$0xff] %v2802
      %2928 = vst [vmem:[%s280 + $0x8] sm:$0xff] %v2803
      %2929 = vst [vmem:[%s280 + $0x10] sm:$0xff] %v2804
      %2930 = vst [vmem:[%s280 + $0x18] sm:$0xff] %v2805
      %2931 = vst [vmem:[%s280 + $0x20] sm:$0xff] %v2806
      %2932 = vst [vmem:[%s280 + $0x28] sm:$0xff] %v2807
      %2933 = vst [vmem:[%s280 + $0x30] sm:$0xff] %v2808
      %2934 = vst [vmem:[%s280 + $0x38] sm:$0xff] %v2809
      %2935 = vst [vmem:[%s280 + $0x40] sm:$0xff] %v2810
      %2936 = vst [vmem:[%s280 + $0x48] sm:$0xff] %v2811
      %2937 = vst [vmem:[%s280 + $0x50] sm:$0xff] %v2812
      %2938 = vst [vmem:[%s280 + $0x58] sm:$0xff] %v2813
      %2939 = vst [vmem:[%s280 + $0x60] sm:$0xff] %v2814
      %2940 = vst [vmem:[%s280 + $0x68] sm:$0xff] %v2815
      %2941 = vst [vmem:[%s280 + $0x70] sm:$0xff] %v2816
      %2942 = vst [vmem:[%s280 + $0x78] sm:$0xff] %v2817
      %2943 = vst [vmem:[%s280 + $0x80] sm:$0xff] %v2818
      %2944 = vst [vmem:[%s280 + $0x88] sm:$0xff] %v2819
      %2945 = vst [vmem:[%s280 + $0x90] sm:$0xff] %v2820
      %2946 = vst [vmem:[%s280 + $0x98] sm:$0xff] %v2821
      %2947 = vst [vmem:[%s280 + $0xa0] sm:$0xff] %v2822
      %2948 = vst [vmem:[%s280 + $0xa8] sm:$0xff] %v2823
      %2949 = vst [vmem:[%s280 + $0xb0] sm:$0xff] %v2824
      %2950 = vst [vmem:[%s280 + $0xb8] sm:$0xff] %v2825
      %2951 = vst [vmem:[%s280 + $0xc0] sm:$0xff] %v2826
      %2952 = vst [vmem:[%s280 + $0xc8] sm:$0xff] %v2827
      %2953 = vst [vmem:[%s280 + $0xd0] sm:$0xff] %v2828
      %2954 = vst [vmem:[%s280 + $0xd8] sm:$0xff] %v2829
      %2955 = vst [vmem:[%s280 + $0xe0] sm:$0xff] %v2830
      %2956 = vst [vmem:[%s280 + $0xe8] sm:$0xff] %v2831
      %2957 = vst [vmem:[%s280 + $0xf0] sm:$0xff] %v2832
      %2958 = vst [vmem:[%s280 + $0xf8] sm:$0xff] %v2833
      %2959 = vst [vmem:[%s280 + $0x100] sm:$0xff] %v2834
      %2960 = vst [vmem:[%s280 + $0x108] sm:$0xff] %v2835
      %2961 = vst [vmem:[%s280 + $0x110] sm:$0xff] %v2836
      %2962 = vst [vmem:[%s280 + $0x118] sm:$0xff] %v2837
      %2963 = vst [vmem:[%s280 + $0x120] sm:$0xff] %v2838
      %2964 = vst [vmem:[%s280 + $0x128] sm:$0xff] %v2839
      %2965 = vst [vmem:[%s280 + $0x130] sm:$0xff] %v2840
      %2966 = vst [vmem:[%s280 + $0x138] sm:$0xff] %v2841
      %2967 = vst [vmem:[%s280 + $0x140] sm:$0xff] %v2842
      %2968 = vst [vmem:[%s280 + $0x148] sm:$0xff] %v2843
      %2969 = vst [vmem:[%s280 + $0x150] sm:$0xff] %v2844
      %2970 = vst [vmem:[%s280 + $0x158] sm:$0xff] %v2845
      %2971 = vst [vmem:[%s280 + $0x160] sm:$0xff] %v2846
      %2972 = vst [vmem:[%s280 + $0x168] sm:$0xff] %v2847
      %2973 = vst [vmem:[%s280 + $0x170] sm:$0xff] %v2848
      %2974 = vst [vmem:[%s280 + $0x178] sm:$0xff] %v2849
      %2975 = vst [vmem:[%s280 + $0x180] sm:$0xff] %v2850
      %2976 = vst [vmem:[%s280 + $0x188] sm:$0xff] %v2851
      %2977 = vst [vmem:[%s280 + $0x190] sm:$0xff] %v2852
      %2978 = vst [vmem:[%s280 + $0x198] sm:$0xff] %v2853
      %2979 = vst [vmem:[%s280 + $0x1a0] sm:$0xff] %v2854
      %2980 = vst [vmem:[%s280 + $0x1a8] sm:$0xff] %v2855
      %2981 = vst [vmem:[%s280 + $0x1b0] sm:$0xff] %v2856
      %2982 = vst [vmem:[%s280 + $0x1b8] sm:$0xff] %v2857
      %2983 = vst [vmem:[%s280 + $0x1c0] sm:$0xff] %v2858
      %2984 = vst [vmem:[%s280 + $0x1c8] sm:$0xff] %v2859
      %2985 = vst [vmem:[%s280 + $0x1d0] sm:$0xff] %v2860
      %2986 = vst [vmem:[%s280 + $0x1d8] sm:$0xff] %v2861
      %2987 = vst [vmem:[%s280 + $0x1e0] sm:$0xff] %v2862
      %2988 = vst [vmem:[%s280 + $0x1e8] sm:$0xff] %v2863
      %2989 = vst [vmem:[%s280 + $0x1f0] sm:$0xff] %v2864
      %2990 = vst [vmem:[%s280 + $0x1f8] sm:$0xff] %v2865
      %2991 = vst [vmem:[%s280 + $0x200] sm:$0xff] %v2866
      %2992 = vst [vmem:[%s280 + $0x208] sm:$0xff] %v2867
      %2993 = vst [vmem:[%s280 + $0x210] sm:$0xff] %v2868
      %2994 = vst [vmem:[%s280 + $0x218] sm:$0xff] %v2869
      %2995 = vst [vmem:[%s280 + $0x220] sm:$0xff] %v2870
      %2996 = vst [vmem:[%s280 + $0x228] sm:$0xff] %v2871
      %2997 = vst [vmem:[%s280 + $0x230] sm:$0xff] %v2872
      %2998 = vst [vmem:[%s280 + $0x238] sm:$0xff] %v2873
      %2999 = vst [vmem:[%s280 + $0x240] sm:$0xff] %v2874
      %3000 = vst [vmem:[%s280 + $0x248] sm:$0xff] %v2875
      %3001 = vst [vmem:[%s280 + $0x250] sm:$0xff] %v2876
      %3002 = vst [vmem:[%s280 + $0x258] sm:$0xff] %v2877
      %3003 = vst [vmem:[%s280 + $0x260] sm:$0xff] %v2878
      %3004 = vst [vmem:[%s280 + $0x268] sm:$0xff] %v2879
      %3005 = vst [vmem:[%s280 + $0x270] sm:$0xff] %v2880
      %3006 = vst [vmem:[%s280 + $0x278] sm:$0xff] %v2881
      %3007 = vst [vmem:[%s280 + $0x280] sm:$0xff] %v2882
      %3008 = vst [vmem:[%s280 + $0x288] sm:$0xff] %v2883
      %3009 = vst [vmem:[%s280 + $0x290] sm:$0xff] %v2884
      %3010 = vst [vmem:[%s280 + $0x298] sm:$0xff] %v2885
      %3011 = vst [vmem:[%s280 + $0x2a0] sm:$0xff] %v2886
      %3012 = vst [vmem:[%s280 + $0x2a8] sm:$0xff] %v2887
      %3013 = vst [vmem:[%s280 + $0x2b0] sm:$0xff] %v2888
      %3014 = vst [vmem:[%s280 + $0x2b8] sm:$0xff] %v2889
      %3015 = vst [vmem:[%s280 + $0x2c0] sm:$0xff] %v2890
      %3016 = vst [vmem:[%s280 + $0x2c8] sm:$0xff] %v2891
      %3017 = vst [vmem:[%s280 + $0x2d0] sm:$0xff] %v2892
      %3018 = vst [vmem:[%s280 + $0x2d8] sm:$0xff] %v2893
      %3019 = vst [vmem:[%s280 + $0x2e0] sm:$0xff] %v2894
      %3020 = vst [vmem:[%s280 + $0x2e8] sm:$0xff] %v2895
      %3021 = vst [vmem:[%s280 + $0x2f0] sm:$0xff] %v2896
      %3022 = vst [vmem:[%s280 + $0x2f8] sm:$0xff] %v2897
      %3023 = vst [vmem:[%s280 + $0x300] sm:$0xff] %v2898
      %3024 = vst [vmem:[%s280 + $0x308] sm:$0xff] %v2899
      %3025 = vst [vmem:[%s280 + $0x310] sm:$0xff] %v2900
      %3026 = vst [vmem:[%s280 + $0x318] sm:$0xff] %v2901
      %3027 = vst [vmem:[%s280 + $0x320] sm:$0xff] %v2902
      %3028 = vst [vmem:[%s280 + $0x328] sm:$0xff] %v2903
      %3029 = vst [vmem:[%s280 + $0x330] sm:$0xff] %v2904
      %3030 = vst [vmem:[%s280 + $0x338] sm:$0xff] %v2905
      %3031 = vst [vmem:[%s280 + $0x340] sm:$0xff] %v2906
      %3032 = vst [vmem:[%s280 + $0x348] sm:$0xff] %v2907
      %3033 = vst [vmem:[%s280 + $0x350] sm:$0xff] %v2908
      %3034 = vst [vmem:[%s280 + $0x358] sm:$0xff] %v2909
      %3035 = vst [vmem:[%s280 + $0x360] sm:$0xff] %v2910
      %3036 = vst [vmem:[%s280 + $0x368] sm:$0xff] %v2911
      %3037 = vst [vmem:[%s280 + $0x370] sm:$0xff] %v2912
      %3038 = vst [vmem:[%s280 + $0x378] sm:$0xff] %v2913
      %3039 = vst [vmem:[%s280 + $0x380] sm:$0xff] %v2914
      %3040 = vst [vmem:[%s280 + $0x388] sm:$0xff] %v2915
      %3041 = vst [vmem:[%s280 + $0x390] sm:$0xff] %v2916
      %3042 = vst [vmem:[%s280 + $0x398] sm:$0xff] %v2917
      %3043 = vst [vmem:[%s280 + $0x3a0] sm:$0xff] %v2918
      %3044 = vst [vmem:[%s280 + $0x3a8] sm:$0xff] %v2919
      %3045 = vst [vmem:[%s280 + $0x3b0] sm:$0xff] %v2920
      %3046 = vst [vmem:[%s280 + $0x3b8] sm:$0xff] %v2921
      %3047 = vst [vmem:[%s280 + $0x3c0] sm:$0xff] %v2922
      %3048 = vst [vmem:[%s280 + $0x3c8] sm:$0xff] %v2923
      %3049 = vst [vmem:[%s280 + $0x3d0] sm:$0xff] %v2924
      %3050 = vst [vmem:[%s280 + $0x3d8] sm:$0xff] %v2925
      %3051 = vst [vmem:[%s280 + $0x3e0] sm:$0xff] %v2926
      %s3052 = smul.u32 125, %s18
      %p3053 = scmp.lt.s32.totalorder %s3052, 249
      %s3054 = scalar_select %p3053, %s3052, 249
      %s3055 = smul.addr %s3054, 8
      %s3056 = scalar_lea.vmem %s7, %s3055
      // Predicated region
      $region49: #{encoder_forward.1} parent=47 // pred_check
        %p3057 = pneg %p188
      $region50: #{encoder_forward.1} parent=47 // pred_check_branch
        %3059 = sbr.rel (%p3057) target = $region52
      $region51: #{encoder_forward.1} parent=47 // pred_region
        %s3060 = smul.u32 125, %s18
      $region52: #{encoder_forward.1} parent=47 // pred_fallthru
        _
    $region48: #{encoder_forward.1} parent=5 // pred_fallthru
      _
    %p3061 = scmp.le.s32.totalorder 2, %s13
    // Predicated region
    $region53: #{encoder_forward.1} parent=5 // pred_check
      %p3062 = pneg %p3061
    $region54: #{encoder_forward.1} parent=5 // pred_check_branch
      %3064 = sbr.rel (%p3062) target = $region56
    $region55: #{encoder_forward.1} parent=5 // pred_region
      %s3065 = ssub.s32 %s13, 2
      // Predicated region
      $region57: #{encoder_forward.1} parent=55 // pred_check
        %p3066 = pneg %p194
      $region58: #{encoder_forward.1} parent=55 // pred_check_branch
        %3068 = sbr.rel (%p3066) target = $region60
      $region59: #{encoder_forward.1} parent=55 // pred_region
        %s3069 = smul.u32 125, %s19
        %p3070 = scmp.lt.s32.totalorder %s3069, 249
        %s3071 = scalar_select %p3070, %s3069, 249
        %s3072 = smul.addr %s3071, 8
        %s3073 = scalar_lea.vmem %s7, %s3072
      $region60: #{encoder_forward.1} parent=55 // pred_fallthru
        _
    $region56: #{encoder_forward.1} parent=5 // pred_fallthru
      _
  $region6: #{encoder_forward.1} parent=0 // loop_footer
    %s17 = sadd.s32 1, %s13
  $region7: #{encoder_forward.1} parent=0 // loop_footer_branch
    %12 = sbr.rel target = $region3
  $region8: #{encoder_forward.1} parent=0 // loop_exit
    _

</llo_original>
